<compile_context>
chip_gen: v7x
topology: tpu7x:2x2x1
jax: 0.10.0
libtpu: 0.0.40
codegen_flags: <defaults>
</compile_context>

<pallas_src>
import jax
import jax.numpy as jnp
from jax.experimental import pallas as pl
from jax.experimental.pallas import tpu as pltpu


# ----------------------------------------------------------------------------
# Batch blocking: images per grid step (lane-concatenated inside a block).
# Keep >= 2 grid blocks so ("parallel",) can split across v7x's two TCs, and
# cap B at 2 to keep conv2's accumulator / f1 windows inside the vreg budget.
# ----------------------------------------------------------------------------
def _pick_batch_block(n):
    for b in (2, 1):
        if n % b == 0 and (n // b) >= 2:
            return b
    return 1


# ----------------------------------------------------------------------------
# Fused kernel factory: conv1+ReLU -> conv2+ReLU -> masked GAP -> Linear
# (all shape constants are baked in via closure)
# ----------------------------------------------------------------------------
def _make_kernel(B, L, wp, Qe, Qc, c1, c2, nc):
    Q1 = (B - 1) * L + Qe              # conv1 extended-grid lane extent
    Q2 = (B - 1) * L + Qc              # conv2 output-grid lane extent
    offs = [dh * wp + dw for dh in range(3) for dw in range(3)]  # flat 3x3 tap offsets

    def kernel(x_ref, w1_ref, b1_ref, w2_ref, b2_ref, wc_ref, bc_ref,
               m1_ref, p_ref, o_ref, f1_ref):
        # x_ref : [1, cin, B*L] bf16  (B images, zero-padded by 2, spatial flattened on lanes)
        # w1_ref: [9, c1, cin] bf16    b1_ref: [c1, 1] f32
        # w2_ref: [9, c2, c1]  bf16    b2_ref: [c2, 1] f32
        # wc_ref: [nc, c2] f32         bc_ref: [nc, 1] f32
        # m1_ref: [1, Q1] f32   interior mask (zeroes conv1 ring + junk lanes -> exact zero padding)
        # p_ref : [Q2, B] f32   per-image mean-pool matrix (1/(H*W) at valid positions)
        # o_ref : [1, nc, B] f32
        # f1_ref: VMEM scratch [c1, Q1] bf16 (zero-padded conv1+ReLU feature map, lane-dense)

        # ---- conv1 + bias + ReLU: 9 lane-shifted windows, f32 accumulation -----
        acc1 = jnp.zeros((c1, Q1), jnp.float32)
        for t in range(9):
            off = offs[t]
            acc1 = acc1 + jnp.dot(w1_ref[t], x_ref[0, :, off:off + Q1],
                                  preferred_element_type=jnp.float32)
        f1_ref[...] = (jnp.maximum(acc1 + b1_ref[...], 0.0)
                       * m1_ref[...]).astype(f1_ref.dtype)

        # ---- conv2 + bias + ReLU: lane-shifted windows of the padded f1 ---------
        acc2 = jnp.zeros((c2, Q2), jnp.float32)
        for t in range(9):
            off = offs[t]
            acc2 = acc2 + jnp.dot(w2_ref[t], f1_ref[:, off:off + Q2],
                                  preferred_element_type=jnp.float32)
        f2 = jnp.maximum(acc2 + b2_ref[...], 0.0)                  # [c2, Q2] f32

        # ---- masked GAP (mean folded into p_ref) + classifier --------------------
        pooled = jnp.dot(f2, p_ref[...], preferred_element_type=jnp.float32)      # [c2, B]
        logits = jnp.dot(wc_ref[...], pooled,
                         preferred_element_type=jnp.float32) + bc_ref[...]        # [nc, B]
        o_ref[...] = logits.reshape(1, nc, B)

    return kernel


# ----------------------------------------------------------------------------
# Wrapper: layout prep + single fused pallas_call
# ----------------------------------------------------------------------------
def baseline_classifier_forward(params, x_nchw):
    """Mirrors Baseline_Classifier.forward: backbone(x) -> x_list -> cls head."""
    x = x_nchw.astype(jnp.float32)
    n, cin, h, w = x.shape
    c1 = params["w_conv1"].shape[2]
    c2 = params["w_conv2"].shape[2]
    nc = params["w_cls"].shape[1]

    # Flattened-padded-grid geometry (pad-by-2 "extended grid" trick, stride wp).
    hp, wp = h + 4, w + 4
    Qe = (h + 1) * wp + (w + 2)         # conv1 extended-grid flat extent
    Qc = (h - 1) * wp + w               # conv2 output-grid flat extent
    max_off = 2 * wp + 2                # largest 3x3 tap offset on the flat grid
    L = max(hp * wp, Qe + max_off)      # per-image flat length (tail-padded if needed)

    B = _pick_batch_block(n)
    G = n // B
    Q1 = (B - 1) * L + Qe
    Q2 = (B - 1) * L + Qc

    # Review correctness note: tie the wrapper pad amount to the kernel derivation.
    assert Qe - Qc == max_off, "pad-by-2 extended grid no longer matches tap offsets"
    assert max_off + Q1 <= B * L, "per-image flat length too short for tap windows"
    assert max_off + Qc <= Qe

    # ---- input: NCHW -> pad by 2 -> flatten spatial (stride wp) -> B images on lanes
    xp = jnp.pad(x, ((0, 0), (0, 0), (2, 2), (2, 2)))              # [n, cin, hp, wp]
    xf = xp.reshape(n, cin, hp * wp)
    if L > hp * wp:
        xf = jnp.pad(xf, ((0, 0), (0, 0), (0, L - hp * wp)))
    xf = (xf.reshape(G, B, cin, L).transpose(0, 2, 1, 3)
            .reshape(G, cin, B * L).astype(jnp.bfloat16))

    # ---- weights: tap-major [9, Cout, Cin] for the per-tap MXU dots ------------
    w1 = jnp.transpose(params["w_conv1"], (0, 2, 1)).astype(jnp.bfloat16)   # [9, c1, cin]
    w2 = jnp.transpose(params["w_conv2"], (0, 2, 1)).astype(jnp.bfloat16)   # [9, c2, c1]
    b1 = params["b_conv1"].reshape(c1, 1).astype(jnp.float32)
    b2 = params["b_conv2"].reshape(c2, 1).astype(jnp.float32)
    wc = jnp.transpose(params["w_cls"]).astype(jnp.float32)                 # [nc, c2]
    bc = params["b_cls"].reshape(nc, 1).astype(jnp.float32)

    # ---- precomputed lane-dense masks (no per-step iota/where in the kernel) ---
    q = jnp.arange(Q1)
    p = q % L
    r1, cc1 = p // wp, p % wp
    m1 = ((r1 >= 1) & (r1 <= h) & (cc1 >= 1) & (cc1 <= w)
          ).astype(jnp.float32).reshape(1, Q1)

    q2 = jnp.arange(Q2)
    img = q2 // L
    p2 = q2 % L
    r2, cc2 = p2 // wp, p2 % wp
    valid2 = (r2 < h) & (cc2 < w)
    pool = ((valid2[:, None] & (img[:, None] == jnp.arange(B)[None, :]))
            .astype(jnp.float32) / float(h * w))                            # [Q2, B]

    kernel = _make_kernel(B, L, wp, Qe, Qc, c1, c2, nc)

    flops = n * (2 * Qe * 9 * cin * c1 + 2 * Qc * 9 * c1 * c2
                 + 2 * Qc * c2 + 2 * c2 * nc)
    bytes_accessed = (xf.size * 2 + w1.size * 2 + w2.size * 2
                      + (b1.size + b2.size + wc.size + bc.size
                         + m1.size + pool.size) * 4
                      + G * nc * B * 4)

    out = pl.pallas_call(
        kernel,
        out_shape=jax.ShapeDtypeStruct((G, nc, B), jnp.float32),
        grid=(G,),
        in_specs=[
            pl.BlockSpec((1, cin, B * L), lambda i: (i, 0, 0)),
            pl.BlockSpec((9, c1, cin), lambda i: (0, 0, 0)),
            pl.BlockSpec((c1, 1), lambda i: (0, 0)),
            pl.BlockSpec((9, c2, c1), lambda i: (0, 0, 0)),
            pl.BlockSpec((c2, 1), lambda i: (0, 0)),
            pl.BlockSpec((nc, c2), lambda i: (0, 0)),
            pl.BlockSpec((nc, 1), lambda i: (0, 0)),
            pl.BlockSpec((1, Q1), lambda i: (0, 0)),
            pl.BlockSpec((Q2, B), lambda i: (0, 0)),
        ],
        out_specs=pl.BlockSpec((1, nc, B), lambda i: (i, 0, 0)),
        scratch_shapes=[pltpu.VMEM((c1, Q1), jnp.bfloat16)],
        compiler_params=pltpu.CompilerParams(
            dimension_semantics=("parallel",)),          # shards blocks over v7x's 2 TCs
        cost_estimate=pl.CostEstimate(
            flops=flops, transcendentals=0, bytes_accessed=bytes_accessed),
    )(xf, w1, b1, w2, b2, wc, bc, m1, pool)

    # [G, nc, B] -> [n, nc]
    return out.transpose(0, 2, 1).reshape(n, nc)


# ----------------------------------------------------------------------------
# Params (synthetic; conv weight layout [9, Cin, Cout] == PyTorch
# [Cout, Cin, 3, 3] permuted to [3, 3, Cin, Cout] with the taps flattened)
# ----------------------------------------------------------------------------
def init_params(key, cin=4, c1=16, c2=32, num_classes=10):
    k1, k2, k3, k4, k5 = jax.random.split(key, 5)
    return {
        "w_conv1": jax.random.normal(k1, (9, cin, c1), jnp.float32) * 0.1,
        "b_conv1": jax.random.normal(k4, (c1,), jnp.float32) * 0.1,
        "w_conv2": jax.random.normal(k2, (9, c1, c2), jnp.float32) * 0.05,
        "b_conv2": jax.random.normal(k5, (c2,), jnp.float32) * 0.1,
        "w_cls": jax.random.normal(k3, (c2, num_classes), jnp.float32) * 0.05,
        "b_cls": jnp.zeros((num_classes,), jnp.float32),
    }


# ----------------------------------------------------------------------------
# Pure-JAX reference (f32) for a correctness check of the fused kernel
# ----------------------------------------------------------------------------
def _reference_forward(params, x_nchw):
    x = jnp.transpose(x_nchw, (0, 2, 3, 1)).astype(jnp.float32)   # NHWC

    def conv3x3_relu(inp, wt, bias):               # wt: [9, Cin, Cout]
        n_, h_, w_, _ = inp.shape
        xp = jnp.pad(inp, ((0, 0), (1, 1), (1, 1), (0, 0)))
        out = jnp.zeros((n_, h_, w_, wt.shape[2]), jnp.float32)
        for t in range(9):
            dh, dw = t // 3, t % 3
            out = out + jnp.einsum("nhwc,ck->nhwk",
                                   xp[:, dh:dh + h_, dw:dw + w_, :], wt[t])
        return jnp.maximum(out + bias, 0.0)

    f1 = conv3x3_relu(x, params["w_conv1"], params["b_conv1"])
    f2 = conv3x3_relu(f1, params["w_conv2"], params["b_conv2"])
    pooled = jnp.mean(f2, axis=(1, 2))
    return pooled @ params["w_cls"] + params["b_cls"]


if __name__ == "__main__":
    key = jax.random.PRNGKey(0)
    kx, kp = jax.random.split(key)

    # small shapes consistent with an image-classification forward (NCHW);
    # batch=4 so the batch-blocked grid (B=2 images per step, 2 grid blocks) is exercised
    x = jax.random.normal(kx, (4, 4, 16, 16), jnp.float32)
    params = init_params(kp, cin=4, c1=16, c2=32, num_classes=10)

    logits = jax.jit(baseline_classifier_forward)(params, x)
    logits = jax.block_until_ready(logits)
    assert logits.shape == (4, 10) and logits.dtype == jnp.float32

    ref = _reference_forward(params, x)
    max_err = float(jnp.max(jnp.abs(logits - ref)))
    assert max_err < 5e-2, f"kernel vs reference max abs err {max_err}"

    print("KERNEL_OK")
</pallas_src>

<mosaic_0001>
module attributes {stable_mosaic.version = 11 : i64} {
  func.func @kernel(%arg0: i32, %arg1: memref<1x4x800xbf16, #tpu.memory_space<vmem>>, %arg2: memref<9x16x4xbf16, #tpu.memory_space<vmem>>, %arg3: memref<16x1xf32, #tpu.memory_space<vmem>>, %arg4: memref<9x32x16xbf16, #tpu.memory_space<vmem>>, %arg5: memref<32x1xf32, #tpu.memory_space<vmem>>, %arg6: memref<10x32xf32, #tpu.memory_space<vmem>>, %arg7: memref<10x1xf32, #tpu.memory_space<vmem>>, %arg8: memref<1x758xf32, #tpu.memory_space<vmem>>, %arg9: memref<716x2xf32, #tpu.memory_space<vmem>>, %arg10: memref<1x10x2xf32, #tpu.memory_space<vmem>>, %arg11: memref<16x758xbf16, #tpu.memory_space<vmem>>) attributes {dimension_semantics = [#tpu.dimension_semantics<parallel>], iteration_bounds = array<i64: 2>, scalar_prefetch = 0 : i64, scratch_operands = 1 : i64, tpu.core_type = #tpu.core_type<tc>, window_params = [{transform_indices = @transform_0, window_bounds = array<i64: 1, 4, 800>}, {pipeline_mode = #tpu.pipeline_mode<synchronous>, transform_indices = @transform_1, window_bounds = array<i64: 9, 16, 4>}, {pipeline_mode = #tpu.pipeline_mode<synchronous>, transform_indices = @transform_2, window_bounds = array<i64: 16, 1>}, {pipeline_mode = #tpu.pipeline_mode<synchronous>, transform_indices = @transform_3, window_bounds = array<i64: 9, 32, 16>}, {pipeline_mode = #tpu.pipeline_mode<synchronous>, transform_indices = @transform_4, window_bounds = array<i64: 32, 1>}, {pipeline_mode = #tpu.pipeline_mode<synchronous>, transform_indices = @transform_5, window_bounds = array<i64: 10, 32>}, {pipeline_mode = #tpu.pipeline_mode<synchronous>, transform_indices = @transform_6, window_bounds = array<i64: 10, 1>}, {pipeline_mode = #tpu.pipeline_mode<synchronous>, transform_indices = @transform_7, window_bounds = array<i64: 1, 758>}, {pipeline_mode = #tpu.pipeline_mode<synchronous>, transform_indices = @transform_8, window_bounds = array<i64: 716, 2>}, {transform_indices = @transform_9, window_bounds = array<i64: 1, 10, 2>}]} {
    %cst = arith.constant 0.000000e+00 : f32
    %0 = vector.broadcast %cst : f32 to vector<16x758xf32>
    %c0 = arith.constant 0 : index
    %c0_0 = arith.constant 0 : index
    %c0_1 = arith.constant 0 : index
    %1 = vector.load %arg2[%c0, %c0_0, %c0_1] : memref<9x16x4xbf16, #tpu.memory_space<vmem>>, vector<1x16x4xbf16>
    %2 = vector.shape_cast %1 : vector<1x16x4xbf16> to vector<16x4xbf16>
    %c0_2 = arith.constant 0 : index
    %c0_3 = arith.constant 0 : index
    %c0_4 = arith.constant 0 : index
    %3 = vector.load %arg1[%c0_2, %c0_3, %c0_4] : memref<1x4x800xbf16, #tpu.memory_space<vmem>>, vector<1x4x758xbf16>
    %4 = vector.shape_cast %3 : vector<1x4x758xbf16> to vector<4x758xbf16>
    %cst_5 = arith.constant dense<0.000000e+00> : vector<16x758xf32>
    %5 = tpu.matmul %2, %4, %cst_5 {dimension_numbers = #tpu.dot_dimension_numbers<[1], [0], [0], [1], [0, 0, 1, 1], [], []>} : vector<16x4xbf16>, vector<4x758xbf16>, vector<16x758xf32> -> vector<16x758xf32>
    %6 = arith.addf %0, %5 : vector<16x758xf32>
    %c1 = arith.constant 1 : index
    %c0_6 = arith.constant 0 : index
    %c0_7 = arith.constant 0 : index
    %7 = vector.load %arg2[%c1, %c0_6, %c0_7] : memref<9x16x4xbf16, #tpu.memory_space<vmem>>, vector<1x16x4xbf16>
    %8 = vector.shape_cast %7 : vector<1x16x4xbf16> to vector<16x4xbf16>
    %c0_8 = arith.constant 0 : index
    %c0_9 = arith.constant 0 : index
    %c1_10 = arith.constant 1 : index
    %9 = vector.load %arg1[%c0_8, %c0_9, %c1_10] : memref<1x4x800xbf16, #tpu.memory_space<vmem>>, vector<1x4x758xbf16>
    %10 = vector.shape_cast %9 : vector<1x4x758xbf16> to vector<4x758xbf16>
    %cst_11 = arith.constant dense<0.000000e+00> : vector<16x758xf32>
    %11 = tpu.matmul %8, %10, %cst_11 {dimension_numbers = #tpu.dot_dimension_numbers<[1], [0], [0], [1], [0, 0, 1, 1], [], []>} : vector<16x4xbf16>, vector<4x758xbf16>, vector<16x758xf32> -> vector<16x758xf32>
    %12 = arith.addf %6, %11 : vector<16x758xf32>
    %c2 = arith.constant 2 : index
    %c0_12 = arith.constant 0 : index
    %c0_13 = arith.constant 0 : index
    %13 = vector.load %arg2[%c2, %c0_12, %c0_13] : memref<9x16x4xbf16, #tpu.memory_space<vmem>>, vector<1x16x4xbf16>
    %14 = vector.shape_cast %13 : vector<1x16x4xbf16> to vector<16x4xbf16>
    %c0_14 = arith.constant 0 : index
    %c0_15 = arith.constant 0 : index
    %c2_16 = arith.constant 2 : index
    %15 = vector.load %arg1[%c0_14, %c0_15, %c2_16] : memref<1x4x800xbf16, #tpu.memory_space<vmem>>, vector<1x4x758xbf16>
    %16 = vector.shape_cast %15 : vector<1x4x758xbf16> to vector<4x758xbf16>
    %cst_17 = arith.constant dense<0.000000e+00> : vector<16x758xf32>
    %17 = tpu.matmul %14, %16, %cst_17 {dimension_numbers = #tpu.dot_dimension_numbers<[1], [0], [0], [1], [0, 0, 1, 1], [], []>} : vector<16x4xbf16>, vector<4x758xbf16>, vector<16x758xf32> -> vector<16x758xf32>
    %18 = arith.addf %12, %17 : vector<16x758xf32>
    %c3 = arith.constant 3 : index
    %c0_18 = arith.constant 0 : index
    %c0_19 = arith.constant 0 : index
    %19 = vector.load %arg2[%c3, %c0_18, %c0_19] : memref<9x16x4xbf16, #tpu.memory_space<vmem>>, vector<1x16x4xbf16>
    %20 = vector.shape_cast %19 : vector<1x16x4xbf16> to vector<16x4xbf16>
    %c0_20 = arith.constant 0 : index
    %c0_21 = arith.constant 0 : index
    %c20 = arith.constant 20 : index
    %21 = vector.load %arg1[%c0_20, %c0_21, %c20] : memref<1x4x800xbf16, #tpu.memory_space<vmem>>, vector<1x4x758xbf16>
    %22 = vector.shape_cast %21 : vector<1x4x758xbf16> to vector<4x758xbf16>
    %cst_22 = arith.constant dense<0.000000e+00> : vector<16x758xf32>
    %23 = tpu.matmul %20, %22, %cst_22 {dimension_numbers = #tpu.dot_dimension_numbers<[1], [0], [0], [1], [0, 0, 1, 1], [], []>} : vector<16x4xbf16>, vector<4x758xbf16>, vector<16x758xf32> -> vector<16x758xf32>
    %24 = arith.addf %18, %23 : vector<16x758xf32>
    %c4 = arith.constant 4 : index
    %c0_23 = arith.constant 0 : index
    %c0_24 = arith.constant 0 : index
    %25 = vector.load %arg2[%c4, %c0_23, %c0_24] : memref<9x16x4xbf16, #tpu.memory_space<vmem>>, vector<1x16x4xbf16>
    %26 = vector.shape_cast %25 : vector<1x16x4xbf16> to vector<16x4xbf16>
    %c0_25 = arith.constant 0 : index
    %c0_26 = arith.constant 0 : index
    %c21 = arith.constant 21 : index
    %27 = vector.load %arg1[%c0_25, %c0_26, %c21] : memref<1x4x800xbf16, #tpu.memory_space<vmem>>, vector<1x4x758xbf16>
    %28 = vector.shape_cast %27 : vector<1x4x758xbf16> to vector<4x758xbf16>
    %cst_27 = arith.constant dense<0.000000e+00> : vector<16x758xf32>
    %29 = tpu.matmul %26, %28, %cst_27 {dimension_numbers = #tpu.dot_dimension_numbers<[1], [0], [0], [1], [0, 0, 1, 1], [], []>} : vector<16x4xbf16>, vector<4x758xbf16>, vector<16x758xf32> -> vector<16x758xf32>
    %30 = arith.addf %24, %29 : vector<16x758xf32>
    %c5 = arith.constant 5 : index
    %c0_28 = arith.constant 0 : index
    %c0_29 = arith.constant 0 : index
    %31 = vector.load %arg2[%c5, %c0_28, %c0_29] : memref<9x16x4xbf16, #tpu.memory_space<vmem>>, vector<1x16x4xbf16>
    %32 = vector.shape_cast %31 : vector<1x16x4xbf16> to vector<16x4xbf16>
    %c0_30 = arith.constant 0 : index
    %c0_31 = arith.constant 0 : index
    %c22 = arith.constant 22 : index
    %33 = vector.load %arg1[%c0_30, %c0_31, %c22] : memref<1x4x800xbf16, #tpu.memory_space<vmem>>, vector<1x4x758xbf16>
    %34 = vector.shape_cast %33 : vector<1x4x758xbf16> to vector<4x758xbf16>
    %cst_32 = arith.constant dense<0.000000e+00> : vector<16x758xf32>
    %35 = tpu.matmul %32, %34, %cst_32 {dimension_numbers = #tpu.dot_dimension_numbers<[1], [0], [0], [1], [0, 0, 1, 1], [], []>} : vector<16x4xbf16>, vector<4x758xbf16>, vector<16x758xf32> -> vector<16x758xf32>
    %36 = arith.addf %30, %35 : vector<16x758xf32>
    %c6 = arith.constant 6 : index
    %c0_33 = arith.constant 0 : index
    %c0_34 = arith.constant 0 : index
    %37 = vector.load %arg2[%c6, %c0_33, %c0_34] : memref<9x16x4xbf16, #tpu.memory_space<vmem>>, vector<1x16x4xbf16>
    %38 = vector.shape_cast %37 : vector<1x16x4xbf16> to vector<16x4xbf16>
    %c0_35 = arith.constant 0 : index
    %c0_36 = arith.constant 0 : index
    %c40 = arith.constant 40 : index
    %39 = vector.load %arg1[%c0_35, %c0_36, %c40] : memref<1x4x800xbf16, #tpu.memory_space<vmem>>, vector<1x4x758xbf16>
    %40 = vector.shape_cast %39 : vector<1x4x758xbf16> to vector<4x758xbf16>
    %cst_37 = arith.constant dense<0.000000e+00> : vector<16x758xf32>
    %41 = tpu.matmul %38, %40, %cst_37 {dimension_numbers = #tpu.dot_dimension_numbers<[1], [0], [0], [1], [0, 0, 1, 1], [], []>} : vector<16x4xbf16>, vector<4x758xbf16>, vector<16x758xf32> -> vector<16x758xf32>
    %42 = arith.addf %36, %41 : vector<16x758xf32>
    %c7 = arith.constant 7 : index
    %c0_38 = arith.constant 0 : index
    %c0_39 = arith.constant 0 : index
    %43 = vector.load %arg2[%c7, %c0_38, %c0_39] : memref<9x16x4xbf16, #tpu.memory_space<vmem>>, vector<1x16x4xbf16>
    %44 = vector.shape_cast %43 : vector<1x16x4xbf16> to vector<16x4xbf16>
    %c0_40 = arith.constant 0 : index
    %c0_41 = arith.constant 0 : index
    %c41 = arith.constant 41 : index
    %45 = vector.load %arg1[%c0_40, %c0_41, %c41] : memref<1x4x800xbf16, #tpu.memory_space<vmem>>, vector<1x4x758xbf16>
    %46 = vector.shape_cast %45 : vector<1x4x758xbf16> to vector<4x758xbf16>
    %cst_42 = arith.constant dense<0.000000e+00> : vector<16x758xf32>
    %47 = tpu.matmul %44, %46, %cst_42 {dimension_numbers = #tpu.dot_dimension_numbers<[1], [0], [0], [1], [0, 0, 1, 1], [], []>} : vector<16x4xbf16>, vector<4x758xbf16>, vector<16x758xf32> -> vector<16x758xf32>
    %48 = arith.addf %42, %47 : vector<16x758xf32>
    %c8 = arith.constant 8 : index
    %c0_43 = arith.constant 0 : index
    %c0_44 = arith.constant 0 : index
    %49 = vector.load %arg2[%c8, %c0_43, %c0_44] : memref<9x16x4xbf16, #tpu.memory_space<vmem>>, vector<1x16x4xbf16>
    %50 = vector.shape_cast %49 : vector<1x16x4xbf16> to vector<16x4xbf16>
    %c0_45 = arith.constant 0 : index
    %c0_46 = arith.constant 0 : index
    %c42 = arith.constant 42 : index
    %51 = vector.load %arg1[%c0_45, %c0_46, %c42] : memref<1x4x800xbf16, #tpu.memory_space<vmem>>, vector<1x4x758xbf16>
    %52 = vector.shape_cast %51 : vector<1x4x758xbf16> to vector<4x758xbf16>
    %cst_47 = arith.constant dense<0.000000e+00> : vector<16x758xf32>
    %53 = tpu.matmul %50, %52, %cst_47 {dimension_numbers = #tpu.dot_dimension_numbers<[1], [0], [0], [1], [0, 0, 1, 1], [], []>} : vector<16x4xbf16>, vector<4x758xbf16>, vector<16x758xf32> -> vector<16x758xf32>
    %54 = arith.addf %48, %53 : vector<16x758xf32>
    %c0_48 = arith.constant 0 : index
    %c0_49 = arith.constant 0 : index
    %55 = vector.load %arg3[%c0_48, %c0_49] : memref<16x1xf32, #tpu.memory_space<vmem>>, vector<16x1xf32>
    %56 = vector.broadcast %55 : vector<16x1xf32> to vector<16x758xf32>
    %57 = arith.addf %54, %56 : vector<16x758xf32>
    %cst_50 = arith.constant 0.000000e+00 : f32
    %58 = vector.broadcast %cst_50 : f32 to vector<16x758xf32>
    %59 = arith.maximumf %57, %58 : vector<16x758xf32>
    %c0_51 = arith.constant 0 : index
    %c0_52 = arith.constant 0 : index
    %60 = vector.load %arg8[%c0_51, %c0_52] : memref<1x758xf32, #tpu.memory_space<vmem>>, vector<1x758xf32>
    %61 = vector.broadcast %60 : vector<1x758xf32> to vector<16x758xf32>
    %62 = arith.mulf %59, %61 : vector<16x758xf32>
    %63 = arith.truncf %62 : vector<16x758xf32> to vector<16x758xbf16>
    %c0_53 = arith.constant 0 : index
    %c0_54 = arith.constant 0 : index
    %64 = vector.load %arg11[%c0_53, %c0_54] : memref<16x758xbf16, #tpu.memory_space<vmem>>, vector<16x758xbf16>
    tpu.vector_store %arg11[%c0_53, %c0_54], %63 {strides = array<i32>} : memref<16x758xbf16, #tpu.memory_space<vmem>>, vector<16x758xbf16>,
    %cst_55 = arith.constant 0.000000e+00 : f32
    %65 = vector.broadcast %cst_55 : f32 to vector<32x716xf32>
    %c0_56 = arith.constant 0 : index
    %c0_57 = arith.constant 0 : index
    %c0_58 = arith.constant 0 : index
    %66 = vector.load %arg4[%c0_56, %c0_57, %c0_58] : memref<9x32x16xbf16, #tpu.memory_space<vmem>>, vector<1x32x16xbf16>
    %67 = vector.shape_cast %66 : vector<1x32x16xbf16> to vector<32x16xbf16>
    %c0_59 = arith.constant 0 : index
    %c0_60 = arith.constant 0 : index
    %68 = vector.load %arg11[%c0_59, %c0_60] : memref<16x758xbf16, #tpu.memory_space<vmem>>, vector<16x716xbf16>
    %cst_61 = arith.constant dense<0.000000e+00> : vector<32x716xf32>
    %69 = tpu.matmul %67, %68, %cst_61 {dimension_numbers = #tpu.dot_dimension_numbers<[1], [0], [0], [1], [0, 0, 1, 1], [], []>} : vector<32x16xbf16>, vector<16x716xbf16>, vector<32x716xf32> -> vector<32x716xf32>
    %70 = arith.addf %65, %69 : vector<32x716xf32>
    %c1_62 = arith.constant 1 : index
    %c0_63 = arith.constant 0 : index
    %c0_64 = arith.constant 0 : index
    %71 = vector.load %arg4[%c1_62, %c0_63, %c0_64] : memref<9x32x16xbf16, #tpu.memory_space<vmem>>, vector<1x32x16xbf16>
    %72 = vector.shape_cast %71 : vector<1x32x16xbf16> to vector<32x16xbf16>
    %c0_65 = arith.constant 0 : index
    %c1_66 = arith.constant 1 : index
    %73 = vector.load %arg11[%c0_65, %c1_66] : memref<16x758xbf16, #tpu.memory_space<vmem>>, vector<16x716xbf16>
    %cst_67 = arith.constant dense<0.000000e+00> : vector<32x716xf32>
    %74 = tpu.matmul %72, %73, %cst_67 {dimension_numbers = #tpu.dot_dimension_numbers<[1], [0], [0], [1], [0, 0, 1, 1], [], []>} : vector<32x16xbf16>, vector<16x716xbf16>, vector<32x716xf32> -> vector<32x716xf32>
    %75 = arith.addf %70, %74 : vector<32x716xf32>
    %c2_68 = arith.constant 2 : index
    %c0_69 = arith.constant 0 : index
    %c0_70 = arith.constant 0 : index
    %76 = vector.load %arg4[%c2_68, %c0_69, %c0_70] : memref<9x32x16xbf16, #tpu.memory_space<vmem>>, vector<1x32x16xbf16>
    %77 = vector.shape_cast %76 : vector<1x32x16xbf16> to vector<32x16xbf16>
    %c0_71 = arith.constant 0 : index
    %c2_72 = arith.constant 2 : index
    %78 = vector.load %arg11[%c0_71, %c2_72] : memref<16x758xbf16, #tpu.memory_space<vmem>>, vector<16x716xbf16>
    %cst_73 = arith.constant dense<0.000000e+00> : vector<32x716xf32>
    %79 = tpu.matmul %77, %78, %cst_73 {dimension_numbers = #tpu.dot_dimension_numbers<[1], [0], [0], [1], [0, 0, 1, 1], [], []>} : vector<32x16xbf16>, vector<16x716xbf16>, vector<32x716xf32> -> vector<32x716xf32>
    %80 = arith.addf %75, %79 : vector<32x716xf32>
    %c3_74 = arith.constant 3 : index
    %c0_75 = arith.constant 0 : index
    %c0_76 = arith.constant 0 : index
    %81 = vector.load %arg4[%c3_74, %c0_75, %c0_76] : memref<9x32x16xbf16, #tpu.memory_space<vmem>>, vector<1x32x16xbf16>
    %82 = vector.shape_cast %81 : vector<1x32x16xbf16> to vector<32x16xbf16>
    %c0_77 = arith.constant 0 : index
    %c20_78 = arith.constant 20 : index
    %83 = vector.load %arg11[%c0_77, %c20_78] : memref<16x758xbf16, #tpu.memory_space<vmem>>, vector<16x716xbf16>
    %cst_79 = arith.constant dense<0.000000e+00> : vector<32x716xf32>
    %84 = tpu.matmul %82, %83, %cst_79 {dimension_numbers = #tpu.dot_dimension_numbers<[1], [0], [0], [1], [0, 0, 1, 1], [], []>} : vector<32x16xbf16>, vector<16x716xbf16>, vector<32x716xf32> -> vector<32x716xf32>
    %85 = arith.addf %80, %84 : vector<32x716xf32>
    %c4_80 = arith.constant 4 : index
    %c0_81 = arith.constant 0 : index
    %c0_82 = arith.constant 0 : index
    %86 = vector.load %arg4[%c4_80, %c0_81, %c0_82] : memref<9x32x16xbf16, #tpu.memory_space<vmem>>, vector<1x32x16xbf16>
    %87 = vector.shape_cast %86 : vector<1x32x16xbf16> to vector<32x16xbf16>
    %c0_83 = arith.constant 0 : index
    %c21_84 = arith.constant 21 : index
    %88 = vector.load %arg11[%c0_83, %c21_84] : memref<16x758xbf16, #tpu.memory_space<vmem>>, vector<16x716xbf16>
    %cst_85 = arith.constant dense<0.000000e+00> : vector<32x716xf32>
    %89 = tpu.matmul %87, %88, %cst_85 {dimension_numbers = #tpu.dot_dimension_numbers<[1], [0], [0], [1], [0, 0, 1, 1], [], []>} : vector<32x16xbf16>, vector<16x716xbf16>, vector<32x716xf32> -> vector<32x716xf32>
    %90 = arith.addf %85, %89 : vector<32x716xf32>
    %c5_86 = arith.constant 5 : index
    %c0_87 = arith.constant 0 : index
    %c0_88 = arith.constant 0 : index
    %91 = vector.load %arg4[%c5_86, %c0_87, %c0_88] : memref<9x32x16xbf16, #tpu.memory_space<vmem>>, vector<1x32x16xbf16>
    %92 = vector.shape_cast %91 : vector<1x32x16xbf16> to vector<32x16xbf16>
    %c0_89 = arith.constant 0 : index
    %c22_90 = arith.constant 22 : index
    %93 = vector.load %arg11[%c0_89, %c22_90] : memref<16x758xbf16, #tpu.memory_space<vmem>>, vector<16x716xbf16>
    %cst_91 = arith.constant dense<0.000000e+00> : vector<32x716xf32>
    %94 = tpu.matmul %92, %93, %cst_91 {dimension_numbers = #tpu.dot_dimension_numbers<[1], [0], [0], [1], [0, 0, 1, 1], [], []>} : vector<32x16xbf16>, vector<16x716xbf16>, vector<32x716xf32> -> vector<32x716xf32>
    %95 = arith.addf %90, %94 : vector<32x716xf32>
    %c6_92 = arith.constant 6 : index
    %c0_93 = arith.constant 0 : index
    %c0_94 = arith.constant 0 : index
    %96 = vector.load %arg4[%c6_92, %c0_93, %c0_94] : memref<9x32x16xbf16, #tpu.memory_space<vmem>>, vector<1x32x16xbf16>
    %97 = vector.shape_cast %96 : vector<1x32x16xbf16> to vector<32x16xbf16>
    %c0_95 = arith.constant 0 : index
    %c40_96 = arith.constant 40 : index
    %98 = vector.load %arg11[%c0_95, %c40_96] : memref<16x758xbf16, #tpu.memory_space<vmem>>, vector<16x716xbf16>
    %cst_97 = arith.constant dense<0.000000e+00> : vector<32x716xf32>
    %99 = tpu.matmul %97, %98, %cst_97 {dimension_numbers = #tpu.dot_dimension_numbers<[1], [0], [0], [1], [0, 0, 1, 1], [], []>} : vector<32x16xbf16>, vector<16x716xbf16>, vector<32x716xf32> -> vector<32x716xf32>
    %100 = arith.addf %95, %99 : vector<32x716xf32>
    %c7_98 = arith.constant 7 : index
    %c0_99 = arith.constant 0 : index
    %c0_100 = arith.constant 0 : index
    %101 = vector.load %arg4[%c7_98, %c0_99, %c0_100] : memref<9x32x16xbf16, #tpu.memory_space<vmem>>, vector<1x32x16xbf16>
    %102 = vector.shape_cast %101 : vector<1x32x16xbf16> to vector<32x16xbf16>
    %c0_101 = arith.constant 0 : index
    %c41_102 = arith.constant 41 : index
    %103 = vector.load %arg11[%c0_101, %c41_102] : memref<16x758xbf16, #tpu.memory_space<vmem>>, vector<16x716xbf16>
    %cst_103 = arith.constant dense<0.000000e+00> : vector<32x716xf32>
    %104 = tpu.matmul %102, %103, %cst_103 {dimension_numbers = #tpu.dot_dimension_numbers<[1], [0], [0], [1], [0, 0, 1, 1], [], []>} : vector<32x16xbf16>, vector<16x716xbf16>, vector<32x716xf32> -> vector<32x716xf32>
    %105 = arith.addf %100, %104 : vector<32x716xf32>
    %c8_104 = arith.constant 8 : index
    %c0_105 = arith.constant 0 : index
    %c0_106 = arith.constant 0 : index
    %106 = vector.load %arg4[%c8_104, %c0_105, %c0_106] : memref<9x32x16xbf16, #tpu.memory_space<vmem>>, vector<1x32x16xbf16>
    %107 = vector.shape_cast %106 : vector<1x32x16xbf16> to vector<32x16xbf16>
    %c0_107 = arith.constant 0 : index
    %c42_108 = arith.constant 42 : index
    %108 = vector.load %arg11[%c0_107, %c42_108] : memref<16x758xbf16, #tpu.memory_space<vmem>>, vector<16x716xbf16>
    %cst_109 = arith.constant dense<0.000000e+00> : vector<32x716xf32>
    %109 = tpu.matmul %107, %108, %cst_109 {dimension_numbers = #tpu.dot_dimension_numbers<[1], [0], [0], [1], [0, 0, 1, 1], [], []>} : vector<32x16xbf16>, vector<16x716xbf16>, vector<32x716xf32> -> vector<32x716xf32>
    %110 = arith.addf %105, %109 : vector<32x716xf32>
    %c0_110 = arith.constant 0 : index
    %c0_111 = arith.constant 0 : index
    %111 = vector.load %arg5[%c0_110, %c0_111] : memref<32x1xf32, #tpu.memory_space<vmem>>, vector<32x1xf32>
    %112 = vector.broadcast %111 : vector<32x1xf32> to vector<32x716xf32>
    %113 = arith.addf %110, %112 : vector<32x716xf32>
    %cst_112 = arith.constant 0.000000e+00 : f32
    %114 = vector.broadcast %cst_112 : f32 to vector<32x716xf32>
    %115 = arith.maximumf %113, %114 : vector<32x716xf32>
    %c0_113 = arith.constant 0 : index
    %c0_114 = arith.constant 0 : index
    %116 = vector.load %arg9[%c0_113, %c0_114] : memref<716x2xf32, #tpu.memory_space<vmem>>, vector<716x2xf32>
    %cst_115 = arith.constant dense<0.000000e+00> : vector<32x2xf32>
    %117 = tpu.matmul %115, %116, %cst_115 {dimension_numbers = #tpu.dot_dimension_numbers<[1], [0], [0], [1], [0, 0, 1, 1], [], []>} : vector<32x716xf32>, vector<716x2xf32>, vector<32x2xf32> -> vector<32x2xf32>
    %c0_116 = arith.constant 0 : index
    %c0_117 = arith.constant 0 : index
    %118 = vector.load %arg6[%c0_116, %c0_117] : memref<10x32xf32, #tpu.memory_space<vmem>>, vector<10x32xf32>
    %cst_118 = arith.constant dense<0.000000e+00> : vector<10x2xf32>
    %119 = tpu.matmul %118, %117, %cst_118 {dimension_numbers = #tpu.dot_dimension_numbers<[1], [0], [0], [1], [0, 0, 1, 1], [], []>} : vector<10x32xf32>, vector<32x2xf32>, vector<10x2xf32> -> vector<10x2xf32>
    %c0_119 = arith.constant 0 : index
    %c0_120 = arith.constant 0 : index
    %120 = vector.load %arg7[%c0_119, %c0_120] : memref<10x1xf32, #tpu.memory_space<vmem>>, vector<10x1xf32>
    %121 = vector.broadcast %120 : vector<10x1xf32> to vector<10x2xf32>
    %122 = arith.addf %119, %121 : vector<10x2xf32>
    %123 = vector.shape_cast %122 : vector<10x2xf32> to vector<1x10x2xf32>
    %c0_121 = arith.constant 0 : index
    %c0_122 = arith.constant 0 : index
    %c0_123 = arith.constant 0 : index
    %124 = vector.load %arg10[%c0_121, %c0_122, %c0_123] : memref<1x10x2xf32, #tpu.memory_space<vmem>>, vector<1x10x2xf32>
    tpu.vector_store %arg10[%c0_121, %c0_122, %c0_123], %123 {strides = array<i32>} : memref<1x10x2xf32, #tpu.memory_space<vmem>>, vector<1x10x2xf32>,
    return
  }
  func.func @transform_0(%arg0: i32) -> (i32, i32, i32) {
    %c0_i32 = arith.constant 0 : i32
    %c0_i32_0 = arith.constant 0 : i32
    %c0_i32_1 = arith.constant 0 : i32
    return %arg0, %c0_i32, %c0_i32_0 : i32, i32, i32
  }
  func.func @transform_1(%arg0: i32) -> (i32, i32, i32) {
    %c0_i32 = arith.constant 0 : i32
    %c0_i32_0 = arith.constant 0 : i32
    %c0_i32_1 = arith.constant 0 : i32
    %c0_i32_2 = arith.constant 0 : i32
    return %c0_i32, %c0_i32_0, %c0_i32_1 : i32, i32, i32
  }
  func.func @transform_2(%arg0: i32) -> (i32, i32) {
    %c0_i32 = arith.constant 0 : i32
    %c0_i32_0 = arith.constant 0 : i32
    %c0_i32_1 = arith.constant 0 : i32
    return %c0_i32, %c0_i32_0 : i32, i32
  }
  func.func @transform_3(%arg0: i32) -> (i32, i32, i32) {
    %c0_i32 = arith.constant 0 : i32
    %c0_i32_0 = arith.constant 0 : i32
    %c0_i32_1 = arith.constant 0 : i32
    %c0_i32_2 = arith.constant 0 : i32
    return %c0_i32, %c0_i32_0, %c0_i32_1 : i32, i32, i32
  }
  func.func @transform_4(%arg0: i32) -> (i32, i32) {
    %c0_i32 = arith.constant 0 : i32
    %c0_i32_0 = arith.constant 0 : i32
    %c0_i32_1 = arith.constant 0 : i32
    return %c0_i32, %c0_i32_0 : i32, i32
  }
  func.func @transform_5(%arg0: i32) -> (i32, i32) {
    %c0_i32 = arith.constant 0 : i32
    %c0_i32_0 = arith.constant 0 : i32
    %c0_i32_1 = arith.constant 0 : i32
    return %c0_i32, %c0_i32_0 : i32, i32
  }
  func.func @transform_6(%arg0: i32) -> (i32, i32) {
    %c0_i32 = arith.constant 0 : i32
    %c0_i32_0 = arith.constant 0 : i32
    %c0_i32_1 = arith.constant 0 : i32
    return %c0_i32, %c0_i32_0 : i32, i32
  }
  func.func @transform_7(%arg0: i32) -> (i32, i32) {
    %c0_i32 = arith.constant 0 : i32
    %c0_i32_0 = arith.constant 0 : i32
    %c0_i32_1 = arith.constant 0 : i32
    return %c0_i32, %c0_i32_0 : i32, i32
  }
  func.func @transform_8(%arg0: i32) -> (i32, i32) {
    %c0_i32 = arith.constant 0 : i32
    %c0_i32_0 = arith.constant 0 : i32
    %c0_i32_1 = arith.constant 0 : i32
    return %c0_i32, %c0_i32_0 : i32, i32
  }
  func.func @transform_9(%arg0: i32) -> (i32, i32, i32) {
    %c0_i32 = arith.constant 0 : i32
    %c0_i32_0 = arith.constant 0 : i32
    %c0_i32_1 = arith.constant 0 : i32
    return %arg0, %c0_i32, %c0_i32_0 : i32, i32, i32
  }
}

</mosaic_0001>

<llo_original>
// kernel: baseline_classifier_forward.1
$region0: #{baseline_classifier_forward.1}
  #allocation0 [shape = 'u32[]', space=smem, size = 0x4, offset = 0x4, fixed_abs, tag = 'smem constant byte address 0x4 - core index']
  #allocation1 [shape = 'u32[144,128]{1,0:T(1,128)}', space=vmem, size = 0x12000, scoped, tag = 'internal scratch']
  #allocation2 [shape = 'bf16[16,758]{1,0:T(16,128)(2,1)}', space=vmem, size = 0x6000, scoped, tag = 'scratch operand']
  %s0 = inlined_call_operand.vmem [shape: bf16[2,4,800], index: 0, kind: input, shape index: {}]
  %s1 = inlined_call_operand.vmem [shape: bf16[9,16,4], index: 1, kind: input, shape index: {}]
  %s2 = inlined_call_operand.vmem [shape: f32[16,1], index: 2, kind: input, shape index: {}]
  %s3 = inlined_call_operand.vmem [shape: bf16[9,32,16], index: 3, kind: input, shape index: {}]
  %s4 = inlined_call_operand.vmem [shape: f32[32,1], index: 4, kind: input, shape index: {}]
  %s5 = inlined_call_operand.vmem [shape: f32[10,32], index: 5, kind: input, shape index: {}]
  %s6 = inlined_call_operand.vmem [shape: f32[10,1], index: 6, kind: input, shape index: {}]
  %s7 = inlined_call_operand.vmem [shape: f32[1,758], index: 7, kind: input, shape index: {}]
  %s8 = inlined_call_operand.vmem [shape: f32[716,2], index: 8, kind: input, shape index: {}]
  %s9 = inlined_call_operand.vmem [shape: f32[2,10,2], index: 9, kind: output, shape index: {}]
  %s10 = sld [smem:[#allocation0]]
  $region69: #{baseline_classifier_forward.1} parent=0
    _
  %s12 = ssub.s32 1, %s10
  %s13 = scalar_select 0, %s12, %s10
  loop: start=0, step=1, limit=4
  $region2: #{baseline_classifier_forward.1} parent=0 // loop_pre_header
    _
  $region3: #{baseline_classifier_forward.1} parent=0 // loop_header
    %s15 = sphi 0, %s19
    %p16 = scmp.ge.s32.totalorder %s15, 4
    %s25 = sphi 0, %s27
    %s28 = sphi 0, %s25
    %s29 = sphi 0, %s28
    %s45 = sphi 0, %s29
    %s49 = sphi 0, %s49
    %s51 = sphi 0, %s49
    %s52 = sphi 0, %s51
    %s66 = sphi 0, %s52
    %s70 = sphi 0, %s70
    %s72 = sphi 0, %s70
    %s73 = sphi 0, %s72
    %s87 = sphi 0, %s73
    %s91 = sphi 0, %s91
    %s93 = sphi 0, %s91
    %s94 = sphi 0, %s93
    %s108 = sphi 0, %s94
    %s112 = sphi 0, %s112
    %s114 = sphi 0, %s112
    %s115 = sphi 0, %s114
    %s129 = sphi 0, %s115
    %s133 = sphi 0, %s133
    %s135 = sphi 0, %s133
    %s136 = sphi 0, %s135
    %s150 = sphi 0, %s136
    %s154 = sphi 0, %s154
    %s156 = sphi 0, %s154
    %s157 = sphi 0, %s156
    %s171 = sphi 0, %s157
    %s175 = sphi 0, %s175
    %s177 = sphi 0, %s175
    %s178 = sphi 0, %s177
    %s192 = sphi 0, %s178
    %s196 = sphi 0, %s196
    %s198 = sphi 0, %s196
    %s199 = sphi 0, %s198
    %s213 = sphi 0, %s199
    %s219 = sphi 0, %s221
    %s222 = sphi 0, %s219
    %s223 = sphi 0, %s222
    %s239 = sphi 0, %s223
  $region4: #{baseline_classifier_forward.1} parent=0 // loop_header_branch
    %18 = sbr.rel (%p16) target = $region8
  $region5: #{baseline_classifier_forward.1} parent=0 // loop_body
    %s20 = ssub.s32 %s15, 1
    %s21 = ssub.s32 %s15, 2
    %s22 = sadd.s32 %s15, 1
    %s23 = ssub.s32 %s15, %s22
    %p24 = scmp.eq.s32.totalorder %s23, 0
    %s26 = sadd.s32 %s25, 1
    %s27 = scalar_select %p24, %s25, %s26
    %p30 = pneg %p24
    %p31 = scmp.eq.s32.totalorder %s15, 1
    %p32 = por %p30, %p31
    %p33 = scmp.ne.s32.totalorder %s25, %s28
    %p34 = scmp.eq.s32.totalorder %s15, 0
    %p35 = por %p33, %p34
    %p36 = scmp.ne.s32.totalorder %s25, %s28
    %p37 = scmp.eq.s32.totalorder %s20, 1
    %p38 = por %p36, %p37
    %p39 = scmp.ne.s32.totalorder %s28, %s29
    %p40 = scmp.eq.s32.totalorder %s20, 0
    %p41 = por %p39, %p40
    %p42 = scmp.ne.s32.totalorder %s28, %s29
    %p43 = scmp.eq.s32.totalorder %s21, 1
    %p44 = por %p42, %p43
    %p46 = scmp.ne.s32.totalorder %s29, %s45
    %p47 = scmp.eq.s32.totalorder %s21, 0
    %p48 = por %p46, %p47
    %s50 = sadd.s32 %s49, 1
    %p53 = scmp.eq.s32.totalorder %s15, 1
    %p54 = scmp.ne.s32.totalorder %s49, %s51
    %p55 = scmp.eq.s32.totalorder %s15, 0
    %p56 = por %p54, %p55
    %p57 = scmp.ne.s32.totalorder %s49, %s51
    %p58 = scmp.eq.s32.totalorder %s20, 1
    %p59 = por %p57, %p58
    %p60 = scmp.ne.s32.totalorder %s51, %s52
    %p61 = scmp.eq.s32.totalorder %s20, 0
    %p62 = por %p60, %p61
    %p63 = scmp.ne.s32.totalorder %s51, %s52
    %p64 = scmp.eq.s32.totalorder %s21, 1
    %p65 = por %p63, %p64
    %p67 = scmp.ne.s32.totalorder %s52, %s66
    %p68 = scmp.eq.s32.totalorder %s21, 0
    %p69 = por %p67, %p68
    %s71 = sadd.s32 %s70, 1
    %p74 = scmp.eq.s32.totalorder %s15, 1
    %p75 = scmp.ne.s32.totalorder %s70, %s72
    %p76 = scmp.eq.s32.totalorder %s15, 0
    %p77 = por %p75, %p76
    %p78 = scmp.ne.s32.totalorder %s70, %s72
    %p79 = scmp.eq.s32.totalorder %s20, 1
    %p80 = por %p78, %p79
    %p81 = scmp.ne.s32.totalorder %s72, %s73
    %p82 = scmp.eq.s32.totalorder %s20, 0
    %p83 = por %p81, %p82
    %p84 = scmp.ne.s32.totalorder %s72, %s73
    %p85 = scmp.eq.s32.totalorder %s21, 1
    %p86 = por %p84, %p85
    %p88 = scmp.ne.s32.totalorder %s73, %s87
    %p89 = scmp.eq.s32.totalorder %s21, 0
    %p90 = por %p88, %p89
    %s92 = sadd.s32 %s91, 1
    %p95 = scmp.eq.s32.totalorder %s15, 1
    %p96 = scmp.ne.s32.totalorder %s91, %s93
    %p97 = scmp.eq.s32.totalorder %s15, 0
    %p98 = por %p96, %p97
    %p99 = scmp.ne.s32.totalorder %s91, %s93
    %p100 = scmp.eq.s32.totalorder %s20, 1
    %p101 = por %p99, %p100
    %p102 = scmp.ne.s32.totalorder %s93, %s94
    %p103 = scmp.eq.s32.totalorder %s20, 0
    %p104 = por %p102, %p103
    %p105 = scmp.ne.s32.totalorder %s93, %s94
    %p106 = scmp.eq.s32.totalorder %s21, 1
    %p107 = por %p105, %p106
    %p109 = scmp.ne.s32.totalorder %s94, %s108
    %p110 = scmp.eq.s32.totalorder %s21, 0
    %p111 = por %p109, %p110
    %s113 = sadd.s32 %s112, 1
    %p116 = scmp.eq.s32.totalorder %s15, 1
    %p117 = scmp.ne.s32.totalorder %s112, %s114
    %p118 = scmp.eq.s32.totalorder %s15, 0
    %p119 = por %p117, %p118
    %p120 = scmp.ne.s32.totalorder %s112, %s114
    %p121 = scmp.eq.s32.totalorder %s20, 1
    %p122 = por %p120, %p121
    %p123 = scmp.ne.s32.totalorder %s114, %s115
    %p124 = scmp.eq.s32.totalorder %s20, 0
    %p125 = por %p123, %p124
    %p126 = scmp.ne.s32.totalorder %s114, %s115
    %p127 = scmp.eq.s32.totalorder %s21, 1
    %p128 = por %p126, %p127
    %p130 = scmp.ne.s32.totalorder %s115, %s129
    %p131 = scmp.eq.s32.totalorder %s21, 0
    %p132 = por %p130, %p131
    %s134 = sadd.s32 %s133, 1
    %p137 = scmp.eq.s32.totalorder %s15, 1
    %p138 = scmp.ne.s32.totalorder %s133, %s135
    %p139 = scmp.eq.s32.totalorder %s15, 0
    %p140 = por %p138, %p139
    %p141 = scmp.ne.s32.totalorder %s133, %s135
    %p142 = scmp.eq.s32.totalorder %s20, 1
    %p143 = por %p141, %p142
    %p144 = scmp.ne.s32.totalorder %s135, %s136
    %p145 = scmp.eq.s32.totalorder %s20, 0
    %p146 = por %p144, %p145
    %p147 = scmp.ne.s32.totalorder %s135, %s136
    %p148 = scmp.eq.s32.totalorder %s21, 1
    %p149 = por %p147, %p148
    %p151 = scmp.ne.s32.totalorder %s136, %s150
    %p152 = scmp.eq.s32.totalorder %s21, 0
    %p153 = por %p151, %p152
    %s155 = sadd.s32 %s154, 1
    %p158 = scmp.eq.s32.totalorder %s15, 1
    %p159 = scmp.ne.s32.totalorder %s154, %s156
    %p160 = scmp.eq.s32.totalorder %s15, 0
    %p161 = por %p159, %p160
    %p162 = scmp.ne.s32.totalorder %s154, %s156
    %p163 = scmp.eq.s32.totalorder %s20, 1
    %p164 = por %p162, %p163
    %p165 = scmp.ne.s32.totalorder %s156, %s157
    %p166 = scmp.eq.s32.totalorder %s20, 0
    %p167 = por %p165, %p166
    %p168 = scmp.ne.s32.totalorder %s156, %s157
    %p169 = scmp.eq.s32.totalorder %s21, 1
    %p170 = por %p168, %p169
    %p172 = scmp.ne.s32.totalorder %s157, %s171
    %p173 = scmp.eq.s32.totalorder %s21, 0
    %p174 = por %p172, %p173
    %s176 = sadd.s32 %s175, 1
    %p179 = scmp.eq.s32.totalorder %s15, 1
    %p180 = scmp.ne.s32.totalorder %s175, %s177
    %p181 = scmp.eq.s32.totalorder %s15, 0
    %p182 = por %p180, %p181
    %p183 = scmp.ne.s32.totalorder %s175, %s177
    %p184 = scmp.eq.s32.totalorder %s20, 1
    %p185 = por %p183, %p184
    %p186 = scmp.ne.s32.totalorder %s177, %s178
    %p187 = scmp.eq.s32.totalorder %s20, 0
    %p188 = por %p186, %p187
    %p189 = scmp.ne.s32.totalorder %s177, %s178
    %p190 = scmp.eq.s32.totalorder %s21, 1
    %p191 = por %p189, %p190
    %p193 = scmp.ne.s32.totalorder %s178, %s192
    %p194 = scmp.eq.s32.totalorder %s21, 0
    %p195 = por %p193, %p194
    %s197 = sadd.s32 %s196, 1
    %p200 = scmp.eq.s32.totalorder %s15, 1
    %p201 = scmp.ne.s32.totalorder %s196, %s198
    %p202 = scmp.eq.s32.totalorder %s15, 0
    %p203 = por %p201, %p202
    %p204 = scmp.ne.s32.totalorder %s196, %s198
    %p205 = scmp.eq.s32.totalorder %s20, 1
    %p206 = por %p204, %p205
    %p207 = scmp.ne.s32.totalorder %s198, %s199
    %p208 = scmp.eq.s32.totalorder %s20, 0
    %p209 = por %p207, %p208
    %p210 = scmp.ne.s32.totalorder %s198, %s199
    %p211 = scmp.eq.s32.totalorder %s21, 1
    %p212 = por %p210, %p211
    %p214 = scmp.ne.s32.totalorder %s199, %s213
    %p215 = scmp.eq.s32.totalorder %s21, 0
    %p216 = por %p214, %p215
    %s217 = ssub.s32 %s15, %s22
    %p218 = scmp.eq.s32.totalorder %s217, 0
    %s220 = sadd.s32 %s219, 1
    %s221 = scalar_select %p218, %s219, %s220
    %p224 = pneg %p218
    %p225 = scmp.eq.s32.totalorder %s15, 1
    %p226 = por %p224, %p225
    %p227 = scmp.ne.s32.totalorder %s219, %s222
    %p228 = scmp.eq.s32.totalorder %s15, 0
    %p229 = por %p227, %p228
    %p230 = scmp.ne.s32.totalorder %s219, %s222
    %p231 = scmp.eq.s32.totalorder %s20, 1
    %p232 = por %p230, %p231
    %p233 = scmp.ne.s32.totalorder %s222, %s223
    %p234 = scmp.eq.s32.totalorder %s20, 0
    %p235 = por %p233, %p234
    %p236 = scmp.ne.s32.totalorder %s222, %s223
    %p237 = scmp.eq.s32.totalorder %s21, 1
    %p238 = por %p236, %p237
    %p240 = scmp.ne.s32.totalorder %s223, %s239
    %p241 = scmp.eq.s32.totalorder %s21, 0
    %p242 = por %p240, %p241
    %p243 = scmp.le.s32.totalorder 1, %s15
    %p244 = scmp.lt.s32.totalorder %s15, 3
    %p245 = pnand %p243, %p244
    %p246 = pneg %p245
    // Predicated region
    $region9: #{baseline_classifier_forward.1} parent=5 // pred_check
      _
    $region10: #{baseline_classifier_forward.1} parent=5 // pred_check_branch
      %248 = sbr.rel (%p245) target = $region12
    $region11: #{baseline_classifier_forward.1} parent=5 // pred_region
      %s249 = ssub.s32 %s15, 1
      // Predicated region
      $region13: #{baseline_classifier_forward.1} parent=11 // pred_check
        %p250 = pneg %p62
      $region14: #{baseline_classifier_forward.1} parent=11 // pred_check_branch
        %252 = sbr.rel (%p250) target = $region16
      $region15: #{baseline_classifier_forward.1} parent=11 // pred_region
        _
      $region16: #{baseline_classifier_forward.1} parent=11 // pred_fallthru
        _
      // Predicated region
      $region17: #{baseline_classifier_forward.1} parent=11 // pred_check
        %p253 = pneg %p83
      $region18: #{baseline_classifier_forward.1} parent=11 // pred_check_branch
        %255 = sbr.rel (%p253) target = $region20
      $region19: #{baseline_classifier_forward.1} parent=11 // pred_region
        _
      $region20: #{baseline_classifier_forward.1} parent=11 // pred_fallthru
        _
      // Predicated region
      $region21: #{baseline_classifier_forward.1} parent=11 // pred_check
        %p256 = pneg %p104
      $region22: #{baseline_classifier_forward.1} parent=11 // pred_check_branch
        %258 = sbr.rel (%p256) target = $region24
      $region23: #{baseline_classifier_forward.1} parent=11 // pred_region
        _
      $region24: #{baseline_classifier_forward.1} parent=11 // pred_fallthru
        _
      // Predicated region
      $region25: #{baseline_classifier_forward.1} parent=11 // pred_check
        %p259 = pneg %p125
      $region26: #{baseline_classifier_forward.1} parent=11 // pred_check_branch
        %261 = sbr.rel (%p259) target = $region28
      $region27: #{baseline_classifier_forward.1} parent=11 // pred_region
        _
      $region28: #{baseline_classifier_forward.1} parent=11 // pred_fallthru
        _
      // Predicated region
      $region29: #{baseline_classifier_forward.1} parent=11 // pred_check
        %p262 = pneg %p146
      $region30: #{baseline_classifier_forward.1} parent=11 // pred_check_branch
        %264 = sbr.rel (%p262) target = $region32
      $region31: #{baseline_classifier_forward.1} parent=11 // pred_region
        _
      $region32: #{baseline_classifier_forward.1} parent=11 // pred_fallthru
        _
      // Predicated region
      $region33: #{baseline_classifier_forward.1} parent=11 // pred_check
        %p265 = pneg %p167
      $region34: #{baseline_classifier_forward.1} parent=11 // pred_check_branch
        %267 = sbr.rel (%p265) target = $region36
      $region35: #{baseline_classifier_forward.1} parent=11 // pred_region
        _
      $region36: #{baseline_classifier_forward.1} parent=11 // pred_fallthru
        _
      // Predicated region
      $region37: #{baseline_classifier_forward.1} parent=11 // pred_check
        %p268 = pneg %p188
      $region38: #{baseline_classifier_forward.1} parent=11 // pred_check_branch
        %270 = sbr.rel (%p268) target = $region40
      $region39: #{baseline_classifier_forward.1} parent=11 // pred_region
        _
      $region40: #{baseline_classifier_forward.1} parent=11 // pred_fallthru
        _
      // Predicated region
      $region41: #{baseline_classifier_forward.1} parent=11 // pred_check
        %p271 = pneg %p209
      $region42: #{baseline_classifier_forward.1} parent=11 // pred_check_branch
        %273 = sbr.rel (%p271) target = $region44
      $region43: #{baseline_classifier_forward.1} parent=11 // pred_region
        _
      $region44: #{baseline_classifier_forward.1} parent=11 // pred_fallthru
        _
    $region12: #{baseline_classifier_forward.1} parent=5 // pred_fallthru
      _
    %p274 = scmp.lt.s32.totalorder %s15, 2
    // Predicated region
    $region45: #{baseline_classifier_forward.1} parent=5 // pred_check
      %p275 = pneg %p274
    $region46: #{baseline_classifier_forward.1} parent=5 // pred_check_branch
      %277 = sbr.rel (%p275) target = $region48
    $region47: #{baseline_classifier_forward.1} parent=5 // pred_region
      // Predicated region
      $region49: #{baseline_classifier_forward.1} parent=47 // pred_check
        %p278 = pneg %p35
      $region50: #{baseline_classifier_forward.1} parent=47 // pred_check_branch
        %280 = sbr.rel (%p278) target = $region52
      $region51: #{baseline_classifier_forward.1} parent=47 // pred_region
        %p281 = scmp.lt.s32.totalorder %s15, 1
        %s282 = scalar_select %p281, %s15, 1
        %s283 = smul.addr %s282, 7
        %s284 = smul.addr %s283, 2
        %s285 = scalar_lea.vmem %s0, %s284
      $region52: #{baseline_classifier_forward.1} parent=47 // pred_fallthru
        _
    $region48: #{baseline_classifier_forward.1} parent=5 // pred_fallthru
      _
    %p286 = scmp.le.s32.totalorder 1, %s15
    %p287 = scmp.lt.s32.totalorder %s15, 3
    %p288 = pnand %p286, %p287
    %p289 = pneg %p288
    // Predicated region
    $region53: #{baseline_classifier_forward.1} parent=5 // pred_check
      _
    $region54: #{baseline_classifier_forward.1} parent=5 // pred_check_branch
      %291 = sbr.rel (%p288) target = $region56
    $region55: #{baseline_classifier_forward.1} parent=5 // pred_region
      %s292 = ssub.s32 %s15, 1
      %p293 = scmp.lt.s32.totalorder %s20, 1
      %s294 = scalar_select %p293, %s20, 1
      %s295 = smul.addr %s294, 7
      %s296 = smul.addr %s295, 2
      %s297 = scalar_lea.vmem %s0, %s296
      %p298 = pneg %p41
      %p299 = pneg %p38
      %p300 = pneg %p62
      %p301 = pneg %p59
      %p302 = pneg %p83
      %p303 = pneg %p80
      %p304 = pneg %p104
      %p305 = pneg %p101
      %p306 = pneg %p125
      %p307 = pneg %p122
      %p308 = pneg %p146
      %p309 = pneg %p143
      %p310 = pneg %p167
      %p311 = pneg %p164
      %p312 = pneg %p188
      %p313 = pneg %p185
      %p314 = pneg %p209
      %p315 = pneg %p206
      %p316 = pneg %p235
      %p317 = pneg %p232
      %p318 = scmp.lt.s32.totalorder %s20, 1
      %s319 = scalar_select %p318, %s20, 1
      %s320 = smul.addr %s319, 2
      %s321 = smul.addr %s320, 8
      %s322 = scalar_lea.vmem %s9, %s321
      %p323 = scmp.lt.s32.totalorder %s20, 1
      %s324 = scalar_select %p323, %s20, 1
      %s325 = smul.addr %s324, 7
      %s326 = smul.addr %s325, 2
      %s327 = scalar_lea.vmem %s0, %s326
      %p328 = scmp.lt.s32.totalorder %s20, 1
      %s329 = scalar_select %p328, %s20, 1
      %s330 = smul.addr %s329, 2
      %s331 = smul.addr %s330, 8
      %s332 = scalar_lea.vmem %s9, %s331
      %v334 = vld [vmem:[%s1] sm:$0xf]
      %v335 = vld [vmem:[%s1 + $0x4] sm:$0xf]
      %v336 = vld [vmem:[%s327] sm:$0xff]
      %v337 = vld [vmem:[%s327 + $0x8] sm:$0xf]
      %s338 = scalar_lea.vmem %s1, 8
      %v339 = vld [vmem:[%s338] sm:$0xf]
      %v340 = vld [vmem:[%s338 + $0x4] sm:$0xf]
      %v343 = vunpack.c.l.b16 %v339
      %v344 = vunpack.c.l.b16 %v340
      %v345 = vpack.c.b16 %v344, %v343
      %v348 = vcombine.high %v336, %v336
      %v350 = vunpack.c.l.s4 1983009808
      %v351 = vunpack.c.0.s8 %v350
      %v352 = vlaneseq
      %v353 = vshrl.u32 %v352, 7
      %v354 = vsub.s32 %v351, %v353
      %v355 = vrot.slane %v336, %v354
      %v357 = vunpack.c.l.s4 1983009808
      %v358 = vunpack.c.0.s8 %v357
      %v359 = vlaneseq
      %v360 = vshrl.u32 %v359, 7
      %v361 = vsub.s32 %v358, %v360
      %v362 = vrot.slane %v348, %v361
      %v363 = vcombine.high %v355, %v355
      %v364 = vcombine.high %v362, %v362
      %v366 = vunpack.c.l.s4 1983009808
      %v367 = vunpack.c.0.s8 %v366
      %v368 = vlaneseq
      %v369 = vshrl.u32 %v368, 7
      %v370 = vsub.s32 %v367, %v369
      %v371 = vrot.slane %v337, %v370
      %v372 = vcombine.high %v371, %v371
      %373 = vrot.lane.b32.xlu0 %v355, 127
      %v374 = vpop.permute.xlu0 %373
      %375 = vrot.lane.b32.xlu0 %v363, 127
      %v376 = vpop.permute.xlu0 %375
      %377 = vrot.lane.b32.xlu0 %v362, 127
      %v378 = vpop.permute.xlu0 %377
      %379 = vrot.lane.b32.xlu0 %v364, 127
      %v380 = vpop.permute.xlu0 %379
      %381 = vrot.lane.b32.xlu0 %v371, 127
      %v382 = vpop.permute.xlu0 %381
      %383 = vrot.lane.b32.xlu0 %v372, 127
      %v384 = vpop.permute.xlu0 %383
      %vm385 = vcmask 1039360
      %v386 = vsel %vm385, %v374, %v376
      %v387 = vsel %vm385, %v376, %v378
      %v388 = vsel %vm385, %v378, %v380
      %v389 = vsel %vm385, %v380, %v382
      %v390 = vsel %vm385, %v382, %v384
      %vm391 = vcmask 31744
      %v393 = vsel %vm391, %v345, 0
      %vm395 = vcmask 1041408
      %v397 = vsel %vm395, %v386, 0
      %v400 = vsel %vm395, %v387, 0
      %v403 = vsel %vm395, %v388, 0
      %v406 = vsel %vm395, %v389, 0
      %v409 = vsel %vm395, %v390, 0
      %v412 = vsel %vm395, %v384, 0
      %414 = vmatprep.subr.bf16.mxu0 %v400
      %415 = vmatpush1.bf16.msra.mxu0 %v397
      %416 = vmatprep.subr.bf16.mxu0 0
      %417 = vmatpush1.bf16.msra.mxu0 0
      %418 = vmatprep.subr.bf16.mxu0 0
      %419 = vmatpush1.bf16.msra.mxu0 0
      %420 = vmatprep.subr.bf16.mxu0 0
      %421 = vmatpush1.bf16.msra.mxu0 0
      %422 = vmatprep.subr.bf16.mxu0 0
      %423 = vmatpush1.bf16.msra.mxu0 0
      %424 = vmatprep.subr.bf16.mxu0 0
      %425 = vmatpush1.bf16.msra.mxu0 0
      %426 = vmatprep.subr.bf16.mxu0 0
      %427 = vmatpush1.bf16.msra.mxu0 0
      %428 = vmatprep.subr.bf16.mxu0 0
      %429 = vmatpush1.bf16.msra.mxu0 0
      %430 = vmatprep.subr.bf16.mxu0 0
      %431 = vmatpush1.bf16.msra.mxu0 0
      %432 = vmatprep.subr.bf16.mxu0 0
      %433 = vmatpush1.bf16.msra.mxu0 0
      %434 = vmatprep.subr.bf16.mxu0 0
      %435 = vmatpush1.bf16.msra.mxu0 0
      %436 = vmatprep.subr.bf16.mxu0 0
      %437 = vmatpush1.bf16.msra.mxu0 0
      %438 = vmatprep.subr.bf16.mxu0 0
      %439 = vmatpush1.bf16.msra.mxu0 0
      %440 = vmatprep.subr.bf16.mxu0 0
      %441 = vmatpush1.bf16.msra.mxu0 0
      %442 = vmatprep.subr.bf16.mxu0 0
      %443 = vmatpush1.bf16.msra.mxu0 0
      %444 = vmatprep.subr.bf16.mxu0 0
      %445 = vmatpush1.bf16.msra.mxu0 0
      %446 = vmatprep.mubr.bf16.mxu0 0
      %447 = vmatmul.mubr.bf16.gmra.mrb[0].mxu0 %v393
      %v448 = vpop.f32.mrb[0].mxu0
      %v449 = vadd.f32 0.0, %v448
      %v450 = vpop.f32.mrb[0].mxu0
      %v451 = vadd.f32 0.0, %v450
      %v452 = vpop.f32.mrb[0].mxu0
      %v453 = vadd.f32 0.0, %v452
      %v454 = vpop.f32.mrb[0].mxu0
      %v455 = vadd.f32 0.0, %v454
      %456 = vdwg.mxu0
      %457 = vmatprep.subr.bf16.mxu0 %v406
      %458 = vmatpush1.bf16.msra.mxu0 %v403
      %459 = vmatprep.subr.bf16.mxu0 0
      %460 = vmatpush1.bf16.msra.mxu0 0
      %461 = vmatprep.subr.bf16.mxu0 0
      %462 = vmatpush1.bf16.msra.mxu0 0
      %463 = vmatprep.subr.bf16.mxu0 0
      %464 = vmatpush1.bf16.msra.mxu0 0
      %465 = vmatprep.subr.bf16.mxu0 0
      %466 = vmatpush1.bf16.msra.mxu0 0
      %467 = vmatprep.subr.bf16.mxu0 0
      %468 = vmatpush1.bf16.msra.mxu0 0
      %469 = vmatprep.subr.bf16.mxu0 0
      %470 = vmatpush1.bf16.msra.mxu0 0
      %471 = vmatprep.subr.bf16.mxu0 0
      %472 = vmatpush1.bf16.msra.mxu0 0
      %473 = vmatprep.subr.bf16.mxu0 0
      %474 = vmatpush1.bf16.msra.mxu0 0
      %475 = vmatprep.subr.bf16.mxu0 0
      %476 = vmatpush1.bf16.msra.mxu0 0
      %477 = vmatprep.subr.bf16.mxu0 0
      %478 = vmatpush1.bf16.msra.mxu0 0
      %479 = vmatprep.subr.bf16.mxu0 0
      %480 = vmatpush1.bf16.msra.mxu0 0
      %481 = vmatprep.subr.bf16.mxu0 0
      %482 = vmatpush1.bf16.msra.mxu0 0
      %483 = vmatprep.subr.bf16.mxu0 0
      %484 = vmatpush1.bf16.msra.mxu0 0
      %485 = vmatprep.subr.bf16.mxu0 0
      %486 = vmatpush1.bf16.msra.mxu0 0
      %487 = vmatprep.subr.bf16.mxu0 0
      %488 = vmatpush1.bf16.msra.mxu0 0
      %489 = vmatprep.mubr.bf16.mxu0 0
      %490 = vmatmul.mubr.bf16.gmra.mrb[0].mxu0 %v393
      %v491 = vpop.f32.mrb[0].mxu0
      %v492 = vadd.f32 0.0, %v491
      %v493 = vpop.f32.mrb[0].mxu0
      %v494 = vadd.f32 0.0, %v493
      %v495 = vpop.f32.mrb[0].mxu0
      %v496 = vadd.f32 0.0, %v495
      %v497 = vpop.f32.mrb[0].mxu0
      %v498 = vadd.f32 0.0, %v497
      %499 = vdwg.mxu0
      %500 = vmatprep.subr.bf16.mxu0 %v412
      %501 = vmatpush1.bf16.msra.mxu0 %v409
      %502 = vmatprep.subr.bf16.mxu0 0
      %503 = vmatpush1.bf16.msra.mxu0 0
      %504 = vmatprep.subr.bf16.mxu0 0
      %505 = vmatpush1.bf16.msra.mxu0 0
      %506 = vmatprep.subr.bf16.mxu0 0
      %507 = vmatpush1.bf16.msra.mxu0 0
      %508 = vmatprep.subr.bf16.mxu0 0
      %509 = vmatpush1.bf16.msra.mxu0 0
      %510 = vmatprep.subr.bf16.mxu0 0
      %511 = vmatpush1.bf16.msra.mxu0 0
      %512 = vmatprep.subr.bf16.mxu0 0
      %513 = vmatpush1.bf16.msra.mxu0 0
      %514 = vmatprep.subr.bf16.mxu0 0
      %515 = vmatpush1.bf16.msra.mxu0 0
      %516 = vmatprep.subr.bf16.mxu0 0
      %517 = vmatpush1.bf16.msra.mxu0 0
      %518 = vmatprep.subr.bf16.mxu0 0
      %519 = vmatpush1.bf16.msra.mxu0 0
      %520 = vmatprep.subr.bf16.mxu0 0
      %521 = vmatpush1.bf16.msra.mxu0 0
      %522 = vmatprep.subr.bf16.mxu0 0
      %523 = vmatpush1.bf16.msra.mxu0 0
      %524 = vmatprep.subr.bf16.mxu0 0
      %525 = vmatpush1.bf16.msra.mxu0 0
      %526 = vmatprep.subr.bf16.mxu0 0
      %527 = vmatpush1.bf16.msra.mxu0 0
      %528 = vmatprep.subr.bf16.mxu0 0
      %529 = vmatpush1.bf16.msra.mxu0 0
      %530 = vmatprep.subr.bf16.mxu0 0
      %531 = vmatpush1.bf16.msra.mxu0 0
      %532 = vmatprep.mubr.bf16.mxu0 0
      %533 = vmatmul.mubr.bf16.gmra.mrb[0].mxu0 %v393
      %v534 = vpop.f32.mrb[0].mxu0
      %v535 = vadd.f32 0.0, %v534
      %v536 = vpop.f32.mrb[0].mxu0
      %v537 = vadd.f32 0.0, %v536
      %v538 = vpop.f32.mrb[0].mxu0
      %v539 = vadd.f32 0.0, %v538
      %v540 = vpop.f32.mrb[0].mxu0
      %v541 = vadd.f32 0.0, %v540
      %542 = vdwg.mxu0
      %v545 = vunpack.c.l.b16 %v334
      %v546 = vunpack.c.l.b16 %v335
      %v547 = vpack.c.b16 %v546, %v545
      %v549 = vsel %vm391, %v547, 0
      %v552 = vsel %vm395, %v355, 0
      %v555 = vsel %vm395, %v363, 0
      %v558 = vsel %vm395, %v362, 0
      %v561 = vsel %vm395, %v364, 0
      %v564 = vsel %vm395, %v371, 0
      %v567 = vsel %vm395, %v372, 0
      %569 = vmatprep.subr.bf16.mxu0 %v555
      %570 = vmatpush1.bf16.msra.mxu0 %v552
      %571 = vmatprep.subr.bf16.mxu0 0
      %572 = vmatpush1.bf16.msra.mxu0 0
      %573 = vmatprep.subr.bf16.mxu0 0
      %574 = vmatpush1.bf16.msra.mxu0 0
      %575 = vmatprep.subr.bf16.mxu0 0
      %576 = vmatpush1.bf16.msra.mxu0 0
      %577 = vmatprep.subr.bf16.mxu0 0
      %578 = vmatpush1.bf16.msra.mxu0 0
      %579 = vmatprep.subr.bf16.mxu0 0
      %580 = vmatpush1.bf16.msra.mxu0 0
      %581 = vmatprep.subr.bf16.mxu0 0
      %582 = vmatpush1.bf16.msra.mxu0 0
      %583 = vmatprep.subr.bf16.mxu0 0
      %584 = vmatpush1.bf16.msra.mxu0 0
      %585 = vmatprep.subr.bf16.mxu0 0
      %586 = vmatpush1.bf16.msra.mxu0 0
      %587 = vmatprep.subr.bf16.mxu0 0
      %588 = vmatpush1.bf16.msra.mxu0 0
      %589 = vmatprep.subr.bf16.mxu0 0
      %590 = vmatpush1.bf16.msra.mxu0 0
      %591 = vmatprep.subr.bf16.mxu0 0
      %592 = vmatpush1.bf16.msra.mxu0 0
      %593 = vmatprep.subr.bf16.mxu0 0
      %594 = vmatpush1.bf16.msra.mxu0 0
      %595 = vmatprep.subr.bf16.mxu0 0
      %596 = vmatpush1.bf16.msra.mxu0 0
      %597 = vmatprep.subr.bf16.mxu0 0
      %598 = vmatpush1.bf16.msra.mxu0 0
      %599 = vmatprep.subr.bf16.mxu0 0
      %600 = vmatpush1.bf16.msra.mxu0 0
      %601 = vmatprep.mubr.bf16.mxu0 0
      %602 = vmatmul.mubr.bf16.gmra.mrb[0].mxu0 %v549
      %v603 = vpop.f32.mrb[0].mxu0
      %v604 = vadd.f32 %v449, %v603
      %v605 = vpop.f32.mrb[0].mxu0
      %v606 = vadd.f32 %v451, %v605
      %v607 = vpop.f32.mrb[0].mxu0
      %v608 = vadd.f32 %v453, %v607
      %v609 = vpop.f32.mrb[0].mxu0
      %v610 = vadd.f32 %v455, %v609
      %611 = vdwg.mxu0
      %612 = vmatprep.subr.bf16.mxu0 %v561
      %613 = vmatpush1.bf16.msra.mxu0 %v558
      %614 = vmatprep.subr.bf16.mxu0 0
      %615 = vmatpush1.bf16.msra.mxu0 0
      %616 = vmatprep.subr.bf16.mxu0 0
      %617 = vmatpush1.bf16.msra.mxu0 0
      %618 = vmatprep.subr.bf16.mxu0 0
      %619 = vmatpush1.bf16.msra.mxu0 0
      %620 = vmatprep.subr.bf16.mxu0 0
      %621 = vmatpush1.bf16.msra.mxu0 0
      %622 = vmatprep.subr.bf16.mxu0 0
      %623 = vmatpush1.bf16.msra.mxu0 0
      %624 = vmatprep.subr.bf16.mxu0 0
      %625 = vmatpush1.bf16.msra.mxu0 0
      %626 = vmatprep.subr.bf16.mxu0 0
      %627 = vmatpush1.bf16.msra.mxu0 0
      %628 = vmatprep.subr.bf16.mxu0 0
      %629 = vmatpush1.bf16.msra.mxu0 0
      %630 = vmatprep.subr.bf16.mxu0 0
      %631 = vmatpush1.bf16.msra.mxu0 0
      %632 = vmatprep.subr.bf16.mxu0 0
      %633 = vmatpush1.bf16.msra.mxu0 0
      %634 = vmatprep.subr.bf16.mxu0 0
      %635 = vmatpush1.bf16.msra.mxu0 0
      %636 = vmatprep.subr.bf16.mxu0 0
      %637 = vmatpush1.bf16.msra.mxu0 0
      %638 = vmatprep.subr.bf16.mxu0 0
      %639 = vmatpush1.bf16.msra.mxu0 0
      %640 = vmatprep.subr.bf16.mxu0 0
      %641 = vmatpush1.bf16.msra.mxu0 0
      %642 = vmatprep.subr.bf16.mxu0 0
      %643 = vmatpush1.bf16.msra.mxu0 0
      %644 = vmatprep.mubr.bf16.mxu0 0
      %645 = vmatmul.mubr.bf16.gmra.mrb[0].mxu0 %v549
      %v646 = vpop.f32.mrb[0].mxu0
      %v647 = vadd.f32 %v492, %v646
      %v648 = vpop.f32.mrb[0].mxu0
      %v649 = vadd.f32 %v494, %v648
      %v650 = vpop.f32.mrb[0].mxu0
      %v651 = vadd.f32 %v496, %v650
      %v652 = vpop.f32.mrb[0].mxu0
      %v653 = vadd.f32 %v498, %v652
      %654 = vdwg.mxu0
      %655 = vmatprep.subr.bf16.mxu0 %v567
      %656 = vmatpush1.bf16.msra.mxu0 %v564
      %657 = vmatprep.subr.bf16.mxu0 0
      %658 = vmatpush1.bf16.msra.mxu0 0
      %659 = vmatprep.subr.bf16.mxu0 0
      %660 = vmatpush1.bf16.msra.mxu0 0
      %661 = vmatprep.subr.bf16.mxu0 0
      %662 = vmatpush1.bf16.msra.mxu0 0
      %663 = vmatprep.subr.bf16.mxu0 0
      %664 = vmatpush1.bf16.msra.mxu0 0
      %665 = vmatprep.subr.bf16.mxu0 0
      %666 = vmatpush1.bf16.msra.mxu0 0
      %667 = vmatprep.subr.bf16.mxu0 0
      %668 = vmatpush1.bf16.msra.mxu0 0
      %669 = vmatprep.subr.bf16.mxu0 0
      %670 = vmatpush1.bf16.msra.mxu0 0
      %671 = vmatprep.subr.bf16.mxu0 0
      %672 = vmatpush1.bf16.msra.mxu0 0
      %673 = vmatprep.subr.bf16.mxu0 0
      %674 = vmatpush1.bf16.msra.mxu0 0
      %675 = vmatprep.subr.bf16.mxu0 0
      %676 = vmatpush1.bf16.msra.mxu0 0
      %677 = vmatprep.subr.bf16.mxu0 0
      %678 = vmatpush1.bf16.msra.mxu0 0
      %679 = vmatprep.subr.bf16.mxu0 0
      %680 = vmatpush1.bf16.msra.mxu0 0
      %681 = vmatprep.subr.bf16.mxu0 0
      %682 = vmatpush1.bf16.msra.mxu0 0
      %683 = vmatprep.subr.bf16.mxu0 0
      %684 = vmatpush1.bf16.msra.mxu0 0
      %685 = vmatprep.subr.bf16.mxu0 0
      %686 = vmatpush1.bf16.msra.mxu0 0
      %687 = vmatprep.mubr.bf16.mxu0 0
      %688 = vmatmul.mubr.bf16.gmra.mrb[0].mxu0 %v549
      %v689 = vpop.f32.mrb[0].mxu0
      %v690 = vadd.f32 %v535, %v689
      %v691 = vpop.f32.mrb[0].mxu0
      %v692 = vadd.f32 %v537, %v691
      %v693 = vpop.f32.mrb[0].mxu0
      %v694 = vadd.f32 %v539, %v693
      %v695 = vpop.f32.mrb[0].mxu0
      %v696 = vadd.f32 %v541, %v695
      %697 = vdwg.mxu0
      %s698 = scalar_lea.vmem %s1, 16
      %v699 = vld [vmem:[%s698] sm:$0xf]
      %v700 = vld [vmem:[%s698 + $0x4] sm:$0xf]
      %v701 = vld [vmem:[%s327] sm:$0xff]
      %v702 = vld [vmem:[%s327 + $0x8] sm:$0xf]
      %v705 = vunpack.c.l.b16 %v699
      %v706 = vunpack.c.l.b16 %v700
      %v707 = vpack.c.b16 %v706, %v705
      %v710 = vcombine.high %v701, %v701
      %v712 = vunpack.c.l.s4 1983009808
      %v713 = vunpack.c.0.s8 %v712
      %v714 = vlaneseq
      %v715 = vshrl.u32 %v714, 7
      %v716 = vsub.s32 %v713, %v715
      %v717 = vrot.slane %v701, %v716
      %v719 = vunpack.c.l.s4 1983009808
      %v720 = vunpack.c.0.s8 %v719
      %v721 = vlaneseq
      %v722 = vshrl.u32 %v721, 7
      %v723 = vsub.s32 %v720, %v722
      %v724 = vrot.slane %v710, %v723
      %v725 = vcombine.high %v717, %v717
      %v726 = vcombine.high %v724, %v724
      %v728 = vunpack.c.l.s4 1983009808
      %v729 = vunpack.c.0.s8 %v728
      %v730 = vlaneseq
      %v731 = vshrl.u32 %v730, 7
      %v732 = vsub.s32 %v729, %v731
      %v733 = vrot.slane %v702, %v732
      %v734 = vcombine.high %v733, %v733
      %735 = vrot.lane.b32.xlu0 %v717, 126
      %v736 = vpop.permute.xlu0 %735
      %737 = vrot.lane.b32.xlu0 %v725, 126
      %v738 = vpop.permute.xlu0 %737
      %739 = vrot.lane.b32.xlu0 %v724, 126
      %v740 = vpop.permute.xlu0 %739
      %741 = vrot.lane.b32.xlu0 %v726, 126
      %v742 = vpop.permute.xlu0 %741
      %743 = vrot.lane.b32.xlu0 %v733, 126
      %v744 = vpop.permute.xlu0 %743
      %745 = vrot.lane.b32.xlu0 %v734, 126
      %v746 = vpop.permute.xlu0 %745
      %vm747 = vcmask 1031168
      %v748 = vsel %vm747, %v736, %v738
      %v749 = vsel %vm747, %v738, %v740
      %v750 = vsel %vm747, %v740, %v742
      %v751 = vsel %vm747, %v742, %v744
      %v752 = vsel %vm747, %v744, %v746
      %v754 = vsel %vm391, %v707, 0
      %v757 = vsel %vm395, %v748, 0
      %v760 = vsel %vm395, %v749, 0
      %v763 = vsel %vm395, %v750, 0
      %v766 = vsel %vm395, %v751, 0
      %v769 = vsel %vm395, %v752, 0
      %v772 = vsel %vm395, %v746, 0
      %774 = vmatprep.subr.bf16.mxu0 %v760
      %775 = vmatpush1.bf16.msra.mxu0 %v757
      %776 = vmatprep.subr.bf16.mxu0 0
      %777 = vmatpush1.bf16.msra.mxu0 0
      %778 = vmatprep.subr.bf16.mxu0 0
      %779 = vmatpush1.bf16.msra.mxu0 0
      %780 = vmatprep.subr.bf16.mxu0 0
      %781 = vmatpush1.bf16.msra.mxu0 0
      %782 = vmatprep.subr.bf16.mxu0 0
      %783 = vmatpush1.bf16.msra.mxu0 0
      %784 = vmatprep.subr.bf16.mxu0 0
      %785 = vmatpush1.bf16.msra.mxu0 0
      %786 = vmatprep.subr.bf16.mxu0 0
      %787 = vmatpush1.bf16.msra.mxu0 0
      %788 = vmatprep.subr.bf16.mxu0 0
      %789 = vmatpush1.bf16.msra.mxu0 0
      %790 = vmatprep.subr.bf16.mxu0 0
      %791 = vmatpush1.bf16.msra.mxu0 0
      %792 = vmatprep.subr.bf16.mxu0 0
      %793 = vmatpush1.bf16.msra.mxu0 0
      %794 = vmatprep.subr.bf16.mxu0 0
      %795 = vmatpush1.bf16.msra.mxu0 0
      %796 = vmatprep.subr.bf16.mxu0 0
      %797 = vmatpush1.bf16.msra.mxu0 0
      %798 = vmatprep.subr.bf16.mxu0 0
      %799 = vmatpush1.bf16.msra.mxu0 0
      %800 = vmatprep.subr.bf16.mxu0 0
      %801 = vmatpush1.bf16.msra.mxu0 0
      %802 = vmatprep.subr.bf16.mxu0 0
      %803 = vmatpush1.bf16.msra.mxu0 0
      %804 = vmatprep.subr.bf16.mxu0 0
      %805 = vmatpush1.bf16.msra.mxu0 0
      %806 = vmatprep.mubr.bf16.mxu0 0
      %807 = vmatmul.mubr.bf16.gmra.mrb[0].mxu0 %v754
      %v808 = vpop.f32.mrb[0].mxu0
      %v809 = vadd.f32 0.0, %v808
      %v810 = vpop.f32.mrb[0].mxu0
      %v811 = vadd.f32 0.0, %v810
      %v812 = vpop.f32.mrb[0].mxu0
      %v813 = vadd.f32 0.0, %v812
      %v814 = vpop.f32.mrb[0].mxu0
      %v815 = vadd.f32 0.0, %v814
      %816 = vdwg.mxu0
      %817 = vmatprep.subr.bf16.mxu0 %v766
      %818 = vmatpush1.bf16.msra.mxu0 %v763
      %819 = vmatprep.subr.bf16.mxu0 0
      %820 = vmatpush1.bf16.msra.mxu0 0
      %821 = vmatprep.subr.bf16.mxu0 0
      %822 = vmatpush1.bf16.msra.mxu0 0
      %823 = vmatprep.subr.bf16.mxu0 0
      %824 = vmatpush1.bf16.msra.mxu0 0
      %825 = vmatprep.subr.bf16.mxu0 0
      %826 = vmatpush1.bf16.msra.mxu0 0
      %827 = vmatprep.subr.bf16.mxu0 0
      %828 = vmatpush1.bf16.msra.mxu0 0
      %829 = vmatprep.subr.bf16.mxu0 0
      %830 = vmatpush1.bf16.msra.mxu0 0
      %831 = vmatprep.subr.bf16.mxu0 0
      %832 = vmatpush1.bf16.msra.mxu0 0
      %833 = vmatprep.subr.bf16.mxu0 0
      %834 = vmatpush1.bf16.msra.mxu0 0
      %835 = vmatprep.subr.bf16.mxu0 0
      %836 = vmatpush1.bf16.msra.mxu0 0
      %837 = vmatprep.subr.bf16.mxu0 0
      %838 = vmatpush1.bf16.msra.mxu0 0
      %839 = vmatprep.subr.bf16.mxu0 0
      %840 = vmatpush1.bf16.msra.mxu0 0
      %841 = vmatprep.subr.bf16.mxu0 0
      %842 = vmatpush1.bf16.msra.mxu0 0
      %843 = vmatprep.subr.bf16.mxu0 0
      %844 = vmatpush1.bf16.msra.mxu0 0
      %845 = vmatprep.subr.bf16.mxu0 0
      %846 = vmatpush1.bf16.msra.mxu0 0
      %847 = vmatprep.subr.bf16.mxu0 0
      %848 = vmatpush1.bf16.msra.mxu0 0
      %849 = vmatprep.mubr.bf16.mxu0 0
      %850 = vmatmul.mubr.bf16.gmra.mrb[0].mxu0 %v754
      %v851 = vpop.f32.mrb[0].mxu0
      %v852 = vadd.f32 0.0, %v851
      %v853 = vpop.f32.mrb[0].mxu0
      %v854 = vadd.f32 0.0, %v853
      %v855 = vpop.f32.mrb[0].mxu0
      %v856 = vadd.f32 0.0, %v855
      %v857 = vpop.f32.mrb[0].mxu0
      %v858 = vadd.f32 0.0, %v857
      %859 = vdwg.mxu0
      %860 = vmatprep.subr.bf16.mxu0 %v772
      %861 = vmatpush1.bf16.msra.mxu0 %v769
      %862 = vmatprep.subr.bf16.mxu0 0
      %863 = vmatpush1.bf16.msra.mxu0 0
      %864 = vmatprep.subr.bf16.mxu0 0
      %865 = vmatpush1.bf16.msra.mxu0 0
      %866 = vmatprep.subr.bf16.mxu0 0
      %867 = vmatpush1.bf16.msra.mxu0 0
      %868 = vmatprep.subr.bf16.mxu0 0
      %869 = vmatpush1.bf16.msra.mxu0 0
      %870 = vmatprep.subr.bf16.mxu0 0
      %871 = vmatpush1.bf16.msra.mxu0 0
      %872 = vmatprep.subr.bf16.mxu0 0
      %873 = vmatpush1.bf16.msra.mxu0 0
      %874 = vmatprep.subr.bf16.mxu0 0
      %875 = vmatpush1.bf16.msra.mxu0 0
      %876 = vmatprep.subr.bf16.mxu0 0
      %877 = vmatpush1.bf16.msra.mxu0 0
      %878 = vmatprep.subr.bf16.mxu0 0
      %879 = vmatpush1.bf16.msra.mxu0 0
      %880 = vmatprep.subr.bf16.mxu0 0
      %881 = vmatpush1.bf16.msra.mxu0 0
      %882 = vmatprep.subr.bf16.mxu0 0
      %883 = vmatpush1.bf16.msra.mxu0 0
      %884 = vmatprep.subr.bf16.mxu0 0
      %885 = vmatpush1.bf16.msra.mxu0 0
      %886 = vmatprep.subr.bf16.mxu0 0
      %887 = vmatpush1.bf16.msra.mxu0 0
      %888 = vmatprep.subr.bf16.mxu0 0
      %889 = vmatpush1.bf16.msra.mxu0 0
      %890 = vmatprep.subr.bf16.mxu0 0
      %891 = vmatpush1.bf16.msra.mxu0 0
      %892 = vmatprep.mubr.bf16.mxu0 0
      %893 = vmatmul.mubr.bf16.gmra.mrb[0].mxu0 %v754
      %v894 = vpop.f32.mrb[0].mxu0
      %v895 = vadd.f32 0.0, %v894
      %v896 = vpop.f32.mrb[0].mxu0
      %v897 = vadd.f32 0.0, %v896
      %v898 = vpop.f32.mrb[0].mxu0
      %v899 = vadd.f32 0.0, %v898
      %v900 = vpop.f32.mrb[0].mxu0
      %v901 = vadd.f32 0.0, %v900
      %902 = vdwg.mxu0
      %v903 = vadd.f32 %v604, %v809
      %v904 = vadd.f32 %v606, %v811
      %v905 = vadd.f32 %v647, %v852
      %v906 = vadd.f32 %v649, %v854
      %v907 = vadd.f32 %v690, %v895
      %v908 = vadd.f32 %v692, %v897
      %v909 = vadd.f32 %v608, %v813
      %v910 = vadd.f32 %v610, %v815
      %v911 = vadd.f32 %v651, %v856
      %v912 = vadd.f32 %v653, %v858
      %v913 = vadd.f32 %v694, %v899
      %v914 = vadd.f32 %v696, %v901
      %s915 = scalar_lea.vmem %s1, 24
      %v916 = vld [vmem:[%s915] sm:$0xf]
      %v917 = vld [vmem:[%s915 + $0x4] sm:$0xf]
      %v918 = vld [vmem:[%s327] sm:$0xff]
      %v919 = vld [vmem:[%s327 + $0x8] sm:$0x3f]
      %v922 = vunpack.c.l.b16 %v916
      %v923 = vunpack.c.l.b16 %v917
      %v924 = vpack.c.b16 %v923, %v922
      %v927 = vcombine.high %v918, %v918
      %v929 = vunpack.c.l.s4 1983009808
      %v930 = vunpack.c.0.s8 %v929
      %v931 = vlaneseq
      %v932 = vshrl.u32 %v931, 7
      %v933 = vsub.s32 %v930, %v932
      %v934 = vrot.slane %v918, %v933
      %v936 = vunpack.c.l.s4 1983009808
      %v937 = vunpack.c.0.s8 %v936
      %v938 = vlaneseq
      %v939 = vshrl.u32 %v938, 7
      %v940 = vsub.s32 %v937, %v939
      %v941 = vrot.slane %v927, %v940
      %v942 = vcombine.high %v934, %v934
      %v943 = vcombine.high %v941, %v941
      %v944 = vcombine.high %v919, %v919
      %v946 = vunpack.c.l.s4 1983009808
      %v947 = vunpack.c.0.s8 %v946
      %v948 = vlaneseq
      %v949 = vshrl.u32 %v948, 7
      %v950 = vsub.s32 %v947, %v949
      %v951 = vrot.slane %v919, %v950
      %v953 = vunpack.c.l.s4 1983009808
      %v954 = vunpack.c.0.s8 %v953
      %v955 = vlaneseq
      %v956 = vshrl.u32 %v955, 7
      %v957 = vsub.s32 %v954, %v956
      %v958 = vrot.slane %v944, %v957
      %v959 = vcombine.high %v951, %v951
      %960 = vrot.lane.b32.xlu0 %v934, 108
      %v961 = vpop.permute.xlu0 %960
      %962 = vrot.lane.b32.xlu0 %v942, 108
      %v963 = vpop.permute.xlu0 %962
      %964 = vrot.lane.b32.xlu0 %v941, 108
      %v965 = vpop.permute.xlu0 %964
      %966 = vrot.lane.b32.xlu0 %v943, 108
      %v967 = vpop.permute.xlu0 %966
      %968 = vrot.lane.b32.xlu0 %v951, 108
      %v969 = vpop.permute.xlu0 %968
      %970 = vrot.lane.b32.xlu0 %v959, 108
      %v971 = vpop.permute.xlu0 %970
      %972 = vrot.lane.b32.xlu0 %v958, 108
      %v973 = vpop.permute.xlu0 %972
      %vm974 = vcmask 883712
      %v975 = vsel %vm974, %v961, %v963
      %v976 = vsel %vm974, %v963, %v965
      %v977 = vsel %vm974, %v965, %v967
      %v978 = vsel %vm974, %v967, %v969
      %v979 = vsel %vm974, %v969, %v971
      %v980 = vsel %vm974, %v971, %v973
      %v982 = vsel %vm391, %v924, 0
      %v985 = vsel %vm395, %v975, 0
      %v988 = vsel %vm395, %v976, 0
      %v991 = vsel %vm395, %v977, 0
      %v994 = vsel %vm395, %v978, 0
      %v997 = vsel %vm395, %v979, 0
      %v1000 = vsel %vm395, %v980, 0
      %1002 = vmatprep.subr.bf16.mxu0 %v988
      %1003 = vmatpush1.bf16.msra.mxu0 %v985
      %1004 = vmatprep.subr.bf16.mxu0 0
      %1005 = vmatpush1.bf16.msra.mxu0 0
      %1006 = vmatprep.subr.bf16.mxu0 0
      %1007 = vmatpush1.bf16.msra.mxu0 0
      %1008 = vmatprep.subr.bf16.mxu0 0
      %1009 = vmatpush1.bf16.msra.mxu0 0
      %1010 = vmatprep.subr.bf16.mxu0 0
      %1011 = vmatpush1.bf16.msra.mxu0 0
      %1012 = vmatprep.subr.bf16.mxu0 0
      %1013 = vmatpush1.bf16.msra.mxu0 0
      %1014 = vmatprep.subr.bf16.mxu0 0
      %1015 = vmatpush1.bf16.msra.mxu0 0
      %1016 = vmatprep.subr.bf16.mxu0 0
      %1017 = vmatpush1.bf16.msra.mxu0 0
      %1018 = vmatprep.subr.bf16.mxu0 0
      %1019 = vmatpush1.bf16.msra.mxu0 0
      %1020 = vmatprep.subr.bf16.mxu0 0
      %1021 = vmatpush1.bf16.msra.mxu0 0
      %1022 = vmatprep.subr.bf16.mxu0 0
      %1023 = vmatpush1.bf16.msra.mxu0 0
      %1024 = vmatprep.subr.bf16.mxu0 0
      %1025 = vmatpush1.bf16.msra.mxu0 0
      %1026 = vmatprep.subr.bf16.mxu0 0
      %1027 = vmatpush1.bf16.msra.mxu0 0
      %1028 = vmatprep.subr.bf16.mxu0 0
      %1029 = vmatpush1.bf16.msra.mxu0 0
      %1030 = vmatprep.subr.bf16.mxu0 0
      %1031 = vmatpush1.bf16.msra.mxu0 0
      %1032 = vmatprep.subr.bf16.mxu0 0
      %1033 = vmatpush1.bf16.msra.mxu0 0
      %1034 = vmatprep.mubr.bf16.mxu0 0
      %1035 = vmatmul.mubr.bf16.gmra.mrb[0].mxu0 %v982
      %v1036 = vpop.f32.mrb[0].mxu0
      %v1037 = vadd.f32 0.0, %v1036
      %v1038 = vpop.f32.mrb[0].mxu0
      %v1039 = vadd.f32 0.0, %v1038
      %v1040 = vpop.f32.mrb[0].mxu0
      %v1041 = vadd.f32 0.0, %v1040
      %v1042 = vpop.f32.mrb[0].mxu0
      %v1043 = vadd.f32 0.0, %v1042
      %1044 = vdwg.mxu0
      %1045 = vmatprep.subr.bf16.mxu0 %v994
      %1046 = vmatpush1.bf16.msra.mxu0 %v991
      %1047 = vmatprep.subr.bf16.mxu0 0
      %1048 = vmatpush1.bf16.msra.mxu0 0
      %1049 = vmatprep.subr.bf16.mxu0 0
      %1050 = vmatpush1.bf16.msra.mxu0 0
      %1051 = vmatprep.subr.bf16.mxu0 0
      %1052 = vmatpush1.bf16.msra.mxu0 0
      %1053 = vmatprep.subr.bf16.mxu0 0
      %1054 = vmatpush1.bf16.msra.mxu0 0
      %1055 = vmatprep.subr.bf16.mxu0 0
      %1056 = vmatpush1.bf16.msra.mxu0 0
      %1057 = vmatprep.subr.bf16.mxu0 0
      %1058 = vmatpush1.bf16.msra.mxu0 0
      %1059 = vmatprep.subr.bf16.mxu0 0
      %1060 = vmatpush1.bf16.msra.mxu0 0
      %1061 = vmatprep.subr.bf16.mxu0 0
      %1062 = vmatpush1.bf16.msra.mxu0 0
      %1063 = vmatprep.subr.bf16.mxu0 0
      %1064 = vmatpush1.bf16.msra.mxu0 0
      %1065 = vmatprep.subr.bf16.mxu0 0
      %1066 = vmatpush1.bf16.msra.mxu0 0
      %1067 = vmatprep.subr.bf16.mxu0 0
      %1068 = vmatpush1.bf16.msra.mxu0 0
      %1069 = vmatprep.subr.bf16.mxu0 0
      %1070 = vmatpush1.bf16.msra.mxu0 0
      %1071 = vmatprep.subr.bf16.mxu0 0
      %1072 = vmatpush1.bf16.msra.mxu0 0
      %1073 = vmatprep.subr.bf16.mxu0 0
      %1074 = vmatpush1.bf16.msra.mxu0 0
      %1075 = vmatprep.subr.bf16.mxu0 0
      %1076 = vmatpush1.bf16.msra.mxu0 0
      %1077 = vmatprep.mubr.bf16.mxu0 0
      %1078 = vmatmul.mubr.bf16.gmra.mrb[0].mxu0 %v982
      %v1079 = vpop.f32.mrb[0].mxu0
      %v1080 = vadd.f32 0.0, %v1079
      %v1081 = vpop.f32.mrb[0].mxu0
      %v1082 = vadd.f32 0.0, %v1081
      %v1083 = vpop.f32.mrb[0].mxu0
      %v1084 = vadd.f32 0.0, %v1083
      %v1085 = vpop.f32.mrb[0].mxu0
      %v1086 = vadd.f32 0.0, %v1085
      %1087 = vdwg.mxu0
      %1088 = vmatprep.subr.bf16.mxu0 %v1000
      %1089 = vmatpush1.bf16.msra.mxu0 %v997
      %1090 = vmatprep.subr.bf16.mxu0 0
      %1091 = vmatpush1.bf16.msra.mxu0 0
      %1092 = vmatprep.subr.bf16.mxu0 0
      %1093 = vmatpush1.bf16.msra.mxu0 0
      %1094 = vmatprep.subr.bf16.mxu0 0
      %1095 = vmatpush1.bf16.msra.mxu0 0
      %1096 = vmatprep.subr.bf16.mxu0 0
      %1097 = vmatpush1.bf16.msra.mxu0 0
      %1098 = vmatprep.subr.bf16.mxu0 0
      %1099 = vmatpush1.bf16.msra.mxu0 0
      %1100 = vmatprep.subr.bf16.mxu0 0
      %1101 = vmatpush1.bf16.msra.mxu0 0
      %1102 = vmatprep.subr.bf16.mxu0 0
      %1103 = vmatpush1.bf16.msra.mxu0 0
      %1104 = vmatprep.subr.bf16.mxu0 0
      %1105 = vmatpush1.bf16.msra.mxu0 0
      %1106 = vmatprep.subr.bf16.mxu0 0
      %1107 = vmatpush1.bf16.msra.mxu0 0
      %1108 = vmatprep.subr.bf16.mxu0 0
      %1109 = vmatpush1.bf16.msra.mxu0 0
      %1110 = vmatprep.subr.bf16.mxu0 0
      %1111 = vmatpush1.bf16.msra.mxu0 0
      %1112 = vmatprep.subr.bf16.mxu0 0
      %1113 = vmatpush1.bf16.msra.mxu0 0
      %1114 = vmatprep.subr.bf16.mxu0 0
      %1115 = vmatpush1.bf16.msra.mxu0 0
      %1116 = vmatprep.subr.bf16.mxu0 0
      %1117 = vmatpush1.bf16.msra.mxu0 0
      %1118 = vmatprep.subr.bf16.mxu0 0
      %1119 = vmatpush1.bf16.msra.mxu0 0
      %1120 = vmatprep.mubr.bf16.mxu0 0
      %1121 = vmatmul.mubr.bf16.gmra.mrb[0].mxu0 %v982
      %v1122 = vpop.f32.mrb[0].mxu0
      %v1123 = vadd.f32 0.0, %v1122
      %v1124 = vpop.f32.mrb[0].mxu0
      %v1125 = vadd.f32 0.0, %v1124
      %v1126 = vpop.f32.mrb[0].mxu0
      %v1127 = vadd.f32 0.0, %v1126
      %v1128 = vpop.f32.mrb[0].mxu0
      %v1129 = vadd.f32 0.0, %v1128
      %1130 = vdwg.mxu0
      %v1131 = vadd.f32 %v903, %v1037
      %v1132 = vadd.f32 %v904, %v1039
      %v1133 = vadd.f32 %v905, %v1080
      %v1134 = vadd.f32 %v906, %v1082
      %v1135 = vadd.f32 %v907, %v1123
      %v1136 = vadd.f32 %v908, %v1125
      %v1137 = vadd.f32 %v909, %v1041
      %v1138 = vadd.f32 %v910, %v1043
      %v1139 = vadd.f32 %v911, %v1084
      %v1140 = vadd.f32 %v912, %v1086
      %v1141 = vadd.f32 %v913, %v1127
      %v1142 = vadd.f32 %v914, %v1129
      %s1143 = scalar_lea.vmem %s1, 32
      %v1144 = vld [vmem:[%s1143] sm:$0xf]
      %v1145 = vld [vmem:[%s1143 + $0x4] sm:$0xf]
      %v1146 = vld [vmem:[%s327] sm:$0xff]
      %v1147 = vld [vmem:[%s327 + $0x8] sm:$0x3f]
      %v1150 = vunpack.c.l.b16 %v1144
      %v1151 = vunpack.c.l.b16 %v1145
      %v1152 = vpack.c.b16 %v1151, %v1150
      %v1155 = vcombine.high %v1146, %v1146
      %v1157 = vunpack.c.l.s4 1983009808
      %v1158 = vunpack.c.0.s8 %v1157
      %v1159 = vlaneseq
      %v1160 = vshrl.u32 %v1159, 7
      %v1161 = vsub.s32 %v1158, %v1160
      %v1162 = vrot.slane %v1146, %v1161
      %v1164 = vunpack.c.l.s4 1983009808
      %v1165 = vunpack.c.0.s8 %v1164
      %v1166 = vlaneseq
      %v1167 = vshrl.u32 %v1166, 7
      %v1168 = vsub.s32 %v1165, %v1167
      %v1169 = vrot.slane %v1155, %v1168
      %v1170 = vcombine.high %v1162, %v1162
      %v1171 = vcombine.high %v1169, %v1169
      %v1172 = vcombine.high %v1147, %v1147
      %v1174 = vunpack.c.l.s4 1983009808
      %v1175 = vunpack.c.0.s8 %v1174
      %v1176 = vlaneseq
      %v1177 = vshrl.u32 %v1176, 7
      %v1178 = vsub.s32 %v1175, %v1177
      %v1179 = vrot.slane %v1147, %v1178
      %v1181 = vunpack.c.l.s4 1983009808
      %v1182 = vunpack.c.0.s8 %v1181
      %v1183 = vlaneseq
      %v1184 = vshrl.u32 %v1183, 7
      %v1185 = vsub.s32 %v1182, %v1184
      %v1186 = vrot.slane %v1172, %v1185
      %v1187 = vcombine.high %v1179, %v1179
      %1188 = vrot.lane.b32.xlu0 %v1162, 107
      %v1189 = vpop.permute.xlu0 %1188
      %1190 = vrot.lane.b32.xlu0 %v1170, 107
      %v1191 = vpop.permute.xlu0 %1190
      %1192 = vrot.lane.b32.xlu0 %v1169, 107
      %v1193 = vpop.permute.xlu0 %1192
      %1194 = vrot.lane.b32.xlu0 %v1171, 107
      %v1195 = vpop.permute.xlu0 %1194
      %1196 = vrot.lane.b32.xlu0 %v1179, 107
      %v1197 = vpop.permute.xlu0 %1196
      %1198 = vrot.lane.b32.xlu0 %v1187, 107
      %v1199 = vpop.permute.xlu0 %1198
      %1200 = vrot.lane.b32.xlu0 %v1186, 107
      %v1201 = vpop.permute.xlu0 %1200
      %vm1202 = vcmask 875520
      %v1203 = vsel %vm1202, %v1189, %v1191
      %v1204 = vsel %vm1202, %v1191, %v1193
      %v1205 = vsel %vm1202, %v1193, %v1195
      %v1206 = vsel %vm1202, %v1195, %v1197
      %v1207 = vsel %vm1202, %v1197, %v1199
      %v1208 = vsel %vm1202, %v1199, %v1201
      %v1210 = vsel %vm391, %v1152, 0
      %v1213 = vsel %vm395, %v1203, 0
      %v1216 = vsel %vm395, %v1204, 0
      %v1219 = vsel %vm395, %v1205, 0
      %v1222 = vsel %vm395, %v1206, 0
      %v1225 = vsel %vm395, %v1207, 0
      %v1228 = vsel %vm395, %v1208, 0
      %1230 = vmatprep.subr.bf16.mxu0 %v1216
      %1231 = vmatpush1.bf16.msra.mxu0 %v1213
      %1232 = vmatprep.subr.bf16.mxu0 0
      %1233 = vmatpush1.bf16.msra.mxu0 0
      %1234 = vmatprep.subr.bf16.mxu0 0
      %1235 = vmatpush1.bf16.msra.mxu0 0
      %1236 = vmatprep.subr.bf16.mxu0 0
      %1237 = vmatpush1.bf16.msra.mxu0 0
      %1238 = vmatprep.subr.bf16.mxu0 0
      %1239 = vmatpush1.bf16.msra.mxu0 0
      %1240 = vmatprep.subr.bf16.mxu0 0
      %1241 = vmatpush1.bf16.msra.mxu0 0
      %1242 = vmatprep.subr.bf16.mxu0 0
      %1243 = vmatpush1.bf16.msra.mxu0 0
      %1244 = vmatprep.subr.bf16.mxu0 0
      %1245 = vmatpush1.bf16.msra.mxu0 0
      %1246 = vmatprep.subr.bf16.mxu0 0
      %1247 = vmatpush1.bf16.msra.mxu0 0
      %1248 = vmatprep.subr.bf16.mxu0 0
      %1249 = vmatpush1.bf16.msra.mxu0 0
      %1250 = vmatprep.subr.bf16.mxu0 0
      %1251 = vmatpush1.bf16.msra.mxu0 0
      %1252 = vmatprep.subr.bf16.mxu0 0
      %1253 = vmatpush1.bf16.msra.mxu0 0
      %1254 = vmatprep.subr.bf16.mxu0 0
      %1255 = vmatpush1.bf16.msra.mxu0 0
      %1256 = vmatprep.subr.bf16.mxu0 0
      %1257 = vmatpush1.bf16.msra.mxu0 0
      %1258 = vmatprep.subr.bf16.mxu0 0
      %1259 = vmatpush1.bf16.msra.mxu0 0
      %1260 = vmatprep.subr.bf16.mxu0 0
      %1261 = vmatpush1.bf16.msra.mxu0 0
      %1262 = vmatprep.mubr.bf16.mxu0 0
      %1263 = vmatmul.mubr.bf16.gmra.mrb[0].mxu0 %v1210
      %v1264 = vpop.f32.mrb[0].mxu0
      %v1265 = vadd.f32 0.0, %v1264
      %v1266 = vpop.f32.mrb[0].mxu0
      %v1267 = vadd.f32 0.0, %v1266
      %v1268 = vpop.f32.mrb[0].mxu0
      %v1269 = vadd.f32 0.0, %v1268
      %v1270 = vpop.f32.mrb[0].mxu0
      %v1271 = vadd.f32 0.0, %v1270
      %1272 = vdwg.mxu0
      %1273 = vmatprep.subr.bf16.mxu0 %v1222
      %1274 = vmatpush1.bf16.msra.mxu0 %v1219
      %1275 = vmatprep.subr.bf16.mxu0 0
      %1276 = vmatpush1.bf16.msra.mxu0 0
      %1277 = vmatprep.subr.bf16.mxu0 0
      %1278 = vmatpush1.bf16.msra.mxu0 0
      %1279 = vmatprep.subr.bf16.mxu0 0
      %1280 = vmatpush1.bf16.msra.mxu0 0
      %1281 = vmatprep.subr.bf16.mxu0 0
      %1282 = vmatpush1.bf16.msra.mxu0 0
      %1283 = vmatprep.subr.bf16.mxu0 0
      %1284 = vmatpush1.bf16.msra.mxu0 0
      %1285 = vmatprep.subr.bf16.mxu0 0
      %1286 = vmatpush1.bf16.msra.mxu0 0
      %1287 = vmatprep.subr.bf16.mxu0 0
      %1288 = vmatpush1.bf16.msra.mxu0 0
      %1289 = vmatprep.subr.bf16.mxu0 0
      %1290 = vmatpush1.bf16.msra.mxu0 0
      %1291 = vmatprep.subr.bf16.mxu0 0
      %1292 = vmatpush1.bf16.msra.mxu0 0
      %1293 = vmatprep.subr.bf16.mxu0 0
      %1294 = vmatpush1.bf16.msra.mxu0 0
      %1295 = vmatprep.subr.bf16.mxu0 0
      %1296 = vmatpush1.bf16.msra.mxu0 0
      %1297 = vmatprep.subr.bf16.mxu0 0
      %1298 = vmatpush1.bf16.msra.mxu0 0
      %1299 = vmatprep.subr.bf16.mxu0 0
      %1300 = vmatpush1.bf16.msra.mxu0 0
      %1301 = vmatprep.subr.bf16.mxu0 0
      %1302 = vmatpush1.bf16.msra.mxu0 0
      %1303 = vmatprep.subr.bf16.mxu0 0
      %1304 = vmatpush1.bf16.msra.mxu0 0
      %1305 = vmatprep.mubr.bf16.mxu0 0
      %1306 = vmatmul.mubr.bf16.gmra.mrb[0].mxu0 %v1210
      %v1307 = vpop.f32.mrb[0].mxu0
      %v1308 = vadd.f32 0.0, %v1307
      %v1309 = vpop.f32.mrb[0].mxu0
      %v1310 = vadd.f32 0.0, %v1309
      %v1311 = vpop.f32.mrb[0].mxu0
      %v1312 = vadd.f32 0.0, %v1311
      %v1313 = vpop.f32.mrb[0].mxu0
      %v1314 = vadd.f32 0.0, %v1313
      %1315 = vdwg.mxu0
      %1316 = vmatprep.subr.bf16.mxu0 %v1228
      %1317 = vmatpush1.bf16.msra.mxu0 %v1225
      %1318 = vmatprep.subr.bf16.mxu0 0
      %1319 = vmatpush1.bf16.msra.mxu0 0
      %1320 = vmatprep.subr.bf16.mxu0 0
      %1321 = vmatpush1.bf16.msra.mxu0 0
      %1322 = vmatprep.subr.bf16.mxu0 0
      %1323 = vmatpush1.bf16.msra.mxu0 0
      %1324 = vmatprep.subr.bf16.mxu0 0
      %1325 = vmatpush1.bf16.msra.mxu0 0
      %1326 = vmatprep.subr.bf16.mxu0 0
      %1327 = vmatpush1.bf16.msra.mxu0 0
      %1328 = vmatprep.subr.bf16.mxu0 0
      %1329 = vmatpush1.bf16.msra.mxu0 0
      %1330 = vmatprep.subr.bf16.mxu0 0
      %1331 = vmatpush1.bf16.msra.mxu0 0
      %1332 = vmatprep.subr.bf16.mxu0 0
      %1333 = vmatpush1.bf16.msra.mxu0 0
      %1334 = vmatprep.subr.bf16.mxu0 0
      %1335 = vmatpush1.bf16.msra.mxu0 0
      %1336 = vmatprep.subr.bf16.mxu0 0
      %1337 = vmatpush1.bf16.msra.mxu0 0
      %1338 = vmatprep.subr.bf16.mxu0 0
      %1339 = vmatpush1.bf16.msra.mxu0 0
      %1340 = vmatprep.subr.bf16.mxu0 0
      %1341 = vmatpush1.bf16.msra.mxu0 0
      %1342 = vmatprep.subr.bf16.mxu0 0
      %1343 = vmatpush1.bf16.msra.mxu0 0
      %1344 = vmatprep.subr.bf16.mxu0 0
      %1345 = vmatpush1.bf16.msra.mxu0 0
      %1346 = vmatprep.subr.bf16.mxu0 0
      %1347 = vmatpush1.bf16.msra.mxu0 0
      %1348 = vmatprep.mubr.bf16.mxu0 0
      %1349 = vmatmul.mubr.bf16.gmra.mrb[0].mxu0 %v1210
      %v1350 = vpop.f32.mrb[0].mxu0
      %v1351 = vadd.f32 0.0, %v1350
      %v1352 = vpop.f32.mrb[0].mxu0
      %v1353 = vadd.f32 0.0, %v1352
      %v1354 = vpop.f32.mrb[0].mxu0
      %v1355 = vadd.f32 0.0, %v1354
      %v1356 = vpop.f32.mrb[0].mxu0
      %v1357 = vadd.f32 0.0, %v1356
      %1358 = vdwg.mxu0
      %v1359 = vadd.f32 %v1131, %v1265
      %v1360 = vadd.f32 %v1132, %v1267
      %v1361 = vadd.f32 %v1133, %v1308
      %v1362 = vadd.f32 %v1134, %v1310
      %v1363 = vadd.f32 %v1135, %v1351
      %v1364 = vadd.f32 %v1136, %v1353
      %v1365 = vadd.f32 %v1137, %v1269
      %v1366 = vadd.f32 %v1138, %v1271
      %v1367 = vadd.f32 %v1139, %v1312
      %v1368 = vadd.f32 %v1140, %v1314
      %v1369 = vadd.f32 %v1141, %v1355
      %v1370 = vadd.f32 %v1142, %v1357
      %s1371 = scalar_lea.vmem %s1, 40
      %v1372 = vld [vmem:[%s1371] sm:$0xf]
      %v1373 = vld [vmem:[%s1371 + $0x4] sm:$0xf]
      %v1374 = vld [vmem:[%s327] sm:$0xff]
      %v1375 = vld [vmem:[%s327 + $0x8] sm:$0x3f]
      %v1378 = vunpack.c.l.b16 %v1372
      %v1379 = vunpack.c.l.b16 %v1373
      %v1380 = vpack.c.b16 %v1379, %v1378
      %v1383 = vcombine.high %v1374, %v1374
      %v1385 = vunpack.c.l.s4 1983009808
      %v1386 = vunpack.c.0.s8 %v1385
      %v1387 = vlaneseq
      %v1388 = vshrl.u32 %v1387, 7
      %v1389 = vsub.s32 %v1386, %v1388
      %v1390 = vrot.slane %v1374, %v1389
      %v1392 = vunpack.c.l.s4 1983009808
      %v1393 = vunpack.c.0.s8 %v1392
      %v1394 = vlaneseq
      %v1395 = vshrl.u32 %v1394, 7
      %v1396 = vsub.s32 %v1393, %v1395
      %v1397 = vrot.slane %v1383, %v1396
      %v1398 = vcombine.high %v1390, %v1390
      %v1399 = vcombine.high %v1397, %v1397
      %v1400 = vcombine.high %v1375, %v1375
      %v1402 = vunpack.c.l.s4 1983009808
      %v1403 = vunpack.c.0.s8 %v1402
      %v1404 = vlaneseq
      %v1405 = vshrl.u32 %v1404, 7
      %v1406 = vsub.s32 %v1403, %v1405
      %v1407 = vrot.slane %v1375, %v1406
      %v1409 = vunpack.c.l.s4 1983009808
      %v1410 = vunpack.c.0.s8 %v1409
      %v1411 = vlaneseq
      %v1412 = vshrl.u32 %v1411, 7
      %v1413 = vsub.s32 %v1410, %v1412
      %v1414 = vrot.slane %v1400, %v1413
      %v1415 = vcombine.high %v1407, %v1407
      %1416 = vrot.lane.b32.xlu0 %v1390, 106
      %v1417 = vpop.permute.xlu0 %1416
      %1418 = vrot.lane.b32.xlu0 %v1398, 106
      %v1419 = vpop.permute.xlu0 %1418
      %1420 = vrot.lane.b32.xlu0 %v1397, 106
      %v1421 = vpop.permute.xlu0 %1420
      %1422 = vrot.lane.b32.xlu0 %v1399, 106
      %v1423 = vpop.permute.xlu0 %1422
      %1424 = vrot.lane.b32.xlu0 %v1407, 106
      %v1425 = vpop.permute.xlu0 %1424
      %1426 = vrot.lane.b32.xlu0 %v1415, 106
      %v1427 = vpop.permute.xlu0 %1426
      %1428 = vrot.lane.b32.xlu0 %v1414, 106
      %v1429 = vpop.permute.xlu0 %1428
      %vm1430 = vcmask 867328
      %v1431 = vsel %vm1430, %v1417, %v1419
      %v1432 = vsel %vm1430, %v1419, %v1421
      %v1433 = vsel %vm1430, %v1421, %v1423
      %v1434 = vsel %vm1430, %v1423, %v1425
      %v1435 = vsel %vm1430, %v1425, %v1427
      %v1436 = vsel %vm1430, %v1427, %v1429
      %v1438 = vsel %vm391, %v1380, 0
      %v1441 = vsel %vm395, %v1431, 0
      %v1444 = vsel %vm395, %v1432, 0
      %v1447 = vsel %vm395, %v1433, 0
      %v1450 = vsel %vm395, %v1434, 0
      %v1453 = vsel %vm395, %v1435, 0
      %v1456 = vsel %vm395, %v1436, 0
      %1458 = vmatprep.subr.bf16.mxu0 %v1444
      %1459 = vmatpush1.bf16.msra.mxu0 %v1441
      %1460 = vmatprep.subr.bf16.mxu0 0
      %1461 = vmatpush1.bf16.msra.mxu0 0
      %1462 = vmatprep.subr.bf16.mxu0 0
      %1463 = vmatpush1.bf16.msra.mxu0 0
      %1464 = vmatprep.subr.bf16.mxu0 0
      %1465 = vmatpush1.bf16.msra.mxu0 0
      %1466 = vmatprep.subr.bf16.mxu0 0
      %1467 = vmatpush1.bf16.msra.mxu0 0
      %1468 = vmatprep.subr.bf16.mxu0 0
      %1469 = vmatpush1.bf16.msra.mxu0 0
      %1470 = vmatprep.subr.bf16.mxu0 0
      %1471 = vmatpush1.bf16.msra.mxu0 0
      %1472 = vmatprep.subr.bf16.mxu0 0
      %1473 = vmatpush1.bf16.msra.mxu0 0
      %1474 = vmatprep.subr.bf16.mxu0 0
      %1475 = vmatpush1.bf16.msra.mxu0 0
      %1476 = vmatprep.subr.bf16.mxu0 0
      %1477 = vmatpush1.bf16.msra.mxu0 0
      %1478 = vmatprep.subr.bf16.mxu0 0
      %1479 = vmatpush1.bf16.msra.mxu0 0
      %1480 = vmatprep.subr.bf16.mxu0 0
      %1481 = vmatpush1.bf16.msra.mxu0 0
      %1482 = vmatprep.subr.bf16.mxu0 0
      %1483 = vmatpush1.bf16.msra.mxu0 0
      %1484 = vmatprep.subr.bf16.mxu0 0
      %1485 = vmatpush1.bf16.msra.mxu0 0
      %1486 = vmatprep.subr.bf16.mxu0 0
      %1487 = vmatpush1.bf16.msra.mxu0 0
      %1488 = vmatprep.subr.bf16.mxu0 0
      %1489 = vmatpush1.bf16.msra.mxu0 0
      %1490 = vmatprep.mubr.bf16.mxu0 0
      %1491 = vmatmul.mubr.bf16.gmra.mrb[0].mxu0 %v1438
      %v1492 = vpop.f32.mrb[0].mxu0
      %v1493 = vadd.f32 0.0, %v1492
      %v1494 = vpop.f32.mrb[0].mxu0
      %v1495 = vadd.f32 0.0, %v1494
      %v1496 = vpop.f32.mrb[0].mxu0
      %v1497 = vadd.f32 0.0, %v1496
      %v1498 = vpop.f32.mrb[0].mxu0
      %v1499 = vadd.f32 0.0, %v1498
      %1500 = vdwg.mxu0
      %1501 = vmatprep.subr.bf16.mxu0 %v1450
      %1502 = vmatpush1.bf16.msra.mxu0 %v1447
      %1503 = vmatprep.subr.bf16.mxu0 0
      %1504 = vmatpush1.bf16.msra.mxu0 0
      %1505 = vmatprep.subr.bf16.mxu0 0
      %1506 = vmatpush1.bf16.msra.mxu0 0
      %1507 = vmatprep.subr.bf16.mxu0 0
      %1508 = vmatpush1.bf16.msra.mxu0 0
      %1509 = vmatprep.subr.bf16.mxu0 0
      %1510 = vmatpush1.bf16.msra.mxu0 0
      %1511 = vmatprep.subr.bf16.mxu0 0
      %1512 = vmatpush1.bf16.msra.mxu0 0
      %1513 = vmatprep.subr.bf16.mxu0 0
      %1514 = vmatpush1.bf16.msra.mxu0 0
      %1515 = vmatprep.subr.bf16.mxu0 0
      %1516 = vmatpush1.bf16.msra.mxu0 0
      %1517 = vmatprep.subr.bf16.mxu0 0
      %1518 = vmatpush1.bf16.msra.mxu0 0
      %1519 = vmatprep.subr.bf16.mxu0 0
      %1520 = vmatpush1.bf16.msra.mxu0 0
      %1521 = vmatprep.subr.bf16.mxu0 0
      %1522 = vmatpush1.bf16.msra.mxu0 0
      %1523 = vmatprep.subr.bf16.mxu0 0
      %1524 = vmatpush1.bf16.msra.mxu0 0
      %1525 = vmatprep.subr.bf16.mxu0 0
      %1526 = vmatpush1.bf16.msra.mxu0 0
      %1527 = vmatprep.subr.bf16.mxu0 0
      %1528 = vmatpush1.bf16.msra.mxu0 0
      %1529 = vmatprep.subr.bf16.mxu0 0
      %1530 = vmatpush1.bf16.msra.mxu0 0
      %1531 = vmatprep.subr.bf16.mxu0 0
      %1532 = vmatpush1.bf16.msra.mxu0 0
      %1533 = vmatprep.mubr.bf16.mxu0 0
      %1534 = vmatmul.mubr.bf16.gmra.mrb[0].mxu0 %v1438
      %v1535 = vpop.f32.mrb[0].mxu0
      %v1536 = vadd.f32 0.0, %v1535
      %v1537 = vpop.f32.mrb[0].mxu0
      %v1538 = vadd.f32 0.0, %v1537
      %v1539 = vpop.f32.mrb[0].mxu0
      %v1540 = vadd.f32 0.0, %v1539
      %v1541 = vpop.f32.mrb[0].mxu0
      %v1542 = vadd.f32 0.0, %v1541
      %1543 = vdwg.mxu0
      %1544 = vmatprep.subr.bf16.mxu0 %v1456
      %1545 = vmatpush1.bf16.msra.mxu0 %v1453
      %1546 = vmatprep.subr.bf16.mxu0 0
      %1547 = vmatpush1.bf16.msra.mxu0 0
      %1548 = vmatprep.subr.bf16.mxu0 0
      %1549 = vmatpush1.bf16.msra.mxu0 0
      %1550 = vmatprep.subr.bf16.mxu0 0
      %1551 = vmatpush1.bf16.msra.mxu0 0
      %1552 = vmatprep.subr.bf16.mxu0 0
      %1553 = vmatpush1.bf16.msra.mxu0 0
      %1554 = vmatprep.subr.bf16.mxu0 0
      %1555 = vmatpush1.bf16.msra.mxu0 0
      %1556 = vmatprep.subr.bf16.mxu0 0
      %1557 = vmatpush1.bf16.msra.mxu0 0
      %1558 = vmatprep.subr.bf16.mxu0 0
      %1559 = vmatpush1.bf16.msra.mxu0 0
      %1560 = vmatprep.subr.bf16.mxu0 0
      %1561 = vmatpush1.bf16.msra.mxu0 0
      %1562 = vmatprep.subr.bf16.mxu0 0
      %1563 = vmatpush1.bf16.msra.mxu0 0
      %1564 = vmatprep.subr.bf16.mxu0 0
      %1565 = vmatpush1.bf16.msra.mxu0 0
      %1566 = vmatprep.subr.bf16.mxu0 0
      %1567 = vmatpush1.bf16.msra.mxu0 0
      %1568 = vmatprep.subr.bf16.mxu0 0
      %1569 = vmatpush1.bf16.msra.mxu0 0
      %1570 = vmatprep.subr.bf16.mxu0 0
      %1571 = vmatpush1.bf16.msra.mxu0 0
      %1572 = vmatprep.subr.bf16.mxu0 0
      %1573 = vmatpush1.bf16.msra.mxu0 0
      %1574 = vmatprep.subr.bf16.mxu0 0
      %1575 = vmatpush1.bf16.msra.mxu0 0
      %1576 = vmatprep.mubr.bf16.mxu0 0
      %1577 = vmatmul.mubr.bf16.gmra.mrb[0].mxu0 %v1438
      %v1578 = vpop.f32.mrb[0].mxu0
      %v1579 = vadd.f32 0.0, %v1578
      %v1580 = vpop.f32.mrb[0].mxu0
      %v1581 = vadd.f32 0.0, %v1580
      %v1582 = vpop.f32.mrb[0].mxu0
      %v1583 = vadd.f32 0.0, %v1582
      %v1584 = vpop.f32.mrb[0].mxu0
      %v1585 = vadd.f32 0.0, %v1584
      %1586 = vdwg.mxu0
      %v1587 = vadd.f32 %v1359, %v1493
      %v1588 = vadd.f32 %v1360, %v1495
      %v1589 = vadd.f32 %v1361, %v1536
      %v1590 = vadd.f32 %v1362, %v1538
      %v1591 = vadd.f32 %v1363, %v1579
      %v1592 = vadd.f32 %v1364, %v1581
      %v1593 = vadd.f32 %v1365, %v1497
      %v1594 = vadd.f32 %v1366, %v1499
      %v1595 = vadd.f32 %v1367, %v1540
      %v1596 = vadd.f32 %v1368, %v1542
      %v1597 = vadd.f32 %v1369, %v1583
      %v1598 = vadd.f32 %v1370, %v1585
      %s1599 = scalar_lea.vmem %s1, 48
      %v1600 = vld [vmem:[%s1599] sm:$0xf]
      %v1601 = vld [vmem:[%s1599 + $0x4] sm:$0xf]
      %v1602 = vld [vmem:[%s327] sm:$0xff]
      %v1603 = vld [vmem:[%s327 + $0x8] sm:$0x3f]
      %v1606 = vunpack.c.l.b16 %v1600
      %v1607 = vunpack.c.l.b16 %v1601
      %v1608 = vpack.c.b16 %v1607, %v1606
      %v1611 = vcombine.high %v1602, %v1602
      %v1613 = vunpack.c.l.s4 1983009808
      %v1614 = vunpack.c.0.s8 %v1613
      %v1615 = vlaneseq
      %v1616 = vshrl.u32 %v1615, 7
      %v1617 = vsub.s32 %v1614, %v1616
      %v1618 = vrot.slane %v1602, %v1617
      %v1620 = vunpack.c.l.s4 1983009808
      %v1621 = vunpack.c.0.s8 %v1620
      %v1622 = vlaneseq
      %v1623 = vshrl.u32 %v1622, 7
      %v1624 = vsub.s32 %v1621, %v1623
      %v1625 = vrot.slane %v1611, %v1624
      %v1626 = vcombine.high %v1618, %v1618
      %v1627 = vcombine.high %v1625, %v1625
      %v1628 = vcombine.high %v1603, %v1603
      %v1630 = vunpack.c.l.s4 1983009808
      %v1631 = vunpack.c.0.s8 %v1630
      %v1632 = vlaneseq
      %v1633 = vshrl.u32 %v1632, 7
      %v1634 = vsub.s32 %v1631, %v1633
      %v1635 = vrot.slane %v1603, %v1634
      %v1637 = vunpack.c.l.s4 1983009808
      %v1638 = vunpack.c.0.s8 %v1637
      %v1639 = vlaneseq
      %v1640 = vshrl.u32 %v1639, 7
      %v1641 = vsub.s32 %v1638, %v1640
      %v1642 = vrot.slane %v1628, %v1641
      %v1643 = vcombine.high %v1635, %v1635
      %1644 = vrot.lane.b32.xlu0 %v1618, 88
      %v1645 = vpop.permute.xlu0 %1644
      %1646 = vrot.lane.b32.xlu0 %v1626, 88
      %v1647 = vpop.permute.xlu0 %1646
      %1648 = vrot.lane.b32.xlu0 %v1625, 88
      %v1649 = vpop.permute.xlu0 %1648
      %1650 = vrot.lane.b32.xlu0 %v1627, 88
      %v1651 = vpop.permute.xlu0 %1650
      %1652 = vrot.lane.b32.xlu0 %v1635, 88
      %v1653 = vpop.permute.xlu0 %1652
      %1654 = vrot.lane.b32.xlu0 %v1643, 88
      %v1655 = vpop.permute.xlu0 %1654
      %1656 = vrot.lane.b32.xlu0 %v1642, 88
      %v1657 = vpop.permute.xlu0 %1656
      %vm1658 = vcmask 719872
      %v1659 = vsel %vm1658, %v1645, %v1647
      %v1660 = vsel %vm1658, %v1647, %v1649
      %v1661 = vsel %vm1658, %v1649, %v1651
      %v1662 = vsel %vm1658, %v1651, %v1653
      %v1663 = vsel %vm1658, %v1653, %v1655
      %v1664 = vsel %vm1658, %v1655, %v1657
      %v1666 = vsel %vm391, %v1608, 0
      %v1669 = vsel %vm395, %v1659, 0
      %v1672 = vsel %vm395, %v1660, 0
      %v1675 = vsel %vm395, %v1661, 0
      %v1678 = vsel %vm395, %v1662, 0
      %v1681 = vsel %vm395, %v1663, 0
      %v1684 = vsel %vm395, %v1664, 0
      %1686 = vmatprep.subr.bf16.mxu0 %v1672
      %1687 = vmatpush1.bf16.msra.mxu0 %v1669
      %1688 = vmatprep.subr.bf16.mxu0 0
      %1689 = vmatpush1.bf16.msra.mxu0 0
      %1690 = vmatprep.subr.bf16.mxu0 0
      %1691 = vmatpush1.bf16.msra.mxu0 0
      %1692 = vmatprep.subr.bf16.mxu0 0
      %1693 = vmatpush1.bf16.msra.mxu0 0
      %1694 = vmatprep.subr.bf16.mxu0 0
      %1695 = vmatpush1.bf16.msra.mxu0 0
      %1696 = vmatprep.subr.bf16.mxu0 0
      %1697 = vmatpush1.bf16.msra.mxu0 0
      %1698 = vmatprep.subr.bf16.mxu0 0
      %1699 = vmatpush1.bf16.msra.mxu0 0
      %1700 = vmatprep.subr.bf16.mxu0 0
      %1701 = vmatpush1.bf16.msra.mxu0 0
      %1702 = vmatprep.subr.bf16.mxu0 0
      %1703 = vmatpush1.bf16.msra.mxu0 0
      %1704 = vmatprep.subr.bf16.mxu0 0
      %1705 = vmatpush1.bf16.msra.mxu0 0
      %1706 = vmatprep.subr.bf16.mxu0 0
      %1707 = vmatpush1.bf16.msra.mxu0 0
      %1708 = vmatprep.subr.bf16.mxu0 0
      %1709 = vmatpush1.bf16.msra.mxu0 0
      %1710 = vmatprep.subr.bf16.mxu0 0
      %1711 = vmatpush1.bf16.msra.mxu0 0
      %1712 = vmatprep.subr.bf16.mxu0 0
      %1713 = vmatpush1.bf16.msra.mxu0 0
      %1714 = vmatprep.subr.bf16.mxu0 0
      %1715 = vmatpush1.bf16.msra.mxu0 0
      %1716 = vmatprep.subr.bf16.mxu0 0
      %1717 = vmatpush1.bf16.msra.mxu0 0
      %1718 = vmatprep.mubr.bf16.mxu0 0
      %1719 = vmatmul.mubr.bf16.gmra.mrb[0].mxu0 %v1666
      %v1720 = vpop.f32.mrb[0].mxu0
      %v1721 = vadd.f32 0.0, %v1720
      %v1722 = vpop.f32.mrb[0].mxu0
      %v1723 = vadd.f32 0.0, %v1722
      %v1724 = vpop.f32.mrb[0].mxu0
      %v1725 = vadd.f32 0.0, %v1724
      %v1726 = vpop.f32.mrb[0].mxu0
      %v1727 = vadd.f32 0.0, %v1726
      %1728 = vdwg.mxu0
      %1729 = vmatprep.subr.bf16.mxu0 %v1678
      %1730 = vmatpush1.bf16.msra.mxu0 %v1675
      %1731 = vmatprep.subr.bf16.mxu0 0
      %1732 = vmatpush1.bf16.msra.mxu0 0
      %1733 = vmatprep.subr.bf16.mxu0 0
      %1734 = vmatpush1.bf16.msra.mxu0 0
      %1735 = vmatprep.subr.bf16.mxu0 0
      %1736 = vmatpush1.bf16.msra.mxu0 0
      %1737 = vmatprep.subr.bf16.mxu0 0
      %1738 = vmatpush1.bf16.msra.mxu0 0
      %1739 = vmatprep.subr.bf16.mxu0 0
      %1740 = vmatpush1.bf16.msra.mxu0 0
      %1741 = vmatprep.subr.bf16.mxu0 0
      %1742 = vmatpush1.bf16.msra.mxu0 0
      %1743 = vmatprep.subr.bf16.mxu0 0
      %1744 = vmatpush1.bf16.msra.mxu0 0
      %1745 = vmatprep.subr.bf16.mxu0 0
      %1746 = vmatpush1.bf16.msra.mxu0 0
      %1747 = vmatprep.subr.bf16.mxu0 0
      %1748 = vmatpush1.bf16.msra.mxu0 0
      %1749 = vmatprep.subr.bf16.mxu0 0
      %1750 = vmatpush1.bf16.msra.mxu0 0
      %1751 = vmatprep.subr.bf16.mxu0 0
      %1752 = vmatpush1.bf16.msra.mxu0 0
      %1753 = vmatprep.subr.bf16.mxu0 0
      %1754 = vmatpush1.bf16.msra.mxu0 0
      %1755 = vmatprep.subr.bf16.mxu0 0
      %1756 = vmatpush1.bf16.msra.mxu0 0
      %1757 = vmatprep.subr.bf16.mxu0 0
      %1758 = vmatpush1.bf16.msra.mxu0 0
      %1759 = vmatprep.subr.bf16.mxu0 0
      %1760 = vmatpush1.bf16.msra.mxu0 0
      %1761 = vmatprep.mubr.bf16.mxu0 0
      %1762 = vmatmul.mubr.bf16.gmra.mrb[0].mxu0 %v1666
      %v1763 = vpop.f32.mrb[0].mxu0
      %v1764 = vadd.f32 0.0, %v1763
      %v1765 = vpop.f32.mrb[0].mxu0
      %v1766 = vadd.f32 0.0, %v1765
      %v1767 = vpop.f32.mrb[0].mxu0
      %v1768 = vadd.f32 0.0, %v1767
      %v1769 = vpop.f32.mrb[0].mxu0
      %v1770 = vadd.f32 0.0, %v1769
      %1771 = vdwg.mxu0
      %1772 = vmatprep.subr.bf16.mxu0 %v1684
      %1773 = vmatpush1.bf16.msra.mxu0 %v1681
      %1774 = vmatprep.subr.bf16.mxu0 0
      %1775 = vmatpush1.bf16.msra.mxu0 0
      %1776 = vmatprep.subr.bf16.mxu0 0
      %1777 = vmatpush1.bf16.msra.mxu0 0
      %1778 = vmatprep.subr.bf16.mxu0 0
      %1779 = vmatpush1.bf16.msra.mxu0 0
      %1780 = vmatprep.subr.bf16.mxu0 0
      %1781 = vmatpush1.bf16.msra.mxu0 0
      %1782 = vmatprep.subr.bf16.mxu0 0
      %1783 = vmatpush1.bf16.msra.mxu0 0
      %1784 = vmatprep.subr.bf16.mxu0 0
      %1785 = vmatpush1.bf16.msra.mxu0 0
      %1786 = vmatprep.subr.bf16.mxu0 0
      %1787 = vmatpush1.bf16.msra.mxu0 0
      %1788 = vmatprep.subr.bf16.mxu0 0
      %1789 = vmatpush1.bf16.msra.mxu0 0
      %1790 = vmatprep.subr.bf16.mxu0 0
      %1791 = vmatpush1.bf16.msra.mxu0 0
      %1792 = vmatprep.subr.bf16.mxu0 0
      %1793 = vmatpush1.bf16.msra.mxu0 0
      %1794 = vmatprep.subr.bf16.mxu0 0
      %1795 = vmatpush1.bf16.msra.mxu0 0
      %1796 = vmatprep.subr.bf16.mxu0 0
      %1797 = vmatpush1.bf16.msra.mxu0 0
      %1798 = vmatprep.subr.bf16.mxu0 0
      %1799 = vmatpush1.bf16.msra.mxu0 0
      %1800 = vmatprep.subr.bf16.mxu0 0
      %1801 = vmatpush1.bf16.msra.mxu0 0
      %1802 = vmatprep.subr.bf16.mxu0 0
      %1803 = vmatpush1.bf16.msra.mxu0 0
      %1804 = vmatprep.mubr.bf16.mxu0 0
      %1805 = vmatmul.mubr.bf16.gmra.mrb[0].mxu0 %v1666
      %v1806 = vpop.f32.mrb[0].mxu0
      %v1807 = vadd.f32 0.0, %v1806
      %v1808 = vpop.f32.mrb[0].mxu0
      %v1809 = vadd.f32 0.0, %v1808
      %v1810 = vpop.f32.mrb[0].mxu0
      %v1811 = vadd.f32 0.0, %v1810
      %v1812 = vpop.f32.mrb[0].mxu0
      %v1813 = vadd.f32 0.0, %v1812
      %1814 = vdwg.mxu0
      %v1815 = vadd.f32 %v1587, %v1721
      %v1816 = vadd.f32 %v1588, %v1723
      %v1817 = vadd.f32 %v1589, %v1764
      %v1818 = vadd.f32 %v1590, %v1766
      %v1819 = vadd.f32 %v1591, %v1807
      %v1820 = vadd.f32 %v1592, %v1809
      %v1821 = vadd.f32 %v1593, %v1725
      %v1822 = vadd.f32 %v1594, %v1727
      %v1823 = vadd.f32 %v1595, %v1768
      %v1824 = vadd.f32 %v1596, %v1770
      %v1825 = vadd.f32 %v1597, %v1811
      %v1826 = vadd.f32 %v1598, %v1813
      %s1827 = scalar_lea.vmem %s1, 56
      %v1828 = vld [vmem:[%s1827] sm:$0xf]
      %v1829 = vld [vmem:[%s1827 + $0x4] sm:$0xf]
      %v1830 = vld [vmem:[%s327] sm:$0xff]
      %v1831 = vld [vmem:[%s327 + $0x8] sm:$0x3f]
      %v1834 = vunpack.c.l.b16 %v1828
      %v1835 = vunpack.c.l.b16 %v1829
      %v1836 = vpack.c.b16 %v1835, %v1834
      %v1839 = vcombine.high %v1830, %v1830
      %v1841 = vunpack.c.l.s4 1983009808
      %v1842 = vunpack.c.0.s8 %v1841
      %v1843 = vlaneseq
      %v1844 = vshrl.u32 %v1843, 7
      %v1845 = vsub.s32 %v1842, %v1844
      %v1846 = vrot.slane %v1830, %v1845
      %v1848 = vunpack.c.l.s4 1983009808
      %v1849 = vunpack.c.0.s8 %v1848
      %v1850 = vlaneseq
      %v1851 = vshrl.u32 %v1850, 7
      %v1852 = vsub.s32 %v1849, %v1851
      %v1853 = vrot.slane %v1839, %v1852
      %v1854 = vcombine.high %v1846, %v1846
      %v1855 = vcombine.high %v1853, %v1853
      %v1856 = vcombine.high %v1831, %v1831
      %v1858 = vunpack.c.l.s4 1983009808
      %v1859 = vunpack.c.0.s8 %v1858
      %v1860 = vlaneseq
      %v1861 = vshrl.u32 %v1860, 7
      %v1862 = vsub.s32 %v1859, %v1861
      %v1863 = vrot.slane %v1831, %v1862
      %v1865 = vunpack.c.l.s4 1983009808
      %v1866 = vunpack.c.0.s8 %v1865
      %v1867 = vlaneseq
      %v1868 = vshrl.u32 %v1867, 7
      %v1869 = vsub.s32 %v1866, %v1868
      %v1870 = vrot.slane %v1856, %v1869
      %v1871 = vcombine.high %v1863, %v1863
      %1872 = vrot.lane.b32.xlu0 %v1846, 87
      %v1873 = vpop.permute.xlu0 %1872
      %1874 = vrot.lane.b32.xlu0 %v1854, 87
      %v1875 = vpop.permute.xlu0 %1874
      %1876 = vrot.lane.b32.xlu0 %v1853, 87
      %v1877 = vpop.permute.xlu0 %1876
      %1878 = vrot.lane.b32.xlu0 %v1855, 87
      %v1879 = vpop.permute.xlu0 %1878
      %1880 = vrot.lane.b32.xlu0 %v1863, 87
      %v1881 = vpop.permute.xlu0 %1880
      %1882 = vrot.lane.b32.xlu0 %v1871, 87
      %v1883 = vpop.permute.xlu0 %1882
      %1884 = vrot.lane.b32.xlu0 %v1870, 87
      %v1885 = vpop.permute.xlu0 %1884
      %vm1886 = vcmask 711680
      %v1887 = vsel %vm1886, %v1873, %v1875
      %v1888 = vsel %vm1886, %v1875, %v1877
      %v1889 = vsel %vm1886, %v1877, %v1879
      %v1890 = vsel %vm1886, %v1879, %v1881
      %v1891 = vsel %vm1886, %v1881, %v1883
      %v1892 = vsel %vm1886, %v1883, %v1885
      %v1894 = vsel %vm391, %v1836, 0
      %v1897 = vsel %vm395, %v1887, 0
      %v1900 = vsel %vm395, %v1888, 0
      %v1903 = vsel %vm395, %v1889, 0
      %v1906 = vsel %vm395, %v1890, 0
      %v1909 = vsel %vm395, %v1891, 0
      %v1912 = vsel %vm395, %v1892, 0
      %1914 = vmatprep.subr.bf16.mxu0 %v1900
      %1915 = vmatpush1.bf16.msra.mxu0 %v1897
      %1916 = vmatprep.subr.bf16.mxu0 0
      %1917 = vmatpush1.bf16.msra.mxu0 0
      %1918 = vmatprep.subr.bf16.mxu0 0
      %1919 = vmatpush1.bf16.msra.mxu0 0
      %1920 = vmatprep.subr.bf16.mxu0 0
      %1921 = vmatpush1.bf16.msra.mxu0 0
      %1922 = vmatprep.subr.bf16.mxu0 0
      %1923 = vmatpush1.bf16.msra.mxu0 0
      %1924 = vmatprep.subr.bf16.mxu0 0
      %1925 = vmatpush1.bf16.msra.mxu0 0
      %1926 = vmatprep.subr.bf16.mxu0 0
      %1927 = vmatpush1.bf16.msra.mxu0 0
      %1928 = vmatprep.subr.bf16.mxu0 0
      %1929 = vmatpush1.bf16.msra.mxu0 0
      %1930 = vmatprep.subr.bf16.mxu0 0
      %1931 = vmatpush1.bf16.msra.mxu0 0
      %1932 = vmatprep.subr.bf16.mxu0 0
      %1933 = vmatpush1.bf16.msra.mxu0 0
      %1934 = vmatprep.subr.bf16.mxu0 0
      %1935 = vmatpush1.bf16.msra.mxu0 0
      %1936 = vmatprep.subr.bf16.mxu0 0
      %1937 = vmatpush1.bf16.msra.mxu0 0
      %1938 = vmatprep.subr.bf16.mxu0 0
      %1939 = vmatpush1.bf16.msra.mxu0 0
      %1940 = vmatprep.subr.bf16.mxu0 0
      %1941 = vmatpush1.bf16.msra.mxu0 0
      %1942 = vmatprep.subr.bf16.mxu0 0
      %1943 = vmatpush1.bf16.msra.mxu0 0
      %1944 = vmatprep.subr.bf16.mxu0 0
      %1945 = vmatpush1.bf16.msra.mxu0 0
      %1946 = vmatprep.mubr.bf16.mxu0 0
      %1947 = vmatmul.mubr.bf16.gmra.mrb[0].mxu0 %v1894
      %v1948 = vpop.f32.mrb[0].mxu0
      %v1949 = vadd.f32 0.0, %v1948
      %v1950 = vpop.f32.mrb[0].mxu0
      %v1951 = vadd.f32 0.0, %v1950
      %v1952 = vpop.f32.mrb[0].mxu0
      %v1953 = vadd.f32 0.0, %v1952
      %v1954 = vpop.f32.mrb[0].mxu0
      %v1955 = vadd.f32 0.0, %v1954
      %1956 = vdwg.mxu0
      %1957 = vmatprep.subr.bf16.mxu0 %v1906
      %1958 = vmatpush1.bf16.msra.mxu0 %v1903
      %1959 = vmatprep.subr.bf16.mxu0 0
      %1960 = vmatpush1.bf16.msra.mxu0 0
      %1961 = vmatprep.subr.bf16.mxu0 0
      %1962 = vmatpush1.bf16.msra.mxu0 0
      %1963 = vmatprep.subr.bf16.mxu0 0
      %1964 = vmatpush1.bf16.msra.mxu0 0
      %1965 = vmatprep.subr.bf16.mxu0 0
      %1966 = vmatpush1.bf16.msra.mxu0 0
      %1967 = vmatprep.subr.bf16.mxu0 0
      %1968 = vmatpush1.bf16.msra.mxu0 0
      %1969 = vmatprep.subr.bf16.mxu0 0
      %1970 = vmatpush1.bf16.msra.mxu0 0
      %1971 = vmatprep.subr.bf16.mxu0 0
      %1972 = vmatpush1.bf16.msra.mxu0 0
      %1973 = vmatprep.subr.bf16.mxu0 0
      %1974 = vmatpush1.bf16.msra.mxu0 0
      %1975 = vmatprep.subr.bf16.mxu0 0
      %1976 = vmatpush1.bf16.msra.mxu0 0
      %1977 = vmatprep.subr.bf16.mxu0 0
      %1978 = vmatpush1.bf16.msra.mxu0 0
      %1979 = vmatprep.subr.bf16.mxu0 0
      %1980 = vmatpush1.bf16.msra.mxu0 0
      %1981 = vmatprep.subr.bf16.mxu0 0
      %1982 = vmatpush1.bf16.msra.mxu0 0
      %1983 = vmatprep.subr.bf16.mxu0 0
      %1984 = vmatpush1.bf16.msra.mxu0 0
      %1985 = vmatprep.subr.bf16.mxu0 0
      %1986 = vmatpush1.bf16.msra.mxu0 0
      %1987 = vmatprep.subr.bf16.mxu0 0
      %1988 = vmatpush1.bf16.msra.mxu0 0
      %1989 = vmatprep.mubr.bf16.mxu0 0
      %1990 = vmatmul.mubr.bf16.gmra.mrb[0].mxu0 %v1894
      %v1991 = vpop.f32.mrb[0].mxu0
      %v1992 = vadd.f32 0.0, %v1991
      %v1993 = vpop.f32.mrb[0].mxu0
      %v1994 = vadd.f32 0.0, %v1993
      %v1995 = vpop.f32.mrb[0].mxu0
      %v1996 = vadd.f32 0.0, %v1995
      %v1997 = vpop.f32.mrb[0].mxu0
      %v1998 = vadd.f32 0.0, %v1997
      %1999 = vdwg.mxu0
      %2000 = vmatprep.subr.bf16.mxu0 %v1912
      %2001 = vmatpush1.bf16.msra.mxu0 %v1909
      %2002 = vmatprep.subr.bf16.mxu0 0
      %2003 = vmatpush1.bf16.msra.mxu0 0
      %2004 = vmatprep.subr.bf16.mxu0 0
      %2005 = vmatpush1.bf16.msra.mxu0 0
      %2006 = vmatprep.subr.bf16.mxu0 0
      %2007 = vmatpush1.bf16.msra.mxu0 0
      %2008 = vmatprep.subr.bf16.mxu0 0
      %2009 = vmatpush1.bf16.msra.mxu0 0
      %2010 = vmatprep.subr.bf16.mxu0 0
      %2011 = vmatpush1.bf16.msra.mxu0 0
      %2012 = vmatprep.subr.bf16.mxu0 0
      %2013 = vmatpush1.bf16.msra.mxu0 0
      %2014 = vmatprep.subr.bf16.mxu0 0
      %2015 = vmatpush1.bf16.msra.mxu0 0
      %2016 = vmatprep.subr.bf16.mxu0 0
      %2017 = vmatpush1.bf16.msra.mxu0 0
      %2018 = vmatprep.subr.bf16.mxu0 0
      %2019 = vmatpush1.bf16.msra.mxu0 0
      %2020 = vmatprep.subr.bf16.mxu0 0
      %2021 = vmatpush1.bf16.msra.mxu0 0
      %2022 = vmatprep.subr.bf16.mxu0 0
      %2023 = vmatpush1.bf16.msra.mxu0 0
      %2024 = vmatprep.subr.bf16.mxu0 0
      %2025 = vmatpush1.bf16.msra.mxu0 0
      %2026 = vmatprep.subr.bf16.mxu0 0
      %2027 = vmatpush1.bf16.msra.mxu0 0
      %2028 = vmatprep.subr.bf16.mxu0 0
      %2029 = vmatpush1.bf16.msra.mxu0 0
      %2030 = vmatprep.subr.bf16.mxu0 0
      %2031 = vmatpush1.bf16.msra.mxu0 0
      %2032 = vmatprep.mubr.bf16.mxu0 0
      %2033 = vmatmul.mubr.bf16.gmra.mrb[0].mxu0 %v1894
      %v2034 = vpop.f32.mrb[0].mxu0
      %v2035 = vadd.f32 0.0, %v2034
      %v2036 = vpop.f32.mrb[0].mxu0
      %v2037 = vadd.f32 0.0, %v2036
      %v2038 = vpop.f32.mrb[0].mxu0
      %v2039 = vadd.f32 0.0, %v2038
      %v2040 = vpop.f32.mrb[0].mxu0
      %v2041 = vadd.f32 0.0, %v2040
      %2042 = vdwg.mxu0
      %v2043 = vadd.f32 %v1815, %v1949
      %v2044 = vadd.f32 %v1816, %v1951
      %v2045 = vadd.f32 %v1817, %v1992
      %v2046 = vadd.f32 %v1818, %v1994
      %v2047 = vadd.f32 %v1819, %v2035
      %v2048 = vadd.f32 %v1820, %v2037
      %v2049 = vadd.f32 %v1821, %v1953
      %v2050 = vadd.f32 %v1822, %v1955
      %v2051 = vadd.f32 %v1823, %v1996
      %v2052 = vadd.f32 %v1824, %v1998
      %v2053 = vadd.f32 %v1825, %v2039
      %v2054 = vadd.f32 %v1826, %v2041
      %s2055 = scalar_lea.vmem %s1, 64
      %v2056 = vld [vmem:[%s2055] sm:$0xf]
      %v2057 = vld [vmem:[%s2055 + $0x4] sm:$0xf]
      %v2058 = vld [vmem:[%s327] sm:$0xff]
      %v2059 = vld [vmem:[%s327 + $0x8] sm:$0x3f]
      %v2062 = vunpack.c.l.b16 %v2056
      %v2063 = vunpack.c.l.b16 %v2057
      %v2064 = vpack.c.b16 %v2063, %v2062
      %v2067 = vcombine.high %v2058, %v2058
      %v2069 = vunpack.c.l.s4 1983009808
      %v2070 = vunpack.c.0.s8 %v2069
      %v2071 = vlaneseq
      %v2072 = vshrl.u32 %v2071, 7
      %v2073 = vsub.s32 %v2070, %v2072
      %v2074 = vrot.slane %v2058, %v2073
      %v2076 = vunpack.c.l.s4 1983009808
      %v2077 = vunpack.c.0.s8 %v2076
      %v2078 = vlaneseq
      %v2079 = vshrl.u32 %v2078, 7
      %v2080 = vsub.s32 %v2077, %v2079
      %v2081 = vrot.slane %v2067, %v2080
      %v2082 = vcombine.high %v2074, %v2074
      %v2083 = vcombine.high %v2081, %v2081
      %v2084 = vcombine.high %v2059, %v2059
      %v2086 = vunpack.c.l.s4 1983009808
      %v2087 = vunpack.c.0.s8 %v2086
      %v2088 = vlaneseq
      %v2089 = vshrl.u32 %v2088, 7
      %v2090 = vsub.s32 %v2087, %v2089
      %v2091 = vrot.slane %v2059, %v2090
      %v2093 = vunpack.c.l.s4 1983009808
      %v2094 = vunpack.c.0.s8 %v2093
      %v2095 = vlaneseq
      %v2096 = vshrl.u32 %v2095, 7
      %v2097 = vsub.s32 %v2094, %v2096
      %v2098 = vrot.slane %v2084, %v2097
      %v2099 = vcombine.high %v2091, %v2091
      %2100 = vrot.lane.b32.xlu0 %v2074, 86
      %v2101 = vpop.permute.xlu0 %2100
      %2102 = vrot.lane.b32.xlu0 %v2082, 86
      %v2103 = vpop.permute.xlu0 %2102
      %2104 = vrot.lane.b32.xlu0 %v2081, 86
      %v2105 = vpop.permute.xlu0 %2104
      %2106 = vrot.lane.b32.xlu0 %v2083, 86
      %v2107 = vpop.permute.xlu0 %2106
      %2108 = vrot.lane.b32.xlu0 %v2091, 86
      %v2109 = vpop.permute.xlu0 %2108
      %2110 = vrot.lane.b32.xlu0 %v2099, 86
      %v2111 = vpop.permute.xlu0 %2110
      %2112 = vrot.lane.b32.xlu0 %v2098, 86
      %v2113 = vpop.permute.xlu0 %2112
      %vm2114 = vcmask 703488
      %v2115 = vsel %vm2114, %v2101, %v2103
      %v2116 = vsel %vm2114, %v2103, %v2105
      %v2117 = vsel %vm2114, %v2105, %v2107
      %v2118 = vsel %vm2114, %v2107, %v2109
      %v2119 = vsel %vm2114, %v2109, %v2111
      %v2120 = vsel %vm2114, %v2111, %v2113
      %v2122 = vsel %vm391, %v2064, 0
      %v2125 = vsel %vm395, %v2115, 0
      %v2128 = vsel %vm395, %v2116, 0
      %v2131 = vsel %vm395, %v2117, 0
      %v2134 = vsel %vm395, %v2118, 0
      %v2137 = vsel %vm395, %v2119, 0
      %v2140 = vsel %vm395, %v2120, 0
      %2142 = vmatprep.subr.bf16.mxu0 %v2128
      %2143 = vmatpush1.bf16.msra.mxu0 %v2125
      %2144 = vmatprep.subr.bf16.mxu0 0
      %2145 = vmatpush1.bf16.msra.mxu0 0
      %2146 = vmatprep.subr.bf16.mxu0 0
      %2147 = vmatpush1.bf16.msra.mxu0 0
      %2148 = vmatprep.subr.bf16.mxu0 0
      %2149 = vmatpush1.bf16.msra.mxu0 0
      %2150 = vmatprep.subr.bf16.mxu0 0
      %2151 = vmatpush1.bf16.msra.mxu0 0
      %2152 = vmatprep.subr.bf16.mxu0 0
      %2153 = vmatpush1.bf16.msra.mxu0 0
      %2154 = vmatprep.subr.bf16.mxu0 0
      %2155 = vmatpush1.bf16.msra.mxu0 0
      %2156 = vmatprep.subr.bf16.mxu0 0
      %2157 = vmatpush1.bf16.msra.mxu0 0
      %2158 = vmatprep.subr.bf16.mxu0 0
      %2159 = vmatpush1.bf16.msra.mxu0 0
      %2160 = vmatprep.subr.bf16.mxu0 0
      %2161 = vmatpush1.bf16.msra.mxu0 0
      %2162 = vmatprep.subr.bf16.mxu0 0
      %2163 = vmatpush1.bf16.msra.mxu0 0
      %2164 = vmatprep.subr.bf16.mxu0 0
      %2165 = vmatpush1.bf16.msra.mxu0 0
      %2166 = vmatprep.subr.bf16.mxu0 0
      %2167 = vmatpush1.bf16.msra.mxu0 0
      %2168 = vmatprep.subr.bf16.mxu0 0
      %2169 = vmatpush1.bf16.msra.mxu0 0
      %2170 = vmatprep.subr.bf16.mxu0 0
      %2171 = vmatpush1.bf16.msra.mxu0 0
      %2172 = vmatprep.subr.bf16.mxu0 0
      %2173 = vmatpush1.bf16.msra.mxu0 0
      %2174 = vmatprep.mubr.bf16.mxu0 0
      %2175 = vmatmul.mubr.bf16.gmra.mrb[0].mxu0 %v2122
      %v2176 = vpop.f32.mrb[0].mxu0
      %v2177 = vadd.f32 0.0, %v2176
      %v2178 = vpop.f32.mrb[0].mxu0
      %v2179 = vadd.f32 0.0, %v2178
      %v2180 = vpop.f32.mrb[0].mxu0
      %v2181 = vadd.f32 0.0, %v2180
      %v2182 = vpop.f32.mrb[0].mxu0
      %v2183 = vadd.f32 0.0, %v2182
      %2184 = vdwg.mxu0
      %2185 = vmatprep.subr.bf16.mxu0 %v2134
      %2186 = vmatpush1.bf16.msra.mxu0 %v2131
      %2187 = vmatprep.subr.bf16.mxu0 0
      %2188 = vmatpush1.bf16.msra.mxu0 0
      %2189 = vmatprep.subr.bf16.mxu0 0
      %2190 = vmatpush1.bf16.msra.mxu0 0
      %2191 = vmatprep.subr.bf16.mxu0 0
      %2192 = vmatpush1.bf16.msra.mxu0 0
      %2193 = vmatprep.subr.bf16.mxu0 0
      %2194 = vmatpush1.bf16.msra.mxu0 0
      %2195 = vmatprep.subr.bf16.mxu0 0
      %2196 = vmatpush1.bf16.msra.mxu0 0
      %2197 = vmatprep.subr.bf16.mxu0 0
      %2198 = vmatpush1.bf16.msra.mxu0 0
      %2199 = vmatprep.subr.bf16.mxu0 0
      %2200 = vmatpush1.bf16.msra.mxu0 0
      %2201 = vmatprep.subr.bf16.mxu0 0
      %2202 = vmatpush1.bf16.msra.mxu0 0
      %2203 = vmatprep.subr.bf16.mxu0 0
      %2204 = vmatpush1.bf16.msra.mxu0 0
      %2205 = vmatprep.subr.bf16.mxu0 0
      %2206 = vmatpush1.bf16.msra.mxu0 0
      %2207 = vmatprep.subr.bf16.mxu0 0
      %2208 = vmatpush1.bf16.msra.mxu0 0
      %2209 = vmatprep.subr.bf16.mxu0 0
      %2210 = vmatpush1.bf16.msra.mxu0 0
      %2211 = vmatprep.subr.bf16.mxu0 0
      %2212 = vmatpush1.bf16.msra.mxu0 0
      %2213 = vmatprep.subr.bf16.mxu0 0
      %2214 = vmatpush1.bf16.msra.mxu0 0
      %2215 = vmatprep.subr.bf16.mxu0 0
      %2216 = vmatpush1.bf16.msra.mxu0 0
      %2217 = vmatprep.mubr.bf16.mxu0 0
      %2218 = vmatmul.mubr.bf16.gmra.mrb[0].mxu0 %v2122
      %v2219 = vpop.f32.mrb[0].mxu0
      %v2220 = vadd.f32 0.0, %v2219
      %v2221 = vpop.f32.mrb[0].mxu0
      %v2222 = vadd.f32 0.0, %v2221
      %v2223 = vpop.f32.mrb[0].mxu0
      %v2224 = vadd.f32 0.0, %v2223
      %v2225 = vpop.f32.mrb[0].mxu0
      %v2226 = vadd.f32 0.0, %v2225
      %2227 = vdwg.mxu0
      %2228 = vmatprep.subr.bf16.mxu0 %v2140
      %2229 = vmatpush1.bf16.msra.mxu0 %v2137
      %2230 = vmatprep.subr.bf16.mxu0 0
      %2231 = vmatpush1.bf16.msra.mxu0 0
      %2232 = vmatprep.subr.bf16.mxu0 0
      %2233 = vmatpush1.bf16.msra.mxu0 0
      %2234 = vmatprep.subr.bf16.mxu0 0
      %2235 = vmatpush1.bf16.msra.mxu0 0
      %2236 = vmatprep.subr.bf16.mxu0 0
      %2237 = vmatpush1.bf16.msra.mxu0 0
      %2238 = vmatprep.subr.bf16.mxu0 0
      %2239 = vmatpush1.bf16.msra.mxu0 0
      %2240 = vmatprep.subr.bf16.mxu0 0
      %2241 = vmatpush1.bf16.msra.mxu0 0
      %2242 = vmatprep.subr.bf16.mxu0 0
      %2243 = vmatpush1.bf16.msra.mxu0 0
      %2244 = vmatprep.subr.bf16.mxu0 0
      %2245 = vmatpush1.bf16.msra.mxu0 0
      %2246 = vmatprep.subr.bf16.mxu0 0
      %2247 = vmatpush1.bf16.msra.mxu0 0
      %2248 = vmatprep.subr.bf16.mxu0 0
      %2249 = vmatpush1.bf16.msra.mxu0 0
      %2250 = vmatprep.subr.bf16.mxu0 0
      %2251 = vmatpush1.bf16.msra.mxu0 0
      %2252 = vmatprep.subr.bf16.mxu0 0
      %2253 = vmatpush1.bf16.msra.mxu0 0
      %2254 = vmatprep.subr.bf16.mxu0 0
      %2255 = vmatpush1.bf16.msra.mxu0 0
      %2256 = vmatprep.subr.bf16.mxu0 0
      %2257 = vmatpush1.bf16.msra.mxu0 0
      %2258 = vmatprep.subr.bf16.mxu0 0
      %2259 = vmatpush1.bf16.msra.mxu0 0
      %2260 = vmatprep.mubr.bf16.mxu0 0
      %2261 = vmatmul.mubr.bf16.gmra.mrb[0].mxu0 %v2122
      %v2262 = vpop.f32.mrb[0].mxu0
      %v2263 = vadd.f32 0.0, %v2262
      %v2264 = vpop.f32.mrb[0].mxu0
      %v2265 = vadd.f32 0.0, %v2264
      %v2266 = vpop.f32.mrb[0].mxu0
      %v2267 = vadd.f32 0.0, %v2266
      %v2268 = vpop.f32.mrb[0].mxu0
      %v2269 = vadd.f32 0.0, %v2268
      %2270 = vdwg.mxu0
      %v2271 = vadd.f32 %v2043, %v2177
      %v2272 = vadd.f32 %v2044, %v2179
      %v2273 = vadd.f32 %v2045, %v2220
      %v2274 = vadd.f32 %v2046, %v2222
      %v2275 = vadd.f32 %v2047, %v2263
      %v2276 = vadd.f32 %v2048, %v2265
      %v2277 = vadd.f32 %v2049, %v2181
      %v2278 = vadd.f32 %v2050, %v2183
      %v2279 = vadd.f32 %v2051, %v2224
      %v2280 = vadd.f32 %v2052, %v2226
      %v2281 = vadd.f32 %v2053, %v2267
      %v2282 = vadd.f32 %v2054, %v2269
      %v2283 = vld [vmem:[%s2] sm:$0xff]
      %v2284 = vld [vmem:[%s2 + $0x8] sm:$0xff]
      %2286 = vset.pattern.permute.xlu0 0
      %2287 = vperm.xlu0 %2286, %v2283
      %v2288 = vpop.permute.xlu0 %2287
      %2291 = vset.pattern.permute.xlu0 0
      %2292 = vperm.xlu0 %2291, %v2284
      %v2293 = vpop.permute.xlu0 %2292
      %v2295 = vadd.f32 %v2271, %v2288
      %v2296 = vadd.f32 %v2272, %v2288
      %v2297 = vadd.f32 %v2273, %v2288
      %v2298 = vadd.f32 %v2274, %v2288
      %v2299 = vadd.f32 %v2275, %v2288
      %v2300 = vadd.f32 %v2276, %v2288
      %v2301 = vadd.f32 %v2277, %v2293
      %v2302 = vadd.f32 %v2278, %v2293
      %v2303 = vadd.f32 %v2279, %v2293
      %v2304 = vadd.f32 %v2280, %v2293
      %v2305 = vadd.f32 %v2281, %v2293
      %v2306 = vadd.f32 %v2282, %v2293
      %v2307 = vmax.f32 %v2295, 0.0
      %v2308 = vmax.f32 %v2296, 0.0
      %v2309 = vmax.f32 %v2297, 0.0
      %v2310 = vmax.f32 %v2298, 0.0
      %v2311 = vmax.f32 %v2299, 0.0
      %v2312 = vmax.f32 %v2300, 0.0
      %v2313 = vmax.f32 %v2301, 0.0
      %v2314 = vmax.f32 %v2302, 0.0
      %v2315 = vmax.f32 %v2303, 0.0
      %v2316 = vmax.f32 %v2304, 0.0
      %v2317 = vmax.f32 %v2305, 0.0
      %v2318 = vmax.f32 %v2306, 0.0
      %v2319 = vld [vmem:[%s7] sm:$0x3f]
      %v2321 = vlaneseq
      %v2322 = vshrl.u32 %v2321, 7
      %v2323 = vsub.s32 0, %v2322
      %v2324 = vrot.slane %v2319, %v2323
      %v2325 = vlaneseq
      %v2326 = vshrl.u32 %v2325, 7
      %v2327 = vsub.s32 1, %v2326
      %v2328 = vrot.slane %v2319, %v2327
      %v2329 = vlaneseq
      %v2330 = vshrl.u32 %v2329, 7
      %v2331 = vsub.s32 2, %v2330
      %v2332 = vrot.slane %v2319, %v2331
      %v2333 = vlaneseq
      %v2334 = vshrl.u32 %v2333, 7
      %v2335 = vsub.s32 3, %v2334
      %v2336 = vrot.slane %v2319, %v2335
      %v2337 = vlaneseq
      %v2338 = vshrl.u32 %v2337, 7
      %v2339 = vsub.s32 4, %v2338
      %v2340 = vrot.slane %v2319, %v2339
      %v2341 = vlaneseq
      %v2342 = vshrl.u32 %v2341, 7
      %v2343 = vsub.s32 5, %v2342
      %v2344 = vrot.slane %v2319, %v2343
      %v2351 = vmul.f32 %v2307, %v2324
      %v2352 = vmul.f32 %v2308, %v2328
      %v2353 = vmul.f32 %v2309, %v2332
      %v2354 = vmul.f32 %v2310, %v2336
      %v2355 = vmul.f32 %v2311, %v2340
      %v2356 = vmul.f32 %v2312, %v2344
      %v2357 = vmul.f32 %v2313, %v2324
      %v2358 = vmul.f32 %v2314, %v2328
      %v2359 = vmul.f32 %v2315, %v2332
      %v2360 = vmul.f32 %v2316, %v2336
      %v2361 = vmul.f32 %v2317, %v2340
      %v2362 = vmul.f32 %v2318, %v2344
      %v2363 = vpack.c.bf16 %v2357, %v2351
      %v2364 = vpack.c.bf16 %v2358, %v2352
      %v2365 = vpack.c.bf16 %v2359, %v2353
      %v2366 = vpack.c.bf16 %v2360, %v2354
      %v2367 = vpack.c.bf16 %v2361, %v2355
      %v2368 = vpack.c.bf16 %v2362, %v2356
      %2369 = vst [vmem:[#allocation2] sm:$0xff] %v2363
      %2370 = vst [vmem:[#allocation2 + $0x8] sm:$0xff] %v2364
      %2371 = vst [vmem:[#allocation2 + $0x10] sm:$0xff] %v2365
      %2372 = vst [vmem:[#allocation2 + $0x18] sm:$0xff] %v2366
      %2373 = vst [vmem:[#allocation2 + $0x20] sm:$0xff] %v2367
      %vm2374 = vcmask 965632
      %2375 = vst.msk [vmem:[#allocation2 + $0x28] sm:$0xff] %vm2374, %v2368
      %v2376 = vld [vmem:[%s3] sm:$0xf]
      %v2377 = vld [vmem:[%s3 + $0x4] sm:$0xf]
      %v2378 = vld [vmem:[%s3 + $0x8] sm:$0xf]
      %v2379 = vld [vmem:[%s3 + $0xc] sm:$0xf]
      %v2380 = vld [vmem:[#allocation2] sm:$0xff]
      %v2381 = vld [vmem:[#allocation2 + $0x8] sm:$0xff]
      %v2382 = vld [vmem:[#allocation2 + $0x10] sm:$0xff]
      %v2383 = vld [vmem:[#allocation2 + $0x18] sm:$0xff]
      %v2384 = vld [vmem:[#allocation2 + $0x20] sm:$0xff]
      %v2385 = vld [vmem:[#allocation2 + $0x28] sm:$0xff]
      %s2386 = scalar_lea.vmem %s3, 16
      %v2387 = vld [vmem:[%s2386] sm:$0xf]
      %v2388 = vld [vmem:[%s2386 + $0x4] sm:$0xf]
      %v2389 = vld [vmem:[%s2386 + $0x8] sm:$0xf]
      %v2390 = vld [vmem:[%s2386 + $0xc] sm:$0xf]
      %v2395 = vunpack.c.l.b16 %v2387
      %v2396 = vunpack.c.l.b16 %v2388
      %v2397 = vunpack.c.l.b16 %v2389
      %v2398 = vunpack.c.l.b16 %v2390
      %v2399 = vpack.c.b16 %v2396, %v2395
      %v2400 = vpack.c.b16 %v2398, %v2397
      %2407 = vrot.lane.b32.xlu0 %v2380, 127
      %v2408 = vpop.permute.xlu0 %2407
      %2409 = vrot.lane.b32.xlu0 %v2381, 127
      %v2410 = vpop.permute.xlu0 %2409
      %2411 = vrot.lane.b32.xlu0 %v2382, 127
      %v2412 = vpop.permute.xlu0 %2411
      %2413 = vrot.lane.b32.xlu0 %v2383, 127
      %v2414 = vpop.permute.xlu0 %2413
      %2415 = vrot.lane.b32.xlu0 %v2384, 127
      %v2416 = vpop.permute.xlu0 %2415
      %2417 = vrot.lane.b32.xlu0 %v2385, 127
      %v2418 = vpop.permute.xlu0 %2417
      %v2419 = vsel %vm385, %v2408, %v2410
      %v2420 = vsel %vm385, %v2410, %v2412
      %v2421 = vsel %vm385, %v2412, %v2414
      %v2422 = vsel %vm385, %v2414, %v2416
      %v2423 = vsel %vm385, %v2416, %v2418
      %vm2430 = vcmask 130048
      %v2432 = vsel %vm2430, %v2399, 0
      %v2435 = vsel %vm2430, %v2400, 0
      %2437 = vmatprep.subr.bf16.mxu0 %v2420
      %2438 = vmatpush1.bf16.msra.mxu0 %v2419
      %2439 = vmatprep.subr.bf16.mxu0 0
      %2440 = vmatpush1.bf16.msra.mxu0 0
      %2441 = vmatprep.subr.bf16.mxu0 0
      %2442 = vmatpush1.bf16.msra.mxu0 0
      %2443 = vmatprep.subr.bf16.mxu0 0
      %2444 = vmatpush1.bf16.msra.mxu0 0
      %2445 = vmatprep.subr.bf16.mxu0 0
      %2446 = vmatpush1.bf16.msra.mxu0 0
      %2447 = vmatprep.subr.bf16.mxu0 0
      %2448 = vmatpush1.bf16.msra.mxu0 0
      %2449 = vmatprep.subr.bf16.mxu0 0
      %2450 = vmatpush1.bf16.msra.mxu0 0
      %2451 = vmatprep.subr.bf16.mxu0 0
      %2452 = vmatpush1.bf16.msra.mxu0 0
      %2453 = vmatprep.subr.bf16.mxu0 0
      %2454 = vmatpush1.bf16.msra.mxu0 0
      %2455 = vmatprep.subr.bf16.mxu0 0
      %2456 = vmatpush1.bf16.msra.mxu0 0
      %2457 = vmatprep.subr.bf16.mxu0 0
      %2458 = vmatpush1.bf16.msra.mxu0 0
      %2459 = vmatprep.subr.bf16.mxu0 0
      %2460 = vmatpush1.bf16.msra.mxu0 0
      %2461 = vmatprep.subr.bf16.mxu0 0
      %2462 = vmatpush1.bf16.msra.mxu0 0
      %2463 = vmatprep.subr.bf16.mxu0 0
      %2464 = vmatpush1.bf16.msra.mxu0 0
      %2465 = vmatprep.subr.bf16.mxu0 0
      %2466 = vmatpush1.bf16.msra.mxu0 0
      %2467 = vmatprep.subr.bf16.mxu0 0
      %2468 = vmatpush1.bf16.msra.mxu0 0
      %2469 = vmatprep.mubr.bf16.mxu0 0
      %2470 = vmatmul.mubr.bf16.gmra.mrb[0].mxu0 %v2432
      %v2471 = vpop.f32.mrb[0].mxu0
      %v2472 = vadd.f32 0.0, %v2471
      %v2473 = vpop.f32.mrb[0].mxu0
      %v2474 = vadd.f32 0.0, %v2473
      %v2475 = vpop.f32.mrb[0].mxu0
      %v2476 = vadd.f32 0.0, %v2475
      %v2477 = vpop.f32.mrb[0].mxu0
      %v2478 = vadd.f32 0.0, %v2477
      %2479 = vmatprep.mubr.bf16.mxu0 0
      %2480 = vmatmul.mubr.bf16.gmra.mrb[0].mxu0 %v2435
      %v2481 = vpop.f32.mrb[0].mxu0
      %v2482 = vadd.f32 0.0, %v2481
      %v2483 = vpop.f32.mrb[0].mxu0
      %v2484 = vadd.f32 0.0, %v2483
      %v2485 = vpop.f32.mrb[0].mxu0
      %v2486 = vadd.f32 0.0, %v2485
      %v2487 = vpop.f32.mrb[0].mxu0
      %v2488 = vadd.f32 0.0, %v2487
      %2489 = vdwg.mxu0
      %2490 = vmatprep.subr.bf16.mxu0 %v2422
      %2491 = vmatpush1.bf16.msra.mxu0 %v2421
      %2492 = vmatprep.subr.bf16.mxu0 0
      %2493 = vmatpush1.bf16.msra.mxu0 0
      %2494 = vmatprep.subr.bf16.mxu0 0
      %2495 = vmatpush1.bf16.msra.mxu0 0
      %2496 = vmatprep.subr.bf16.mxu0 0
      %2497 = vmatpush1.bf16.msra.mxu0 0
      %2498 = vmatprep.subr.bf16.mxu0 0
      %2499 = vmatpush1.bf16.msra.mxu0 0
      %2500 = vmatprep.subr.bf16.mxu0 0
      %2501 = vmatpush1.bf16.msra.mxu0 0
      %2502 = vmatprep.subr.bf16.mxu0 0
      %2503 = vmatpush1.bf16.msra.mxu0 0
      %2504 = vmatprep.subr.bf16.mxu0 0
      %2505 = vmatpush1.bf16.msra.mxu0 0
      %2506 = vmatprep.subr.bf16.mxu0 0
      %2507 = vmatpush1.bf16.msra.mxu0 0
      %2508 = vmatprep.subr.bf16.mxu0 0
      %2509 = vmatpush1.bf16.msra.mxu0 0
      %2510 = vmatprep.subr.bf16.mxu0 0
      %2511 = vmatpush1.bf16.msra.mxu0 0
      %2512 = vmatprep.subr.bf16.mxu0 0
      %2513 = vmatpush1.bf16.msra.mxu0 0
      %2514 = vmatprep.subr.bf16.mxu0 0
      %2515 = vmatpush1.bf16.msra.mxu0 0
      %2516 = vmatprep.subr.bf16.mxu0 0
      %2517 = vmatpush1.bf16.msra.mxu0 0
      %2518 = vmatprep.subr.bf16.mxu0 0
      %2519 = vmatpush1.bf16.msra.mxu0 0
      %2520 = vmatprep.subr.bf16.mxu0 0
      %2521 = vmatpush1.bf16.msra.mxu0 0
      %2522 = vmatprep.mubr.bf16.mxu0 0
      %2523 = vmatmul.mubr.bf16.gmra.mrb[0].mxu0 %v2432
      %v2524 = vpop.f32.mrb[0].mxu0
      %v2525 = vadd.f32 0.0, %v2524
      %v2526 = vpop.f32.mrb[0].mxu0
      %v2527 = vadd.f32 0.0, %v2526
      %v2528 = vpop.f32.mrb[0].mxu0
      %v2529 = vadd.f32 0.0, %v2528
      %v2530 = vpop.f32.mrb[0].mxu0
      %v2531 = vadd.f32 0.0, %v2530
      %2532 = vmatprep.mubr.bf16.mxu0 0
      %2533 = vmatmul.mubr.bf16.gmra.mrb[0].mxu0 %v2435
      %v2534 = vpop.f32.mrb[0].mxu0
      %v2535 = vadd.f32 0.0, %v2534
      %v2536 = vpop.f32.mrb[0].mxu0
      %v2537 = vadd.f32 0.0, %v2536
      %v2538 = vpop.f32.mrb[0].mxu0
      %v2539 = vadd.f32 0.0, %v2538
      %v2540 = vpop.f32.mrb[0].mxu0
      %v2541 = vadd.f32 0.0, %v2540
      %2542 = vdwg.mxu0
      %2543 = vmatprep.subr.bf16.mxu0 %v2418
      %2544 = vmatpush1.bf16.msra.mxu0 %v2423
      %2545 = vmatprep.subr.bf16.mxu0 0
      %2546 = vmatpush1.bf16.msra.mxu0 0
      %2547 = vmatprep.subr.bf16.mxu0 0
      %2548 = vmatpush1.bf16.msra.mxu0 0
      %2549 = vmatprep.subr.bf16.mxu0 0
      %2550 = vmatpush1.bf16.msra.mxu0 0
      %2551 = vmatprep.subr.bf16.mxu0 0
      %2552 = vmatpush1.bf16.msra.mxu0 0
      %2553 = vmatprep.subr.bf16.mxu0 0
      %2554 = vmatpush1.bf16.msra.mxu0 0
      %2555 = vmatprep.subr.bf16.mxu0 0
      %2556 = vmatpush1.bf16.msra.mxu0 0
      %2557 = vmatprep.subr.bf16.mxu0 0
      %2558 = vmatpush1.bf16.msra.mxu0 0
      %2559 = vmatprep.subr.bf16.mxu0 0
      %2560 = vmatpush1.bf16.msra.mxu0 0
      %2561 = vmatprep.subr.bf16.mxu0 0
      %2562 = vmatpush1.bf16.msra.mxu0 0
      %2563 = vmatprep.subr.bf16.mxu0 0
      %2564 = vmatpush1.bf16.msra.mxu0 0
      %2565 = vmatprep.subr.bf16.mxu0 0
      %2566 = vmatpush1.bf16.msra.mxu0 0
      %2567 = vmatprep.subr.bf16.mxu0 0
      %2568 = vmatpush1.bf16.msra.mxu0 0
      %2569 = vmatprep.subr.bf16.mxu0 0
      %2570 = vmatpush1.bf16.msra.mxu0 0
      %2571 = vmatprep.subr.bf16.mxu0 0
      %2572 = vmatpush1.bf16.msra.mxu0 0
      %2573 = vmatprep.subr.bf16.mxu0 0
      %2574 = vmatpush1.bf16.msra.mxu0 0
      %2575 = vmatprep.mubr.bf16.mxu0 0
      %2576 = vmatmul.mubr.bf16.gmra.mrb[0].mxu0 %v2432
      %v2577 = vpop.f32.mrb[0].mxu0
      %v2578 = vadd.f32 0.0, %v2577
      %v2579 = vpop.f32.mrb[0].mxu0
      %v2580 = vadd.f32 0.0, %v2579
      %v2581 = vpop.f32.mrb[0].mxu0
      %v2582 = vadd.f32 0.0, %v2581
      %v2583 = vpop.f32.mrb[0].mxu0
      %v2584 = vadd.f32 0.0, %v2583
      %2585 = vmatprep.mubr.bf16.mxu0 0
      %2586 = vmatmul.mubr.bf16.gmra.mrb[0].mxu0 %v2435
      %v2587 = vpop.f32.mrb[0].mxu0
      %v2588 = vadd.f32 0.0, %v2587
      %v2589 = vpop.f32.mrb[0].mxu0
      %v2590 = vadd.f32 0.0, %v2589
      %v2591 = vpop.f32.mrb[0].mxu0
      %v2592 = vadd.f32 0.0, %v2591
      %v2593 = vpop.f32.mrb[0].mxu0
      %v2594 = vadd.f32 0.0, %v2593
      %2595 = vdwg.mxu0
      %v2600 = vunpack.c.l.b16 %v2376
      %v2601 = vunpack.c.l.b16 %v2377
      %v2602 = vunpack.c.l.b16 %v2378
      %v2603 = vunpack.c.l.b16 %v2379
      %v2604 = vpack.c.b16 %v2601, %v2600
      %v2605 = vpack.c.b16 %v2603, %v2602
      %v2607 = vsel %vm2430, %v2604, 0
      %v2610 = vsel %vm2430, %v2605, 0
      %2612 = vmatprep.subr.bf16.mxu0 %v2381
      %2613 = vmatpush1.bf16.msra.mxu0 %v2380
      %2614 = vmatprep.subr.bf16.mxu0 0
      %2615 = vmatpush1.bf16.msra.mxu0 0
      %2616 = vmatprep.subr.bf16.mxu0 0
      %2617 = vmatpush1.bf16.msra.mxu0 0
      %2618 = vmatprep.subr.bf16.mxu0 0
      %2619 = vmatpush1.bf16.msra.mxu0 0
      %2620 = vmatprep.subr.bf16.mxu0 0
      %2621 = vmatpush1.bf16.msra.mxu0 0
      %2622 = vmatprep.subr.bf16.mxu0 0
      %2623 = vmatpush1.bf16.msra.mxu0 0
      %2624 = vmatprep.subr.bf16.mxu0 0
      %2625 = vmatpush1.bf16.msra.mxu0 0
      %2626 = vmatprep.subr.bf16.mxu0 0
      %2627 = vmatpush1.bf16.msra.mxu0 0
      %2628 = vmatprep.subr.bf16.mxu0 0
      %2629 = vmatpush1.bf16.msra.mxu0 0
      %2630 = vmatprep.subr.bf16.mxu0 0
      %2631 = vmatpush1.bf16.msra.mxu0 0
      %2632 = vmatprep.subr.bf16.mxu0 0
      %2633 = vmatpush1.bf16.msra.mxu0 0
      %2634 = vmatprep.subr.bf16.mxu0 0
      %2635 = vmatpush1.bf16.msra.mxu0 0
      %2636 = vmatprep.subr.bf16.mxu0 0
      %2637 = vmatpush1.bf16.msra.mxu0 0
      %2638 = vmatprep.subr.bf16.mxu0 0
      %2639 = vmatpush1.bf16.msra.mxu0 0
      %2640 = vmatprep.subr.bf16.mxu0 0
      %2641 = vmatpush1.bf16.msra.mxu0 0
      %2642 = vmatprep.subr.bf16.mxu0 0
      %2643 = vmatpush1.bf16.msra.mxu0 0
      %2644 = vmatprep.mubr.bf16.mxu0 0
      %2645 = vmatmul.mubr.bf16.gmra.mrb[0].mxu0 %v2607
      %v2646 = vpop.f32.mrb[0].mxu0
      %v2647 = vadd.f32 %v2472, %v2646
      %v2648 = vpop.f32.mrb[0].mxu0
      %v2649 = vadd.f32 %v2474, %v2648
      %v2650 = vpop.f32.mrb[0].mxu0
      %v2651 = vadd.f32 %v2476, %v2650
      %v2652 = vpop.f32.mrb[0].mxu0
      %v2653 = vadd.f32 %v2478, %v2652
      %2654 = vmatprep.mubr.bf16.mxu0 0
      %2655 = vmatmul.mubr.bf16.gmra.mrb[0].mxu0 %v2610
      %v2656 = vpop.f32.mrb[0].mxu0
      %v2657 = vadd.f32 %v2482, %v2656
      %v2658 = vpop.f32.mrb[0].mxu0
      %v2659 = vadd.f32 %v2484, %v2658
      %v2660 = vpop.f32.mrb[0].mxu0
      %v2661 = vadd.f32 %v2486, %v2660
      %v2662 = vpop.f32.mrb[0].mxu0
      %v2663 = vadd.f32 %v2488, %v2662
      %2664 = vdwg.mxu0
      %2665 = vmatprep.subr.bf16.mxu0 %v2383
      %2666 = vmatpush1.bf16.msra.mxu0 %v2382
      %2667 = vmatprep.subr.bf16.mxu0 0
      %2668 = vmatpush1.bf16.msra.mxu0 0
      %2669 = vmatprep.subr.bf16.mxu0 0
      %2670 = vmatpush1.bf16.msra.mxu0 0
      %2671 = vmatprep.subr.bf16.mxu0 0
      %2672 = vmatpush1.bf16.msra.mxu0 0
      %2673 = vmatprep.subr.bf16.mxu0 0
      %2674 = vmatpush1.bf16.msra.mxu0 0
      %2675 = vmatprep.subr.bf16.mxu0 0
      %2676 = vmatpush1.bf16.msra.mxu0 0
      %2677 = vmatprep.subr.bf16.mxu0 0
      %2678 = vmatpush1.bf16.msra.mxu0 0
      %2679 = vmatprep.subr.bf16.mxu0 0
      %2680 = vmatpush1.bf16.msra.mxu0 0
      %2681 = vmatprep.subr.bf16.mxu0 0
      %2682 = vmatpush1.bf16.msra.mxu0 0
      %2683 = vmatprep.subr.bf16.mxu0 0
      %2684 = vmatpush1.bf16.msra.mxu0 0
      %2685 = vmatprep.subr.bf16.mxu0 0
      %2686 = vmatpush1.bf16.msra.mxu0 0
      %2687 = vmatprep.subr.bf16.mxu0 0
      %2688 = vmatpush1.bf16.msra.mxu0 0
      %2689 = vmatprep.subr.bf16.mxu0 0
      %2690 = vmatpush1.bf16.msra.mxu0 0
      %2691 = vmatprep.subr.bf16.mxu0 0
      %2692 = vmatpush1.bf16.msra.mxu0 0
      %2693 = vmatprep.subr.bf16.mxu0 0
      %2694 = vmatpush1.bf16.msra.mxu0 0
      %2695 = vmatprep.subr.bf16.mxu0 0
      %2696 = vmatpush1.bf16.msra.mxu0 0
      %2697 = vmatprep.mubr.bf16.mxu0 0
      %2698 = vmatmul.mubr.bf16.gmra.mrb[0].mxu0 %v2607
      %v2699 = vpop.f32.mrb[0].mxu0
      %v2700 = vadd.f32 %v2525, %v2699
      %v2701 = vpop.f32.mrb[0].mxu0
      %v2702 = vadd.f32 %v2527, %v2701
      %v2703 = vpop.f32.mrb[0].mxu0
      %v2704 = vadd.f32 %v2529, %v2703
      %v2705 = vpop.f32.mrb[0].mxu0
      %v2706 = vadd.f32 %v2531, %v2705
      %2707 = vmatprep.mubr.bf16.mxu0 0
      %2708 = vmatmul.mubr.bf16.gmra.mrb[0].mxu0 %v2610
      %v2709 = vpop.f32.mrb[0].mxu0
      %v2710 = vadd.f32 %v2535, %v2709
      %v2711 = vpop.f32.mrb[0].mxu0
      %v2712 = vadd.f32 %v2537, %v2711
      %v2713 = vpop.f32.mrb[0].mxu0
      %v2714 = vadd.f32 %v2539, %v2713
      %v2715 = vpop.f32.mrb[0].mxu0
      %v2716 = vadd.f32 %v2541, %v2715
      %2717 = vdwg.mxu0
      %2718 = vmatprep.subr.bf16.mxu0 %v2385
      %2719 = vmatpush1.bf16.msra.mxu0 %v2384
      %2720 = vmatprep.subr.bf16.mxu0 0
      %2721 = vmatpush1.bf16.msra.mxu0 0
      %2722 = vmatprep.subr.bf16.mxu0 0
      %2723 = vmatpush1.bf16.msra.mxu0 0
      %2724 = vmatprep.subr.bf16.mxu0 0
      %2725 = vmatpush1.bf16.msra.mxu0 0
      %2726 = vmatprep.subr.bf16.mxu0 0
      %2727 = vmatpush1.bf16.msra.mxu0 0
      %2728 = vmatprep.subr.bf16.mxu0 0
      %2729 = vmatpush1.bf16.msra.mxu0 0
      %2730 = vmatprep.subr.bf16.mxu0 0
      %2731 = vmatpush1.bf16.msra.mxu0 0
      %2732 = vmatprep.subr.bf16.mxu0 0
      %2733 = vmatpush1.bf16.msra.mxu0 0
      %2734 = vmatprep.subr.bf16.mxu0 0
      %2735 = vmatpush1.bf16.msra.mxu0 0
      %2736 = vmatprep.subr.bf16.mxu0 0
      %2737 = vmatpush1.bf16.msra.mxu0 0
      %2738 = vmatprep.subr.bf16.mxu0 0
      %2739 = vmatpush1.bf16.msra.mxu0 0
      %2740 = vmatprep.subr.bf16.mxu0 0
      %2741 = vmatpush1.bf16.msra.mxu0 0
      %2742 = vmatprep.subr.bf16.mxu0 0
      %2743 = vmatpush1.bf16.msra.mxu0 0
      %2744 = vmatprep.subr.bf16.mxu0 0
      %2745 = vmatpush1.bf16.msra.mxu0 0
      %2746 = vmatprep.subr.bf16.mxu0 0
      %2747 = vmatpush1.bf16.msra.mxu0 0
      %2748 = vmatprep.subr.bf16.mxu0 0
      %2749 = vmatpush1.bf16.msra.mxu0 0
      %2750 = vmatprep.mubr.bf16.mxu0 0
      %2751 = vmatmul.mubr.bf16.gmra.mrb[0].mxu0 %v2607
      %v2752 = vpop.f32.mrb[0].mxu0
      %v2753 = vadd.f32 %v2578, %v2752
      %v2754 = vpop.f32.mrb[0].mxu0
      %v2755 = vadd.f32 %v2580, %v2754
      %v2756 = vpop.f32.mrb[0].mxu0
      %v2757 = vadd.f32 %v2582, %v2756
      %v2758 = vpop.f32.mrb[0].mxu0
      %v2759 = vadd.f32 %v2584, %v2758
      %2760 = vmatprep.mubr.bf16.mxu0 0
      %2761 = vmatmul.mubr.bf16.gmra.mrb[0].mxu0 %v2610
      %v2762 = vpop.f32.mrb[0].mxu0
      %v2763 = vadd.f32 %v2588, %v2762
      %v2764 = vpop.f32.mrb[0].mxu0
      %v2765 = vadd.f32 %v2590, %v2764
      %v2766 = vpop.f32.mrb[0].mxu0
      %v2767 = vadd.f32 %v2592, %v2766
      %v2768 = vpop.f32.mrb[0].mxu0
      %v2769 = vadd.f32 %v2594, %v2768
      %2770 = vdwg.mxu0
      %s2771 = scalar_lea.vmem %s3, 32
      %v2772 = vld [vmem:[%s2771] sm:$0xf]
      %v2773 = vld [vmem:[%s2771 + $0x4] sm:$0xf]
      %v2774 = vld [vmem:[%s2771 + $0x8] sm:$0xf]
      %v2775 = vld [vmem:[%s2771 + $0xc] sm:$0xf]
      %v2780 = vunpack.c.l.b16 %v2772
      %v2781 = vunpack.c.l.b16 %v2773
      %v2782 = vunpack.c.l.b16 %v2774
      %v2783 = vunpack.c.l.b16 %v2775
      %v2784 = vpack.c.b16 %v2781, %v2780
      %v2785 = vpack.c.b16 %v2783, %v2782
      %2786 = vrot.lane.b32.xlu0 %v2380, 126
      %v2787 = vpop.permute.xlu0 %2786
      %2788 = vrot.lane.b32.xlu0 %v2381, 126
      %v2789 = vpop.permute.xlu0 %2788
      %2790 = vrot.lane.b32.xlu0 %v2382, 126
      %v2791 = vpop.permute.xlu0 %2790
      %2792 = vrot.lane.b32.xlu0 %v2383, 126
      %v2793 = vpop.permute.xlu0 %2792
      %2794 = vrot.lane.b32.xlu0 %v2384, 126
      %v2795 = vpop.permute.xlu0 %2794
      %2796 = vrot.lane.b32.xlu0 %v2385, 126
      %v2797 = vpop.permute.xlu0 %2796
      %v2798 = vsel %vm747, %v2787, %v2789
      %v2799 = vsel %vm747, %v2789, %v2791
      %v2800 = vsel %vm747, %v2791, %v2793
      %v2801 = vsel %vm747, %v2793, %v2795
      %v2802 = vsel %vm747, %v2795, %v2797
      %v2810 = vsel %vm2430, %v2784, 0
      %v2813 = vsel %vm2430, %v2785, 0
      %2815 = vmatprep.subr.bf16.mxu0 %v2799
      %2816 = vmatpush1.bf16.msra.mxu0 %v2798
      %2817 = vmatprep.subr.bf16.mxu0 0
      %2818 = vmatpush1.bf16.msra.mxu0 0
      %2819 = vmatprep.subr.bf16.mxu0 0
      %2820 = vmatpush1.bf16.msra.mxu0 0
      %2821 = vmatprep.subr.bf16.mxu0 0
      %2822 = vmatpush1.bf16.msra.mxu0 0
      %2823 = vmatprep.subr.bf16.mxu0 0
      %2824 = vmatpush1.bf16.msra.mxu0 0
      %2825 = vmatprep.subr.bf16.mxu0 0
      %2826 = vmatpush1.bf16.msra.mxu0 0
      %2827 = vmatprep.subr.bf16.mxu0 0
      %2828 = vmatpush1.bf16.msra.mxu0 0
      %2829 = vmatprep.subr.bf16.mxu0 0
      %2830 = vmatpush1.bf16.msra.mxu0 0
      %2831 = vmatprep.subr.bf16.mxu0 0
      %2832 = vmatpush1.bf16.msra.mxu0 0
      %2833 = vmatprep.subr.bf16.mxu0 0
      %2834 = vmatpush1.bf16.msra.mxu0 0
      %2835 = vmatprep.subr.bf16.mxu0 0
      %2836 = vmatpush1.bf16.msra.mxu0 0
      %2837 = vmatprep.subr.bf16.mxu0 0
      %2838 = vmatpush1.bf16.msra.mxu0 0
      %2839 = vmatprep.subr.bf16.mxu0 0
      %2840 = vmatpush1.bf16.msra.mxu0 0
      %2841 = vmatprep.subr.bf16.mxu0 0
      %2842 = vmatpush1.bf16.msra.mxu0 0
      %2843 = vmatprep.subr.bf16.mxu0 0
      %2844 = vmatpush1.bf16.msra.mxu0 0
      %2845 = vmatprep.subr.bf16.mxu0 0
      %2846 = vmatpush1.bf16.msra.mxu0 0
      %2847 = vmatprep.mubr.bf16.mxu0 0
      %2848 = vmatmul.mubr.bf16.gmra.mrb[0].mxu0 %v2810
      %v2849 = vpop.f32.mrb[0].mxu0
      %v2850 = vadd.f32 0.0, %v2849
      %v2851 = vpop.f32.mrb[0].mxu0
      %v2852 = vadd.f32 0.0, %v2851
      %v2853 = vpop.f32.mrb[0].mxu0
      %v2854 = vadd.f32 0.0, %v2853
      %v2855 = vpop.f32.mrb[0].mxu0
      %v2856 = vadd.f32 0.0, %v2855
      %2857 = vmatprep.mubr.bf16.mxu0 0
      %2858 = vmatmul.mubr.bf16.gmra.mrb[0].mxu0 %v2813
      %v2859 = vpop.f32.mrb[0].mxu0
      %v2860 = vadd.f32 0.0, %v2859
      %v2861 = vpop.f32.mrb[0].mxu0
      %v2862 = vadd.f32 0.0, %v2861
      %v2863 = vpop.f32.mrb[0].mxu0
      %v2864 = vadd.f32 0.0, %v2863
      %v2865 = vpop.f32.mrb[0].mxu0
      %v2866 = vadd.f32 0.0, %v2865
      %2867 = vdwg.mxu0
      %2868 = vmatprep.subr.bf16.mxu0 %v2801
      %2869 = vmatpush1.bf16.msra.mxu0 %v2800
      %2870 = vmatprep.subr.bf16.mxu0 0
      %2871 = vmatpush1.bf16.msra.mxu0 0
      %2872 = vmatprep.subr.bf16.mxu0 0
      %2873 = vmatpush1.bf16.msra.mxu0 0
      %2874 = vmatprep.subr.bf16.mxu0 0
      %2875 = vmatpush1.bf16.msra.mxu0 0
      %2876 = vmatprep.subr.bf16.mxu0 0
      %2877 = vmatpush1.bf16.msra.mxu0 0
      %2878 = vmatprep.subr.bf16.mxu0 0
      %2879 = vmatpush1.bf16.msra.mxu0 0
      %2880 = vmatprep.subr.bf16.mxu0 0
      %2881 = vmatpush1.bf16.msra.mxu0 0
      %2882 = vmatprep.subr.bf16.mxu0 0
      %2883 = vmatpush1.bf16.msra.mxu0 0
      %2884 = vmatprep.subr.bf16.mxu0 0
      %2885 = vmatpush1.bf16.msra.mxu0 0
      %2886 = vmatprep.subr.bf16.mxu0 0
      %2887 = vmatpush1.bf16.msra.mxu0 0
      %2888 = vmatprep.subr.bf16.mxu0 0
      %2889 = vmatpush1.bf16.msra.mxu0 0
      %2890 = vmatprep.subr.bf16.mxu0 0
      %2891 = vmatpush1.bf16.msra.mxu0 0
      %2892 = vmatprep.subr.bf16.mxu0 0
      %2893 = vmatpush1.bf16.msra.mxu0 0
      %2894 = vmatprep.subr.bf16.mxu0 0
      %2895 = vmatpush1.bf16.msra.mxu0 0
      %2896 = vmatprep.subr.bf16.mxu0 0
      %2897 = vmatpush1.bf16.msra.mxu0 0
      %2898 = vmatprep.subr.bf16.mxu0 0
      %2899 = vmatpush1.bf16.msra.mxu0 0
      %2900 = vmatprep.mubr.bf16.mxu0 0
      %2901 = vmatmul.mubr.bf16.gmra.mrb[0].mxu0 %v2810
      %v2902 = vpop.f32.mrb[0].mxu0
      %v2903 = vadd.f32 0.0, %v2902
      %v2904 = vpop.f32.mrb[0].mxu0
      %v2905 = vadd.f32 0.0, %v2904
      %v2906 = vpop.f32.mrb[0].mxu0
      %v2907 = vadd.f32 0.0, %v2906
      %v2908 = vpop.f32.mrb[0].mxu0
      %v2909 = vadd.f32 0.0, %v2908
      %2910 = vmatprep.mubr.bf16.mxu0 0
      %2911 = vmatmul.mubr.bf16.gmra.mrb[0].mxu0 %v2813
      %v2912 = vpop.f32.mrb[0].mxu0
      %v2913 = vadd.f32 0.0, %v2912
      %v2914 = vpop.f32.mrb[0].mxu0
      %v2915 = vadd.f32 0.0, %v2914
      %v2916 = vpop.f32.mrb[0].mxu0
      %v2917 = vadd.f32 0.0, %v2916
      %v2918 = vpop.f32.mrb[0].mxu0
      %v2919 = vadd.f32 0.0, %v2918
      %2920 = vdwg.mxu0
      %2921 = vmatprep.subr.bf16.mxu0 %v2797
      %2922 = vmatpush1.bf16.msra.mxu0 %v2802
      %2923 = vmatprep.subr.bf16.mxu0 0
      %2924 = vmatpush1.bf16.msra.mxu0 0
      %2925 = vmatprep.subr.bf16.mxu0 0
      %2926 = vmatpush1.bf16.msra.mxu0 0
      %2927 = vmatprep.subr.bf16.mxu0 0
      %2928 = vmatpush1.bf16.msra.mxu0 0
      %2929 = vmatprep.subr.bf16.mxu0 0
      %2930 = vmatpush1.bf16.msra.mxu0 0
      %2931 = vmatprep.subr.bf16.mxu0 0
      %2932 = vmatpush1.bf16.msra.mxu0 0
      %2933 = vmatprep.subr.bf16.mxu0 0
      %2934 = vmatpush1.bf16.msra.mxu0 0
      %2935 = vmatprep.subr.bf16.mxu0 0
      %2936 = vmatpush1.bf16.msra.mxu0 0
      %2937 = vmatprep.subr.bf16.mxu0 0
      %2938 = vmatpush1.bf16.msra.mxu0 0
      %2939 = vmatprep.subr.bf16.mxu0 0
      %2940 = vmatpush1.bf16.msra.mxu0 0
      %2941 = vmatprep.subr.bf16.mxu0 0
      %2942 = vmatpush1.bf16.msra.mxu0 0
      %2943 = vmatprep.subr.bf16.mxu0 0
      %2944 = vmatpush1.bf16.msra.mxu0 0
      %2945 = vmatprep.subr.bf16.mxu0 0
      %2946 = vmatpush1.bf16.msra.mxu0 0
      %2947 = vmatprep.subr.bf16.mxu0 0
      %2948 = vmatpush1.bf16.msra.mxu0 0
      %2949 = vmatprep.subr.bf16.mxu0 0
      %2950 = vmatpush1.bf16.msra.mxu0 0
      %2951 = vmatprep.subr.bf16.mxu0 0
      %2952 = vmatpush1.bf16.msra.mxu0 0
      %2953 = vmatprep.mubr.bf16.mxu0 0
      %2954 = vmatmul.mubr.bf16.gmra.mrb[0].mxu0 %v2810
      %v2955 = vpop.f32.mrb[0].mxu0
      %v2956 = vadd.f32 0.0, %v2955
      %v2957 = vpop.f32.mrb[0].mxu0
      %v2958 = vadd.f32 0.0, %v2957
      %v2959 = vpop.f32.mrb[0].mxu0
      %v2960 = vadd.f32 0.0, %v2959
      %v2961 = vpop.f32.mrb[0].mxu0
      %v2962 = vadd.f32 0.0, %v2961
      %2963 = vmatprep.mubr.bf16.mxu0 0
      %2964 = vmatmul.mubr.bf16.gmra.mrb[0].mxu0 %v2813
      %v2965 = vpop.f32.mrb[0].mxu0
      %v2966 = vadd.f32 0.0, %v2965
      %v2967 = vpop.f32.mrb[0].mxu0
      %v2968 = vadd.f32 0.0, %v2967
      %v2969 = vpop.f32.mrb[0].mxu0
      %v2970 = vadd.f32 0.0, %v2969
      %v2971 = vpop.f32.mrb[0].mxu0
      %v2972 = vadd.f32 0.0, %v2971
      %2973 = vdwg.mxu0
      %v2974 = vadd.f32 %v2647, %v2850
      %v2975 = vadd.f32 %v2649, %v2852
      %v2976 = vadd.f32 %v2700, %v2903
      %v2977 = vadd.f32 %v2702, %v2905
      %v2978 = vadd.f32 %v2753, %v2956
      %v2979 = vadd.f32 %v2755, %v2958
      %v2980 = vadd.f32 %v2651, %v2854
      %v2981 = vadd.f32 %v2653, %v2856
      %v2982 = vadd.f32 %v2704, %v2907
      %v2983 = vadd.f32 %v2706, %v2909
      %v2984 = vadd.f32 %v2757, %v2960
      %v2985 = vadd.f32 %v2759, %v2962
      %v2986 = vadd.f32 %v2657, %v2860
      %v2987 = vadd.f32 %v2659, %v2862
      %v2988 = vadd.f32 %v2710, %v2913
      %v2989 = vadd.f32 %v2712, %v2915
      %v2990 = vadd.f32 %v2763, %v2966
      %v2991 = vadd.f32 %v2765, %v2968
      %v2992 = vadd.f32 %v2661, %v2864
      %v2993 = vadd.f32 %v2663, %v2866
      %v2994 = vadd.f32 %v2714, %v2917
      %v2995 = vadd.f32 %v2716, %v2919
      %v2996 = vadd.f32 %v2767, %v2970
      %v2997 = vadd.f32 %v2769, %v2972
      %s2998 = scalar_lea.vmem %s3, 48
      %v2999 = vld [vmem:[%s2998] sm:$0xf]
      %v3000 = vld [vmem:[%s2998 + $0x4] sm:$0xf]
      %v3001 = vld [vmem:[%s2998 + $0x8] sm:$0xf]
      %v3002 = vld [vmem:[%s2998 + $0xc] sm:$0xf]
      %v3007 = vunpack.c.l.b16 %v2999
      %v3008 = vunpack.c.l.b16 %v3000
      %v3009 = vunpack.c.l.b16 %v3001
      %v3010 = vunpack.c.l.b16 %v3002
      %v3011 = vpack.c.b16 %v3008, %v3007
      %v3012 = vpack.c.b16 %v3010, %v3009
      %3013 = vrot.lane.b32.xlu0 %v2380, 108
      %v3014 = vpop.permute.xlu0 %3013
      %3015 = vrot.lane.b32.xlu0 %v2381, 108
      %v3016 = vpop.permute.xlu0 %3015
      %3017 = vrot.lane.b32.xlu0 %v2382, 108
      %v3018 = vpop.permute.xlu0 %3017
      %3019 = vrot.lane.b32.xlu0 %v2383, 108
      %v3020 = vpop.permute.xlu0 %3019
      %3021 = vrot.lane.b32.xlu0 %v2384, 108
      %v3022 = vpop.permute.xlu0 %3021
      %3023 = vrot.lane.b32.xlu0 %v2385, 108
      %v3024 = vpop.permute.xlu0 %3023
      %v3025 = vsel %vm974, %v3014, %v3016
      %v3026 = vsel %vm974, %v3016, %v3018
      %v3027 = vsel %vm974, %v3018, %v3020
      %v3028 = vsel %vm974, %v3020, %v3022
      %v3029 = vsel %vm974, %v3022, %v3024
      %v3037 = vsel %vm2430, %v3011, 0
      %v3040 = vsel %vm2430, %v3012, 0
      %3042 = vmatprep.subr.bf16.mxu0 %v3026
      %3043 = vmatpush1.bf16.msra.mxu0 %v3025
      %3044 = vmatprep.subr.bf16.mxu0 0
      %3045 = vmatpush1.bf16.msra.mxu0 0
      %3046 = vmatprep.subr.bf16.mxu0 0
      %3047 = vmatpush1.bf16.msra.mxu0 0
      %3048 = vmatprep.subr.bf16.mxu0 0
      %3049 = vmatpush1.bf16.msra.mxu0 0
      %3050 = vmatprep.subr.bf16.mxu0 0
      %3051 = vmatpush1.bf16.msra.mxu0 0
      %3052 = vmatprep.subr.bf16.mxu0 0
      %3053 = vmatpush1.bf16.msra.mxu0 0
      %3054 = vmatprep.subr.bf16.mxu0 0
      %3055 = vmatpush1.bf16.msra.mxu0 0
      %3056 = vmatprep.subr.bf16.mxu0 0
      %3057 = vmatpush1.bf16.msra.mxu0 0
      %3058 = vmatprep.subr.bf16.mxu0 0
      %3059 = vmatpush1.bf16.msra.mxu0 0
      %3060 = vmatprep.subr.bf16.mxu0 0
      %3061 = vmatpush1.bf16.msra.mxu0 0
      %3062 = vmatprep.subr.bf16.mxu0 0
      %3063 = vmatpush1.bf16.msra.mxu0 0
      %3064 = vmatprep.subr.bf16.mxu0 0
      %3065 = vmatpush1.bf16.msra.mxu0 0
      %3066 = vmatprep.subr.bf16.mxu0 0
      %3067 = vmatpush1.bf16.msra.mxu0 0
      %3068 = vmatprep.subr.bf16.mxu0 0
      %3069 = vmatpush1.bf16.msra.mxu0 0
      %3070 = vmatprep.subr.bf16.mxu0 0
      %3071 = vmatpush1.bf16.msra.mxu0 0
      %3072 = vmatprep.subr.bf16.mxu0 0
      %3073 = vmatpush1.bf16.msra.mxu0 0
      %3074 = vmatprep.mubr.bf16.mxu0 0
      %3075 = vmatmul.mubr.bf16.gmra.mrb[0].mxu0 %v3037
      %v3076 = vpop.f32.mrb[0].mxu0
      %v3077 = vadd.f32 0.0, %v3076
      %v3078 = vpop.f32.mrb[0].mxu0
      %v3079 = vadd.f32 0.0, %v3078
      %v3080 = vpop.f32.mrb[0].mxu0
      %v3081 = vadd.f32 0.0, %v3080
      %v3082 = vpop.f32.mrb[0].mxu0
      %v3083 = vadd.f32 0.0, %v3082
      %3084 = vmatprep.mubr.bf16.mxu0 0
      %3085 = vmatmul.mubr.bf16.gmra.mrb[0].mxu0 %v3040
      %v3086 = vpop.f32.mrb[0].mxu0
      %v3087 = vadd.f32 0.0, %v3086
      %v3088 = vpop.f32.mrb[0].mxu0
      %v3089 = vadd.f32 0.0, %v3088
      %v3090 = vpop.f32.mrb[0].mxu0
      %v3091 = vadd.f32 0.0, %v3090
      %v3092 = vpop.f32.mrb[0].mxu0
      %v3093 = vadd.f32 0.0, %v3092
      %3094 = vdwg.mxu0
      %3095 = vmatprep.subr.bf16.mxu0 %v3028
      %3096 = vmatpush1.bf16.msra.mxu0 %v3027
      %3097 = vmatprep.subr.bf16.mxu0 0
      %3098 = vmatpush1.bf16.msra.mxu0 0
      %3099 = vmatprep.subr.bf16.mxu0 0
      %3100 = vmatpush1.bf16.msra.mxu0 0
      %3101 = vmatprep.subr.bf16.mxu0 0
      %3102 = vmatpush1.bf16.msra.mxu0 0
      %3103 = vmatprep.subr.bf16.mxu0 0
      %3104 = vmatpush1.bf16.msra.mxu0 0
      %3105 = vmatprep.subr.bf16.mxu0 0
      %3106 = vmatpush1.bf16.msra.mxu0 0
      %3107 = vmatprep.subr.bf16.mxu0 0
      %3108 = vmatpush1.bf16.msra.mxu0 0
      %3109 = vmatprep.subr.bf16.mxu0 0
      %3110 = vmatpush1.bf16.msra.mxu0 0
      %3111 = vmatprep.subr.bf16.mxu0 0
      %3112 = vmatpush1.bf16.msra.mxu0 0
      %3113 = vmatprep.subr.bf16.mxu0 0
      %3114 = vmatpush1.bf16.msra.mxu0 0
      %3115 = vmatprep.subr.bf16.mxu0 0
      %3116 = vmatpush1.bf16.msra.mxu0 0
      %3117 = vmatprep.subr.bf16.mxu0 0
      %3118 = vmatpush1.bf16.msra.mxu0 0
      %3119 = vmatprep.subr.bf16.mxu0 0
      %3120 = vmatpush1.bf16.msra.mxu0 0
      %3121 = vmatprep.subr.bf16.mxu0 0
      %3122 = vmatpush1.bf16.msra.mxu0 0
      %3123 = vmatprep.subr.bf16.mxu0 0
      %3124 = vmatpush1.bf16.msra.mxu0 0
      %3125 = vmatprep.subr.bf16.mxu0 0
      %3126 = vmatpush1.bf16.msra.mxu0 0
      %3127 = vmatprep.mubr.bf16.mxu0 0
      %3128 = vmatmul.mubr.bf16.gmra.mrb[0].mxu0 %v3037
      %v3129 = vpop.f32.mrb[0].mxu0
      %v3130 = vadd.f32 0.0, %v3129
      %v3131 = vpop.f32.mrb[0].mxu0
      %v3132 = vadd.f32 0.0, %v3131
      %v3133 = vpop.f32.mrb[0].mxu0
      %v3134 = vadd.f32 0.0, %v3133
      %v3135 = vpop.f32.mrb[0].mxu0
      %v3136 = vadd.f32 0.0, %v3135
      %3137 = vmatprep.mubr.bf16.mxu0 0
      %3138 = vmatmul.mubr.bf16.gmra.mrb[0].mxu0 %v3040
      %v3139 = vpop.f32.mrb[0].mxu0
      %v3140 = vadd.f32 0.0, %v3139
      %v3141 = vpop.f32.mrb[0].mxu0
      %v3142 = vadd.f32 0.0, %v3141
      %v3143 = vpop.f32.mrb[0].mxu0
      %v3144 = vadd.f32 0.0, %v3143
      %v3145 = vpop.f32.mrb[0].mxu0
      %v3146 = vadd.f32 0.0, %v3145
      %3147 = vdwg.mxu0
      %3148 = vmatprep.subr.bf16.mxu0 %v3024
      %3149 = vmatpush1.bf16.msra.mxu0 %v3029
      %3150 = vmatprep.subr.bf16.mxu0 0
      %3151 = vmatpush1.bf16.msra.mxu0 0
      %3152 = vmatprep.subr.bf16.mxu0 0
      %3153 = vmatpush1.bf16.msra.mxu0 0
      %3154 = vmatprep.subr.bf16.mxu0 0
      %3155 = vmatpush1.bf16.msra.mxu0 0
      %3156 = vmatprep.subr.bf16.mxu0 0
      %3157 = vmatpush1.bf16.msra.mxu0 0
      %3158 = vmatprep.subr.bf16.mxu0 0
      %3159 = vmatpush1.bf16.msra.mxu0 0
      %3160 = vmatprep.subr.bf16.mxu0 0
      %3161 = vmatpush1.bf16.msra.mxu0 0
      %3162 = vmatprep.subr.bf16.mxu0 0
      %3163 = vmatpush1.bf16.msra.mxu0 0
      %3164 = vmatprep.subr.bf16.mxu0 0
      %3165 = vmatpush1.bf16.msra.mxu0 0
      %3166 = vmatprep.subr.bf16.mxu0 0
      %3167 = vmatpush1.bf16.msra.mxu0 0
      %3168 = vmatprep.subr.bf16.mxu0 0
      %3169 = vmatpush1.bf16.msra.mxu0 0
      %3170 = vmatprep.subr.bf16.mxu0 0
      %3171 = vmatpush1.bf16.msra.mxu0 0
      %3172 = vmatprep.subr.bf16.mxu0 0
      %3173 = vmatpush1.bf16.msra.mxu0 0
      %3174 = vmatprep.subr.bf16.mxu0 0
      %3175 = vmatpush1.bf16.msra.mxu0 0
      %3176 = vmatprep.subr.bf16.mxu0 0
      %3177 = vmatpush1.bf16.msra.mxu0 0
      %3178 = vmatprep.subr.bf16.mxu0 0
      %3179 = vmatpush1.bf16.msra.mxu0 0
      %3180 = vmatprep.mubr.bf16.mxu0 0
      %3181 = vmatmul.mubr.bf16.gmra.mrb[0].mxu0 %v3037
      %v3182 = vpop.f32.mrb[0].mxu0
      %v3183 = vadd.f32 0.0, %v3182
      %v3184 = vpop.f32.mrb[0].mxu0
      %v3185 = vadd.f32 0.0, %v3184
      %v3186 = vpop.f32.mrb[0].mxu0
      %v3187 = vadd.f32 0.0, %v3186
      %v3188 = vpop.f32.mrb[0].mxu0
      %v3189 = vadd.f32 0.0, %v3188
      %3190 = vmatprep.mubr.bf16.mxu0 0
      %3191 = vmatmul.mubr.bf16.gmra.mrb[0].mxu0 %v3040
      %v3192 = vpop.f32.mrb[0].mxu0
      %v3193 = vadd.f32 0.0, %v3192
      %v3194 = vpop.f32.mrb[0].mxu0
      %v3195 = vadd.f32 0.0, %v3194
      %v3196 = vpop.f32.mrb[0].mxu0
      %v3197 = vadd.f32 0.0, %v3196
      %v3198 = vpop.f32.mrb[0].mxu0
      %v3199 = vadd.f32 0.0, %v3198
      %3200 = vdwg.mxu0
      %v3201 = vadd.f32 %v2974, %v3077
      %v3202 = vadd.f32 %v2975, %v3079
      %v3203 = vadd.f32 %v2976, %v3130
      %v3204 = vadd.f32 %v2977, %v3132
      %v3205 = vadd.f32 %v2978, %v3183
      %v3206 = vadd.f32 %v2979, %v3185
      %v3207 = vadd.f32 %v2980, %v3081
      %v3208 = vadd.f32 %v2981, %v3083
      %v3209 = vadd.f32 %v2982, %v3134
      %v3210 = vadd.f32 %v2983, %v3136
      %v3211 = vadd.f32 %v2984, %v3187
      %v3212 = vadd.f32 %v2985, %v3189
      %v3213 = vadd.f32 %v2986, %v3087
      %v3214 = vadd.f32 %v2987, %v3089
      %v3215 = vadd.f32 %v2988, %v3140
      %v3216 = vadd.f32 %v2989, %v3142
      %v3217 = vadd.f32 %v2990, %v3193
      %v3218 = vadd.f32 %v2991, %v3195
      %v3219 = vadd.f32 %v2992, %v3091
      %v3220 = vadd.f32 %v2993, %v3093
      %v3221 = vadd.f32 %v2994, %v3144
      %v3222 = vadd.f32 %v2995, %v3146
      %v3223 = vadd.f32 %v2996, %v3197
      %v3224 = vadd.f32 %v2997, %v3199
      %s3225 = scalar_lea.vmem %s3, 64
      %v3226 = vld [vmem:[%s3225] sm:$0xf]
      %v3227 = vld [vmem:[%s3225 + $0x4] sm:$0xf]
      %v3228 = vld [vmem:[%s3225 + $0x8] sm:$0xf]
      %v3229 = vld [vmem:[%s3225 + $0xc] sm:$0xf]
      %v3234 = vunpack.c.l.b16 %v3226
      %v3235 = vunpack.c.l.b16 %v3227
      %v3236 = vunpack.c.l.b16 %v3228
      %v3237 = vunpack.c.l.b16 %v3229
      %v3238 = vpack.c.b16 %v3235, %v3234
      %v3239 = vpack.c.b16 %v3237, %v3236
      %3240 = vrot.lane.b32.xlu0 %v2380, 107
      %v3241 = vpop.permute.xlu0 %3240
      %3242 = vrot.lane.b32.xlu0 %v2381, 107
      %v3243 = vpop.permute.xlu0 %3242
      %3244 = vrot.lane.b32.xlu0 %v2382, 107
      %v3245 = vpop.permute.xlu0 %3244
      %3246 = vrot.lane.b32.xlu0 %v2383, 107
      %v3247 = vpop.permute.xlu0 %3246
      %3248 = vrot.lane.b32.xlu0 %v2384, 107
      %v3249 = vpop.permute.xlu0 %3248
      %3250 = vrot.lane.b32.xlu0 %v2385, 107
      %v3251 = vpop.permute.xlu0 %3250
      %v3252 = vsel %vm1202, %v3241, %v3243
      %v3253 = vsel %vm1202, %v3243, %v3245
      %v3254 = vsel %vm1202, %v3245, %v3247
      %v3255 = vsel %vm1202, %v3247, %v3249
      %v3256 = vsel %vm1202, %v3249, %v3251
      %v3264 = vsel %vm2430, %v3238, 0
      %v3267 = vsel %vm2430, %v3239, 0
      %3269 = vmatprep.subr.bf16.mxu0 %v3253
      %3270 = vmatpush1.bf16.msra.mxu0 %v3252
      %3271 = vmatprep.subr.bf16.mxu0 0
      %3272 = vmatpush1.bf16.msra.mxu0 0
      %3273 = vmatprep.subr.bf16.mxu0 0
      %3274 = vmatpush1.bf16.msra.mxu0 0
      %3275 = vmatprep.subr.bf16.mxu0 0
      %3276 = vmatpush1.bf16.msra.mxu0 0
      %3277 = vmatprep.subr.bf16.mxu0 0
      %3278 = vmatpush1.bf16.msra.mxu0 0
      %3279 = vmatprep.subr.bf16.mxu0 0
      %3280 = vmatpush1.bf16.msra.mxu0 0
      %3281 = vmatprep.subr.bf16.mxu0 0
      %3282 = vmatpush1.bf16.msra.mxu0 0
      %3283 = vmatprep.subr.bf16.mxu0 0
      %3284 = vmatpush1.bf16.msra.mxu0 0
      %3285 = vmatprep.subr.bf16.mxu0 0
      %3286 = vmatpush1.bf16.msra.mxu0 0
      %3287 = vmatprep.subr.bf16.mxu0 0
      %3288 = vmatpush1.bf16.msra.mxu0 0
      %3289 = vmatprep.subr.bf16.mxu0 0
      %3290 = vmatpush1.bf16.msra.mxu0 0
      %3291 = vmatprep.subr.bf16.mxu0 0
      %3292 = vmatpush1.bf16.msra.mxu0 0
      %3293 = vmatprep.subr.bf16.mxu0 0
      %3294 = vmatpush1.bf16.msra.mxu0 0
      %3295 = vmatprep.subr.bf16.mxu0 0
      %3296 = vmatpush1.bf16.msra.mxu0 0
      %3297 = vmatprep.subr.bf16.mxu0 0
      %3298 = vmatpush1.bf16.msra.mxu0 0
      %3299 = vmatprep.subr.bf16.mxu0 0
      %3300 = vmatpush1.bf16.msra.mxu0 0
      %3301 = vmatprep.mubr.bf16.mxu0 0
      %3302 = vmatmul.mubr.bf16.gmra.mrb[0].mxu0 %v3264
      %v3303 = vpop.f32.mrb[0].mxu0
      %v3304 = vadd.f32 0.0, %v3303
      %v3305 = vpop.f32.mrb[0].mxu0
      %v3306 = vadd.f32 0.0, %v3305
      %v3307 = vpop.f32.mrb[0].mxu0
      %v3308 = vadd.f32 0.0, %v3307
      %v3309 = vpop.f32.mrb[0].mxu0
      %v3310 = vadd.f32 0.0, %v3309
      %3311 = vmatprep.mubr.bf16.mxu0 0
      %3312 = vmatmul.mubr.bf16.gmra.mrb[0].mxu0 %v3267
      %v3313 = vpop.f32.mrb[0].mxu0
      %v3314 = vadd.f32 0.0, %v3313
      %v3315 = vpop.f32.mrb[0].mxu0
      %v3316 = vadd.f32 0.0, %v3315
      %v3317 = vpop.f32.mrb[0].mxu0
      %v3318 = vadd.f32 0.0, %v3317
      %v3319 = vpop.f32.mrb[0].mxu0
      %v3320 = vadd.f32 0.0, %v3319
      %3321 = vdwg.mxu0
      %3322 = vmatprep.subr.bf16.mxu0 %v3255
      %3323 = vmatpush1.bf16.msra.mxu0 %v3254
      %3324 = vmatprep.subr.bf16.mxu0 0
      %3325 = vmatpush1.bf16.msra.mxu0 0
      %3326 = vmatprep.subr.bf16.mxu0 0
      %3327 = vmatpush1.bf16.msra.mxu0 0
      %3328 = vmatprep.subr.bf16.mxu0 0
      %3329 = vmatpush1.bf16.msra.mxu0 0
      %3330 = vmatprep.subr.bf16.mxu0 0
      %3331 = vmatpush1.bf16.msra.mxu0 0
      %3332 = vmatprep.subr.bf16.mxu0 0
      %3333 = vmatpush1.bf16.msra.mxu0 0
      %3334 = vmatprep.subr.bf16.mxu0 0
      %3335 = vmatpush1.bf16.msra.mxu0 0
      %3336 = vmatprep.subr.bf16.mxu0 0
      %3337 = vmatpush1.bf16.msra.mxu0 0
      %3338 = vmatprep.subr.bf16.mxu0 0
      %3339 = vmatpush1.bf16.msra.mxu0 0
      %3340 = vmatprep.subr.bf16.mxu0 0
      %3341 = vmatpush1.bf16.msra.mxu0 0
      %3342 = vmatprep.subr.bf16.mxu0 0
      %3343 = vmatpush1.bf16.msra.mxu0 0
      %3344 = vmatprep.subr.bf16.mxu0 0
      %3345 = vmatpush1.bf16.msra.mxu0 0
      %3346 = vmatprep.subr.bf16.mxu0 0
      %3347 = vmatpush1.bf16.msra.mxu0 0
      %3348 = vmatprep.subr.bf16.mxu0 0
      %3349 = vmatpush1.bf16.msra.mxu0 0
      %3350 = vmatprep.subr.bf16.mxu0 0
      %3351 = vmatpush1.bf16.msra.mxu0 0
      %3352 = vmatprep.subr.bf16.mxu0 0
      %3353 = vmatpush1.bf16.msra.mxu0 0
      %3354 = vmatprep.mubr.bf16.mxu0 0
      %3355 = vmatmul.mubr.bf16.gmra.mrb[0].mxu0 %v3264
      %v3356 = vpop.f32.mrb[0].mxu0
      %v3357 = vadd.f32 0.0, %v3356
      %v3358 = vpop.f32.mrb[0].mxu0
      %v3359 = vadd.f32 0.0, %v3358
      %v3360 = vpop.f32.mrb[0].mxu0
      %v3361 = vadd.f32 0.0, %v3360
      %v3362 = vpop.f32.mrb[0].mxu0
      %v3363 = vadd.f32 0.0, %v3362
      %3364 = vmatprep.mubr.bf16.mxu0 0
      %3365 = vmatmul.mubr.bf16.gmra.mrb[0].mxu0 %v3267
      %v3366 = vpop.f32.mrb[0].mxu0
      %v3367 = vadd.f32 0.0, %v3366
      %v3368 = vpop.f32.mrb[0].mxu0
      %v3369 = vadd.f32 0.0, %v3368
      %v3370 = vpop.f32.mrb[0].mxu0
      %v3371 = vadd.f32 0.0, %v3370
      %v3372 = vpop.f32.mrb[0].mxu0
      %v3373 = vadd.f32 0.0, %v3372
      %3374 = vdwg.mxu0
      %3375 = vmatprep.subr.bf16.mxu0 %v3251
      %3376 = vmatpush1.bf16.msra.mxu0 %v3256
      %3377 = vmatprep.subr.bf16.mxu0 0
      %3378 = vmatpush1.bf16.msra.mxu0 0
      %3379 = vmatprep.subr.bf16.mxu0 0
      %3380 = vmatpush1.bf16.msra.mxu0 0
      %3381 = vmatprep.subr.bf16.mxu0 0
      %3382 = vmatpush1.bf16.msra.mxu0 0
      %3383 = vmatprep.subr.bf16.mxu0 0
      %3384 = vmatpush1.bf16.msra.mxu0 0
      %3385 = vmatprep.subr.bf16.mxu0 0
      %3386 = vmatpush1.bf16.msra.mxu0 0
      %3387 = vmatprep.subr.bf16.mxu0 0
      %3388 = vmatpush1.bf16.msra.mxu0 0
      %3389 = vmatprep.subr.bf16.mxu0 0
      %3390 = vmatpush1.bf16.msra.mxu0 0
      %3391 = vmatprep.subr.bf16.mxu0 0
      %3392 = vmatpush1.bf16.msra.mxu0 0
      %3393 = vmatprep.subr.bf16.mxu0 0
      %3394 = vmatpush1.bf16.msra.mxu0 0
      %3395 = vmatprep.subr.bf16.mxu0 0
      %3396 = vmatpush1.bf16.msra.mxu0 0
      %3397 = vmatprep.subr.bf16.mxu0 0
      %3398 = vmatpush1.bf16.msra.mxu0 0
      %3399 = vmatprep.subr.bf16.mxu0 0
      %3400 = vmatpush1.bf16.msra.mxu0 0
      %3401 = vmatprep.subr.bf16.mxu0 0
      %3402 = vmatpush1.bf16.msra.mxu0 0
      %3403 = vmatprep.subr.bf16.mxu0 0
      %3404 = vmatpush1.bf16.msra.mxu0 0
      %3405 = vmatprep.subr.bf16.mxu0 0
      %3406 = vmatpush1.bf16.msra.mxu0 0
      %3407 = vmatprep.mubr.bf16.mxu0 0
      %3408 = vmatmul.mubr.bf16.gmra.mrb[0].mxu0 %v3264
      %v3409 = vpop.f32.mrb[0].mxu0
      %v3410 = vadd.f32 0.0, %v3409
      %v3411 = vpop.f32.mrb[0].mxu0
      %v3412 = vadd.f32 0.0, %v3411
      %v3413 = vpop.f32.mrb[0].mxu0
      %v3414 = vadd.f32 0.0, %v3413
      %v3415 = vpop.f32.mrb[0].mxu0
      %v3416 = vadd.f32 0.0, %v3415
      %3417 = vmatprep.mubr.bf16.mxu0 0
      %3418 = vmatmul.mubr.bf16.gmra.mrb[0].mxu0 %v3267
      %v3419 = vpop.f32.mrb[0].mxu0
      %v3420 = vadd.f32 0.0, %v3419
      %v3421 = vpop.f32.mrb[0].mxu0
      %v3422 = vadd.f32 0.0, %v3421
      %v3423 = vpop.f32.mrb[0].mxu0
      %v3424 = vadd.f32 0.0, %v3423
      %v3425 = vpop.f32.mrb[0].mxu0
      %v3426 = vadd.f32 0.0, %v3425
      %3427 = vdwg.mxu0
      %v3428 = vadd.f32 %v3201, %v3304
      %v3429 = vadd.f32 %v3202, %v3306
      %v3430 = vadd.f32 %v3203, %v3357
      %v3431 = vadd.f32 %v3204, %v3359
      %v3432 = vadd.f32 %v3205, %v3410
      %v3433 = vadd.f32 %v3206, %v3412
      %v3434 = vadd.f32 %v3207, %v3308
      %v3435 = vadd.f32 %v3208, %v3310
      %v3436 = vadd.f32 %v3209, %v3361
      %v3437 = vadd.f32 %v3210, %v3363
      %v3438 = vadd.f32 %v3211, %v3414
      %v3439 = vadd.f32 %v3212, %v3416
      %v3440 = vadd.f32 %v3213, %v3314
      %v3441 = vadd.f32 %v3214, %v3316
      %v3442 = vadd.f32 %v3215, %v3367
      %v3443 = vadd.f32 %v3216, %v3369
      %v3444 = vadd.f32 %v3217, %v3420
      %v3445 = vadd.f32 %v3218, %v3422
      %v3446 = vadd.f32 %v3219, %v3318
      %v3447 = vadd.f32 %v3220, %v3320
      %v3448 = vadd.f32 %v3221, %v3371
      %v3449 = vadd.f32 %v3222, %v3373
      %v3450 = vadd.f32 %v3223, %v3424
      %v3451 = vadd.f32 %v3224, %v3426
      %s3452 = scalar_lea.vmem %s3, 80
      %v3453 = vld [vmem:[%s3452] sm:$0xf]
      %v3454 = vld [vmem:[%s3452 + $0x4] sm:$0xf]
      %v3455 = vld [vmem:[%s3452 + $0x8] sm:$0xf]
      %v3456 = vld [vmem:[%s3452 + $0xc] sm:$0xf]
      %v3461 = vunpack.c.l.b16 %v3453
      %v3462 = vunpack.c.l.b16 %v3454
      %v3463 = vunpack.c.l.b16 %v3455
      %v3464 = vunpack.c.l.b16 %v3456
      %v3465 = vpack.c.b16 %v3462, %v3461
      %v3466 = vpack.c.b16 %v3464, %v3463
      %3467 = vrot.lane.b32.xlu0 %v2380, 106
      %v3468 = vpop.permute.xlu0 %3467
      %3469 = vrot.lane.b32.xlu0 %v2381, 106
      %v3470 = vpop.permute.xlu0 %3469
      %3471 = vrot.lane.b32.xlu0 %v2382, 106
      %v3472 = vpop.permute.xlu0 %3471
      %3473 = vrot.lane.b32.xlu0 %v2383, 106
      %v3474 = vpop.permute.xlu0 %3473
      %3475 = vrot.lane.b32.xlu0 %v2384, 106
      %v3476 = vpop.permute.xlu0 %3475
      %3477 = vrot.lane.b32.xlu0 %v2385, 106
      %v3478 = vpop.permute.xlu0 %3477
      %v3479 = vsel %vm1430, %v3468, %v3470
      %v3480 = vsel %vm1430, %v3470, %v3472
      %v3481 = vsel %vm1430, %v3472, %v3474
      %v3482 = vsel %vm1430, %v3474, %v3476
      %v3483 = vsel %vm1430, %v3476, %v3478
      %v3491 = vsel %vm2430, %v3465, 0
      %v3494 = vsel %vm2430, %v3466, 0
      %3496 = vmatprep.subr.bf16.mxu0 %v3480
      %3497 = vmatpush1.bf16.msra.mxu0 %v3479
      %3498 = vmatprep.subr.bf16.mxu0 0
      %3499 = vmatpush1.bf16.msra.mxu0 0
      %3500 = vmatprep.subr.bf16.mxu0 0
      %3501 = vmatpush1.bf16.msra.mxu0 0
      %3502 = vmatprep.subr.bf16.mxu0 0
      %3503 = vmatpush1.bf16.msra.mxu0 0
      %3504 = vmatprep.subr.bf16.mxu0 0
      %3505 = vmatpush1.bf16.msra.mxu0 0
      %3506 = vmatprep.subr.bf16.mxu0 0
      %3507 = vmatpush1.bf16.msra.mxu0 0
      %3508 = vmatprep.subr.bf16.mxu0 0
      %3509 = vmatpush1.bf16.msra.mxu0 0
      %3510 = vmatprep.subr.bf16.mxu0 0
      %3511 = vmatpush1.bf16.msra.mxu0 0
      %3512 = vmatprep.subr.bf16.mxu0 0
      %3513 = vmatpush1.bf16.msra.mxu0 0
      %3514 = vmatprep.subr.bf16.mxu0 0
      %3515 = vmatpush1.bf16.msra.mxu0 0
      %3516 = vmatprep.subr.bf16.mxu0 0
      %3517 = vmatpush1.bf16.msra.mxu0 0
      %3518 = vmatprep.subr.bf16.mxu0 0
      %3519 = vmatpush1.bf16.msra.mxu0 0
      %3520 = vmatprep.subr.bf16.mxu0 0
      %3521 = vmatpush1.bf16.msra.mxu0 0
      %3522 = vmatprep.subr.bf16.mxu0 0
      %3523 = vmatpush1.bf16.msra.mxu0 0
      %3524 = vmatprep.subr.bf16.mxu0 0
      %3525 = vmatpush1.bf16.msra.mxu0 0
      %3526 = vmatprep.subr.bf16.mxu0 0
      %3527 = vmatpush1.bf16.msra.mxu0 0
      %3528 = vmatprep.mubr.bf16.mxu0 0
      %3529 = vmatmul.mubr.bf16.gmra.mrb[0].mxu0 %v3491
      %v3530 = vpop.f32.mrb[0].mxu0
      %v3531 = vadd.f32 0.0, %v3530
      %v3532 = vpop.f32.mrb[0].mxu0
      %v3533 = vadd.f32 0.0, %v3532
      %v3534 = vpop.f32.mrb[0].mxu0
      %v3535 = vadd.f32 0.0, %v3534
      %v3536 = vpop.f32.mrb[0].mxu0
      %v3537 = vadd.f32 0.0, %v3536
      %3538 = vmatprep.mubr.bf16.mxu0 0
      %3539 = vmatmul.mubr.bf16.gmra.mrb[0].mxu0 %v3494
      %v3540 = vpop.f32.mrb[0].mxu0
      %v3541 = vadd.f32 0.0, %v3540
      %v3542 = vpop.f32.mrb[0].mxu0
      %v3543 = vadd.f32 0.0, %v3542
      %v3544 = vpop.f32.mrb[0].mxu0
      %v3545 = vadd.f32 0.0, %v3544
      %v3546 = vpop.f32.mrb[0].mxu0
      %v3547 = vadd.f32 0.0, %v3546
      %3548 = vdwg.mxu0
      %3549 = vmatprep.subr.bf16.mxu0 %v3482
      %3550 = vmatpush1.bf16.msra.mxu0 %v3481
      %3551 = vmatprep.subr.bf16.mxu0 0
      %3552 = vmatpush1.bf16.msra.mxu0 0
      %3553 = vmatprep.subr.bf16.mxu0 0
      %3554 = vmatpush1.bf16.msra.mxu0 0
      %3555 = vmatprep.subr.bf16.mxu0 0
      %3556 = vmatpush1.bf16.msra.mxu0 0
      %3557 = vmatprep.subr.bf16.mxu0 0
      %3558 = vmatpush1.bf16.msra.mxu0 0
      %3559 = vmatprep.subr.bf16.mxu0 0
      %3560 = vmatpush1.bf16.msra.mxu0 0
      %3561 = vmatprep.subr.bf16.mxu0 0
      %3562 = vmatpush1.bf16.msra.mxu0 0
      %3563 = vmatprep.subr.bf16.mxu0 0
      %3564 = vmatpush1.bf16.msra.mxu0 0
      %3565 = vmatprep.subr.bf16.mxu0 0
      %3566 = vmatpush1.bf16.msra.mxu0 0
      %3567 = vmatprep.subr.bf16.mxu0 0
      %3568 = vmatpush1.bf16.msra.mxu0 0
      %3569 = vmatprep.subr.bf16.mxu0 0
      %3570 = vmatpush1.bf16.msra.mxu0 0
      %3571 = vmatprep.subr.bf16.mxu0 0
      %3572 = vmatpush1.bf16.msra.mxu0 0
      %3573 = vmatprep.subr.bf16.mxu0 0
      %3574 = vmatpush1.bf16.msra.mxu0 0
      %3575 = vmatprep.subr.bf16.mxu0 0
      %3576 = vmatpush1.bf16.msra.mxu0 0
      %3577 = vmatprep.subr.bf16.mxu0 0
      %3578 = vmatpush1.bf16.msra.mxu0 0
      %3579 = vmatprep.subr.bf16.mxu0 0
      %3580 = vmatpush1.bf16.msra.mxu0 0
      %3581 = vmatprep.mubr.bf16.mxu0 0
      %3582 = vmatmul.mubr.bf16.gmra.mrb[0].mxu0 %v3491
      %v3583 = vpop.f32.mrb[0].mxu0
      %v3584 = vadd.f32 0.0, %v3583
      %v3585 = vpop.f32.mrb[0].mxu0
      %v3586 = vadd.f32 0.0, %v3585
      %v3587 = vpop.f32.mrb[0].mxu0
      %v3588 = vadd.f32 0.0, %v3587
      %v3589 = vpop.f32.mrb[0].mxu0
      %v3590 = vadd.f32 0.0, %v3589
      %3591 = vmatprep.mubr.bf16.mxu0 0
      %3592 = vmatmul.mubr.bf16.gmra.mrb[0].mxu0 %v3494
      %v3593 = vpop.f32.mrb[0].mxu0
      %v3594 = vadd.f32 0.0, %v3593
      %v3595 = vpop.f32.mrb[0].mxu0
      %v3596 = vadd.f32 0.0, %v3595
      %v3597 = vpop.f32.mrb[0].mxu0
      %v3598 = vadd.f32 0.0, %v3597
      %v3599 = vpop.f32.mrb[0].mxu0
      %v3600 = vadd.f32 0.0, %v3599
      %3601 = vdwg.mxu0
      %3602 = vmatprep.subr.bf16.mxu0 %v3478
      %3603 = vmatpush1.bf16.msra.mxu0 %v3483
      %3604 = vmatprep.subr.bf16.mxu0 0
      %3605 = vmatpush1.bf16.msra.mxu0 0
      %3606 = vmatprep.subr.bf16.mxu0 0
      %3607 = vmatpush1.bf16.msra.mxu0 0
      %3608 = vmatprep.subr.bf16.mxu0 0
      %3609 = vmatpush1.bf16.msra.mxu0 0
      %3610 = vmatprep.subr.bf16.mxu0 0
      %3611 = vmatpush1.bf16.msra.mxu0 0
      %3612 = vmatprep.subr.bf16.mxu0 0
      %3613 = vmatpush1.bf16.msra.mxu0 0
      %3614 = vmatprep.subr.bf16.mxu0 0
      %3615 = vmatpush1.bf16.msra.mxu0 0
      %3616 = vmatprep.subr.bf16.mxu0 0
      %3617 = vmatpush1.bf16.msra.mxu0 0
      %3618 = vmatprep.subr.bf16.mxu0 0
      %3619 = vmatpush1.bf16.msra.mxu0 0
      %3620 = vmatprep.subr.bf16.mxu0 0
      %3621 = vmatpush1.bf16.msra.mxu0 0
      %3622 = vmatprep.subr.bf16.mxu0 0
      %3623 = vmatpush1.bf16.msra.mxu0 0
      %3624 = vmatprep.subr.bf16.mxu0 0
      %3625 = vmatpush1.bf16.msra.mxu0 0
      %3626 = vmatprep.subr.bf16.mxu0 0
      %3627 = vmatpush1.bf16.msra.mxu0 0
      %3628 = vmatprep.subr.bf16.mxu0 0
      %3629 = vmatpush1.bf16.msra.mxu0 0
      %3630 = vmatprep.subr.bf16.mxu0 0
      %3631 = vmatpush1.bf16.msra.mxu0 0
      %3632 = vmatprep.subr.bf16.mxu0 0
      %3633 = vmatpush1.bf16.msra.mxu0 0
      %3634 = vmatprep.mubr.bf16.mxu0 0
      %3635 = vmatmul.mubr.bf16.gmra.mrb[0].mxu0 %v3491
      %v3636 = vpop.f32.mrb[0].mxu0
      %v3637 = vadd.f32 0.0, %v3636
      %v3638 = vpop.f32.mrb[0].mxu0
      %v3639 = vadd.f32 0.0, %v3638
      %v3640 = vpop.f32.mrb[0].mxu0
      %v3641 = vadd.f32 0.0, %v3640
      %v3642 = vpop.f32.mrb[0].mxu0
      %v3643 = vadd.f32 0.0, %v3642
      %3644 = vmatprep.mubr.bf16.mxu0 0
      %3645 = vmatmul.mubr.bf16.gmra.mrb[0].mxu0 %v3494
      %v3646 = vpop.f32.mrb[0].mxu0
      %v3647 = vadd.f32 0.0, %v3646
      %v3648 = vpop.f32.mrb[0].mxu0
      %v3649 = vadd.f32 0.0, %v3648
      %v3650 = vpop.f32.mrb[0].mxu0
      %v3651 = vadd.f32 0.0, %v3650
      %v3652 = vpop.f32.mrb[0].mxu0
      %v3653 = vadd.f32 0.0, %v3652
      %3654 = vdwg.mxu0
      %v3655 = vadd.f32 %v3428, %v3531
      %v3656 = vadd.f32 %v3429, %v3533
      %v3657 = vadd.f32 %v3430, %v3584
      %v3658 = vadd.f32 %v3431, %v3586
      %v3659 = vadd.f32 %v3432, %v3637
      %v3660 = vadd.f32 %v3433, %v3639
      %v3661 = vadd.f32 %v3434, %v3535
      %v3662 = vadd.f32 %v3435, %v3537
      %v3663 = vadd.f32 %v3436, %v3588
      %v3664 = vadd.f32 %v3437, %v3590
      %v3665 = vadd.f32 %v3438, %v3641
      %v3666 = vadd.f32 %v3439, %v3643
      %v3667 = vadd.f32 %v3440, %v3541
      %v3668 = vadd.f32 %v3441, %v3543
      %v3669 = vadd.f32 %v3442, %v3594
      %v3670 = vadd.f32 %v3443, %v3596
      %v3671 = vadd.f32 %v3444, %v3647
      %v3672 = vadd.f32 %v3445, %v3649
      %v3673 = vadd.f32 %v3446, %v3545
      %v3674 = vadd.f32 %v3447, %v3547
      %v3675 = vadd.f32 %v3448, %v3598
      %v3676 = vadd.f32 %v3449, %v3600
      %v3677 = vadd.f32 %v3450, %v3651
      %v3678 = vadd.f32 %v3451, %v3653
      %s3679 = scalar_lea.vmem %s3, 96
      %v3680 = vld [vmem:[%s3679] sm:$0xf]
      %v3681 = vld [vmem:[%s3679 + $0x4] sm:$0xf]
      %v3682 = vld [vmem:[%s3679 + $0x8] sm:$0xf]
      %v3683 = vld [vmem:[%s3679 + $0xc] sm:$0xf]
      %v3688 = vunpack.c.l.b16 %v3680
      %v3689 = vunpack.c.l.b16 %v3681
      %v3690 = vunpack.c.l.b16 %v3682
      %v3691 = vunpack.c.l.b16 %v3683
      %v3692 = vpack.c.b16 %v3689, %v3688
      %v3693 = vpack.c.b16 %v3691, %v3690
      %3694 = vrot.lane.b32.xlu0 %v2380, 88
      %v3695 = vpop.permute.xlu0 %3694
      %3696 = vrot.lane.b32.xlu0 %v2381, 88
      %v3697 = vpop.permute.xlu0 %3696
      %3698 = vrot.lane.b32.xlu0 %v2382, 88
      %v3699 = vpop.permute.xlu0 %3698
      %3700 = vrot.lane.b32.xlu0 %v2383, 88
      %v3701 = vpop.permute.xlu0 %3700
      %3702 = vrot.lane.b32.xlu0 %v2384, 88
      %v3703 = vpop.permute.xlu0 %3702
      %3704 = vrot.lane.b32.xlu0 %v2385, 88
      %v3705 = vpop.permute.xlu0 %3704
      %v3706 = vsel %vm1658, %v3695, %v3697
      %v3707 = vsel %vm1658, %v3697, %v3699
      %v3708 = vsel %vm1658, %v3699, %v3701
      %v3709 = vsel %vm1658, %v3701, %v3703
      %v3710 = vsel %vm1658, %v3703, %v3705
      %v3718 = vsel %vm2430, %v3692, 0
      %v3721 = vsel %vm2430, %v3693, 0
      %3723 = vmatprep.subr.bf16.mxu0 %v3707
      %3724 = vmatpush1.bf16.msra.mxu0 %v3706
      %3725 = vmatprep.subr.bf16.mxu0 0
      %3726 = vmatpush1.bf16.msra.mxu0 0
      %3727 = vmatprep.subr.bf16.mxu0 0
      %3728 = vmatpush1.bf16.msra.mxu0 0
      %3729 = vmatprep.subr.bf16.mxu0 0
      %3730 = vmatpush1.bf16.msra.mxu0 0
      %3731 = vmatprep.subr.bf16.mxu0 0
      %3732 = vmatpush1.bf16.msra.mxu0 0
      %3733 = vmatprep.subr.bf16.mxu0 0
      %3734 = vmatpush1.bf16.msra.mxu0 0
      %3735 = vmatprep.subr.bf16.mxu0 0
      %3736 = vmatpush1.bf16.msra.mxu0 0
      %3737 = vmatprep.subr.bf16.mxu0 0
      %3738 = vmatpush1.bf16.msra.mxu0 0
      %3739 = vmatprep.subr.bf16.mxu0 0
      %3740 = vmatpush1.bf16.msra.mxu0 0
      %3741 = vmatprep.subr.bf16.mxu0 0
      %3742 = vmatpush1.bf16.msra.mxu0 0
      %3743 = vmatprep.subr.bf16.mxu0 0
      %3744 = vmatpush1.bf16.msra.mxu0 0
      %3745 = vmatprep.subr.bf16.mxu0 0
      %3746 = vmatpush1.bf16.msra.mxu0 0
      %3747 = vmatprep.subr.bf16.mxu0 0
      %3748 = vmatpush1.bf16.msra.mxu0 0
      %3749 = vmatprep.subr.bf16.mxu0 0
      %3750 = vmatpush1.bf16.msra.mxu0 0
      %3751 = vmatprep.subr.bf16.mxu0 0
      %3752 = vmatpush1.bf16.msra.mxu0 0
      %3753 = vmatprep.subr.bf16.mxu0 0
      %3754 = vmatpush1.bf16.msra.mxu0 0
      %3755 = vmatprep.mubr.bf16.mxu0 0
      %3756 = vmatmul.mubr.bf16.gmra.mrb[0].mxu0 %v3718
      %v3757 = vpop.f32.mrb[0].mxu0
      %v3758 = vadd.f32 0.0, %v3757
      %v3759 = vpop.f32.mrb[0].mxu0
      %v3760 = vadd.f32 0.0, %v3759
      %v3761 = vpop.f32.mrb[0].mxu0
      %v3762 = vadd.f32 0.0, %v3761
      %v3763 = vpop.f32.mrb[0].mxu0
      %v3764 = vadd.f32 0.0, %v3763
      %3765 = vmatprep.mubr.bf16.mxu0 0
      %3766 = vmatmul.mubr.bf16.gmra.mrb[0].mxu0 %v3721
      %v3767 = vpop.f32.mrb[0].mxu0
      %v3768 = vadd.f32 0.0, %v3767
      %v3769 = vpop.f32.mrb[0].mxu0
      %v3770 = vadd.f32 0.0, %v3769
      %v3771 = vpop.f32.mrb[0].mxu0
      %v3772 = vadd.f32 0.0, %v3771
      %v3773 = vpop.f32.mrb[0].mxu0
      %v3774 = vadd.f32 0.0, %v3773
      %3775 = vdwg.mxu0
      %3776 = vmatprep.subr.bf16.mxu0 %v3709
      %3777 = vmatpush1.bf16.msra.mxu0 %v3708
      %3778 = vmatprep.subr.bf16.mxu0 0
      %3779 = vmatpush1.bf16.msra.mxu0 0
      %3780 = vmatprep.subr.bf16.mxu0 0
      %3781 = vmatpush1.bf16.msra.mxu0 0
      %3782 = vmatprep.subr.bf16.mxu0 0
      %3783 = vmatpush1.bf16.msra.mxu0 0
      %3784 = vmatprep.subr.bf16.mxu0 0
      %3785 = vmatpush1.bf16.msra.mxu0 0
      %3786 = vmatprep.subr.bf16.mxu0 0
      %3787 = vmatpush1.bf16.msra.mxu0 0
      %3788 = vmatprep.subr.bf16.mxu0 0
      %3789 = vmatpush1.bf16.msra.mxu0 0
      %3790 = vmatprep.subr.bf16.mxu0 0
      %3791 = vmatpush1.bf16.msra.mxu0 0
      %3792 = vmatprep.subr.bf16.mxu0 0
      %3793 = vmatpush1.bf16.msra.mxu0 0
      %3794 = vmatprep.subr.bf16.mxu0 0
      %3795 = vmatpush1.bf16.msra.mxu0 0
      %3796 = vmatprep.subr.bf16.mxu0 0
      %3797 = vmatpush1.bf16.msra.mxu0 0
      %3798 = vmatprep.subr.bf16.mxu0 0
      %3799 = vmatpush1.bf16.msra.mxu0 0
      %3800 = vmatprep.subr.bf16.mxu0 0
      %3801 = vmatpush1.bf16.msra.mxu0 0
      %3802 = vmatprep.subr.bf16.mxu0 0
      %3803 = vmatpush1.bf16.msra.mxu0 0
      %3804 = vmatprep.subr.bf16.mxu0 0
      %3805 = vmatpush1.bf16.msra.mxu0 0
      %3806 = vmatprep.subr.bf16.mxu0 0
      %3807 = vmatpush1.bf16.msra.mxu0 0
      %3808 = vmatprep.mubr.bf16.mxu0 0
      %3809 = vmatmul.mubr.bf16.gmra.mrb[0].mxu0 %v3718
      %v3810 = vpop.f32.mrb[0].mxu0
      %v3811 = vadd.f32 0.0, %v3810
      %v3812 = vpop.f32.mrb[0].mxu0
      %v3813 = vadd.f32 0.0, %v3812
      %v3814 = vpop.f32.mrb[0].mxu0
      %v3815 = vadd.f32 0.0, %v3814
      %v3816 = vpop.f32.mrb[0].mxu0
      %v3817 = vadd.f32 0.0, %v3816
      %3818 = vmatprep.mubr.bf16.mxu0 0
      %3819 = vmatmul.mubr.bf16.gmra.mrb[0].mxu0 %v3721
      %v3820 = vpop.f32.mrb[0].mxu0
      %v3821 = vadd.f32 0.0, %v3820
      %v3822 = vpop.f32.mrb[0].mxu0
      %v3823 = vadd.f32 0.0, %v3822
      %v3824 = vpop.f32.mrb[0].mxu0
      %v3825 = vadd.f32 0.0, %v3824
      %v3826 = vpop.f32.mrb[0].mxu0
      %v3827 = vadd.f32 0.0, %v3826
      %3828 = vdwg.mxu0
      %3829 = vmatprep.subr.bf16.mxu0 %v3705
      %3830 = vmatpush1.bf16.msra.mxu0 %v3710
      %3831 = vmatprep.subr.bf16.mxu0 0
      %3832 = vmatpush1.bf16.msra.mxu0 0
      %3833 = vmatprep.subr.bf16.mxu0 0
      %3834 = vmatpush1.bf16.msra.mxu0 0
      %3835 = vmatprep.subr.bf16.mxu0 0
      %3836 = vmatpush1.bf16.msra.mxu0 0
      %3837 = vmatprep.subr.bf16.mxu0 0
      %3838 = vmatpush1.bf16.msra.mxu0 0
      %3839 = vmatprep.subr.bf16.mxu0 0
      %3840 = vmatpush1.bf16.msra.mxu0 0
      %3841 = vmatprep.subr.bf16.mxu0 0
      %3842 = vmatpush1.bf16.msra.mxu0 0
      %3843 = vmatprep.subr.bf16.mxu0 0
      %3844 = vmatpush1.bf16.msra.mxu0 0
      %3845 = vmatprep.subr.bf16.mxu0 0
      %3846 = vmatpush1.bf16.msra.mxu0 0
      %3847 = vmatprep.subr.bf16.mxu0 0
      %3848 = vmatpush1.bf16.msra.mxu0 0
      %3849 = vmatprep.subr.bf16.mxu0 0
      %3850 = vmatpush1.bf16.msra.mxu0 0
      %3851 = vmatprep.subr.bf16.mxu0 0
      %3852 = vmatpush1.bf16.msra.mxu0 0
      %3853 = vmatprep.subr.bf16.mxu0 0
      %3854 = vmatpush1.bf16.msra.mxu0 0
      %3855 = vmatprep.subr.bf16.mxu0 0
      %3856 = vmatpush1.bf16.msra.mxu0 0
      %3857 = vmatprep.subr.bf16.mxu0 0
      %3858 = vmatpush1.bf16.msra.mxu0 0
      %3859 = vmatprep.subr.bf16.mxu0 0
      %3860 = vmatpush1.bf16.msra.mxu0 0
      %3861 = vmatprep.mubr.bf16.mxu0 0
      %3862 = vmatmul.mubr.bf16.gmra.mrb[0].mxu0 %v3718
      %v3863 = vpop.f32.mrb[0].mxu0
      %v3864 = vadd.f32 0.0, %v3863
      %v3865 = vpop.f32.mrb[0].mxu0
      %v3866 = vadd.f32 0.0, %v3865
      %v3867 = vpop.f32.mrb[0].mxu0
      %v3868 = vadd.f32 0.0, %v3867
      %v3869 = vpop.f32.mrb[0].mxu0
      %v3870 = vadd.f32 0.0, %v3869
      %3871 = vmatprep.mubr.bf16.mxu0 0
      %3872 = vmatmul.mubr.bf16.gmra.mrb[0].mxu0 %v3721
      %v3873 = vpop.f32.mrb[0].mxu0
      %v3874 = vadd.f32 0.0, %v3873
      %v3875 = vpop.f32.mrb[0].mxu0
      %v3876 = vadd.f32 0.0, %v3875
      %v3877 = vpop.f32.mrb[0].mxu0
      %v3878 = vadd.f32 0.0, %v3877
      %v3879 = vpop.f32.mrb[0].mxu0
      %v3880 = vadd.f32 0.0, %v3879
      %3881 = vdwg.mxu0
      %v3882 = vadd.f32 %v3655, %v3758
      %v3883 = vadd.f32 %v3656, %v3760
      %v3884 = vadd.f32 %v3657, %v3811
      %v3885 = vadd.f32 %v3658, %v3813
      %v3886 = vadd.f32 %v3659, %v3864
      %v3887 = vadd.f32 %v3660, %v3866
      %v3888 = vadd.f32 %v3661, %v3762
      %v3889 = vadd.f32 %v3662, %v3764
      %v3890 = vadd.f32 %v3663, %v3815
      %v3891 = vadd.f32 %v3664, %v3817
      %v3892 = vadd.f32 %v3665, %v3868
      %v3893 = vadd.f32 %v3666, %v3870
      %v3894 = vadd.f32 %v3667, %v3768
      %v3895 = vadd.f32 %v3668, %v3770
      %v3896 = vadd.f32 %v3669, %v3821
      %v3897 = vadd.f32 %v3670, %v3823
      %v3898 = vadd.f32 %v3671, %v3874
      %v3899 = vadd.f32 %v3672, %v3876
      %v3900 = vadd.f32 %v3673, %v3772
      %v3901 = vadd.f32 %v3674, %v3774
      %v3902 = vadd.f32 %v3675, %v3825
      %v3903 = vadd.f32 %v3676, %v3827
      %v3904 = vadd.f32 %v3677, %v3878
      %v3905 = vadd.f32 %v3678, %v3880
      %s3906 = scalar_lea.vmem %s3, 112
      %v3907 = vld [vmem:[%s3906] sm:$0xf]
      %v3908 = vld [vmem:[%s3906 + $0x4] sm:$0xf]
      %v3909 = vld [vmem:[%s3906 + $0x8] sm:$0xf]
      %v3910 = vld [vmem:[%s3906 + $0xc] sm:$0xf]
      %v3915 = vunpack.c.l.b16 %v3907
      %v3916 = vunpack.c.l.b16 %v3908
      %v3917 = vunpack.c.l.b16 %v3909
      %v3918 = vunpack.c.l.b16 %v3910
      %v3919 = vpack.c.b16 %v3916, %v3915
      %v3920 = vpack.c.b16 %v3918, %v3917
      %3921 = vrot.lane.b32.xlu0 %v2380, 87
      %v3922 = vpop.permute.xlu0 %3921
      %3923 = vrot.lane.b32.xlu0 %v2381, 87
      %v3924 = vpop.permute.xlu0 %3923
      %3925 = vrot.lane.b32.xlu0 %v2382, 87
      %v3926 = vpop.permute.xlu0 %3925
      %3927 = vrot.lane.b32.xlu0 %v2383, 87
      %v3928 = vpop.permute.xlu0 %3927
      %3929 = vrot.lane.b32.xlu0 %v2384, 87
      %v3930 = vpop.permute.xlu0 %3929
      %3931 = vrot.lane.b32.xlu0 %v2385, 87
      %v3932 = vpop.permute.xlu0 %3931
      %v3933 = vsel %vm1886, %v3922, %v3924
      %v3934 = vsel %vm1886, %v3924, %v3926
      %v3935 = vsel %vm1886, %v3926, %v3928
      %v3936 = vsel %vm1886, %v3928, %v3930
      %v3937 = vsel %vm1886, %v3930, %v3932
      %v3945 = vsel %vm2430, %v3919, 0
      %v3948 = vsel %vm2430, %v3920, 0
      %3950 = vmatprep.subr.bf16.mxu0 %v3934
      %3951 = vmatpush1.bf16.msra.mxu0 %v3933
      %3952 = vmatprep.subr.bf16.mxu0 0
      %3953 = vmatpush1.bf16.msra.mxu0 0
      %3954 = vmatprep.subr.bf16.mxu0 0
      %3955 = vmatpush1.bf16.msra.mxu0 0
      %3956 = vmatprep.subr.bf16.mxu0 0
      %3957 = vmatpush1.bf16.msra.mxu0 0
      %3958 = vmatprep.subr.bf16.mxu0 0
      %3959 = vmatpush1.bf16.msra.mxu0 0
      %3960 = vmatprep.subr.bf16.mxu0 0
      %3961 = vmatpush1.bf16.msra.mxu0 0
      %3962 = vmatprep.subr.bf16.mxu0 0
      %3963 = vmatpush1.bf16.msra.mxu0 0
      %3964 = vmatprep.subr.bf16.mxu0 0
      %3965 = vmatpush1.bf16.msra.mxu0 0
      %3966 = vmatprep.subr.bf16.mxu0 0
      %3967 = vmatpush1.bf16.msra.mxu0 0
      %3968 = vmatprep.subr.bf16.mxu0 0
      %3969 = vmatpush1.bf16.msra.mxu0 0
      %3970 = vmatprep.subr.bf16.mxu0 0
      %3971 = vmatpush1.bf16.msra.mxu0 0
      %3972 = vmatprep.subr.bf16.mxu0 0
      %3973 = vmatpush1.bf16.msra.mxu0 0
      %3974 = vmatprep.subr.bf16.mxu0 0
      %3975 = vmatpush1.bf16.msra.mxu0 0
      %3976 = vmatprep.subr.bf16.mxu0 0
      %3977 = vmatpush1.bf16.msra.mxu0 0
      %3978 = vmatprep.subr.bf16.mxu0 0
      %3979 = vmatpush1.bf16.msra.mxu0 0
      %3980 = vmatprep.subr.bf16.mxu0 0
      %3981 = vmatpush1.bf16.msra.mxu0 0
      %3982 = vmatprep.mubr.bf16.mxu0 0
      %3983 = vmatmul.mubr.bf16.gmra.mrb[0].mxu0 %v3945
      %v3984 = vpop.f32.mrb[0].mxu0
      %v3985 = vadd.f32 0.0, %v3984
      %v3986 = vpop.f32.mrb[0].mxu0
      %v3987 = vadd.f32 0.0, %v3986
      %v3988 = vpop.f32.mrb[0].mxu0
      %v3989 = vadd.f32 0.0, %v3988
      %v3990 = vpop.f32.mrb[0].mxu0
      %v3991 = vadd.f32 0.0, %v3990
      %3992 = vmatprep.mubr.bf16.mxu0 0
      %3993 = vmatmul.mubr.bf16.gmra.mrb[0].mxu0 %v3948
      %v3994 = vpop.f32.mrb[0].mxu0
      %v3995 = vadd.f32 0.0, %v3994
      %v3996 = vpop.f32.mrb[0].mxu0
      %v3997 = vadd.f32 0.0, %v3996
      %v3998 = vpop.f32.mrb[0].mxu0
      %v3999 = vadd.f32 0.0, %v3998
      %v4000 = vpop.f32.mrb[0].mxu0
      %v4001 = vadd.f32 0.0, %v4000
      %4002 = vdwg.mxu0
      %4003 = vmatprep.subr.bf16.mxu0 %v3936
      %4004 = vmatpush1.bf16.msra.mxu0 %v3935
      %4005 = vmatprep.subr.bf16.mxu0 0
      %4006 = vmatpush1.bf16.msra.mxu0 0
      %4007 = vmatprep.subr.bf16.mxu0 0
      %4008 = vmatpush1.bf16.msra.mxu0 0
      %4009 = vmatprep.subr.bf16.mxu0 0
      %4010 = vmatpush1.bf16.msra.mxu0 0
      %4011 = vmatprep.subr.bf16.mxu0 0
      %4012 = vmatpush1.bf16.msra.mxu0 0
      %4013 = vmatprep.subr.bf16.mxu0 0
      %4014 = vmatpush1.bf16.msra.mxu0 0
      %4015 = vmatprep.subr.bf16.mxu0 0
      %4016 = vmatpush1.bf16.msra.mxu0 0
      %4017 = vmatprep.subr.bf16.mxu0 0
      %4018 = vmatpush1.bf16.msra.mxu0 0
      %4019 = vmatprep.subr.bf16.mxu0 0
      %4020 = vmatpush1.bf16.msra.mxu0 0
      %4021 = vmatprep.subr.bf16.mxu0 0
      %4022 = vmatpush1.bf16.msra.mxu0 0
      %4023 = vmatprep.subr.bf16.mxu0 0
      %4024 = vmatpush1.bf16.msra.mxu0 0
      %4025 = vmatprep.subr.bf16.mxu0 0
      %4026 = vmatpush1.bf16.msra.mxu0 0
      %4027 = vmatprep.subr.bf16.mxu0 0
      %4028 = vmatpush1.bf16.msra.mxu0 0
      %4029 = vmatprep.subr.bf16.mxu0 0
      %4030 = vmatpush1.bf16.msra.mxu0 0
      %4031 = vmatprep.subr.bf16.mxu0 0
      %4032 = vmatpush1.bf16.msra.mxu0 0
      %4033 = vmatprep.subr.bf16.mxu0 0
      %4034 = vmatpush1.bf16.msra.mxu0 0
      %4035 = vmatprep.mubr.bf16.mxu0 0
      %4036 = vmatmul.mubr.bf16.gmra.mrb[0].mxu0 %v3945
      %v4037 = vpop.f32.mrb[0].mxu0
      %v4038 = vadd.f32 0.0, %v4037
      %v4039 = vpop.f32.mrb[0].mxu0
      %v4040 = vadd.f32 0.0, %v4039
      %v4041 = vpop.f32.mrb[0].mxu0
      %v4042 = vadd.f32 0.0, %v4041
      %v4043 = vpop.f32.mrb[0].mxu0
      %v4044 = vadd.f32 0.0, %v4043
      %4045 = vmatprep.mubr.bf16.mxu0 0
      %4046 = vmatmul.mubr.bf16.gmra.mrb[0].mxu0 %v3948
      %v4047 = vpop.f32.mrb[0].mxu0
      %v4048 = vadd.f32 0.0, %v4047
      %v4049 = vpop.f32.mrb[0].mxu0
      %v4050 = vadd.f32 0.0, %v4049
      %v4051 = vpop.f32.mrb[0].mxu0
      %v4052 = vadd.f32 0.0, %v4051
      %v4053 = vpop.f32.mrb[0].mxu0
      %v4054 = vadd.f32 0.0, %v4053
      %4055 = vdwg.mxu0
      %4056 = vmatprep.subr.bf16.mxu0 %v3932
      %4057 = vmatpush1.bf16.msra.mxu0 %v3937
      %4058 = vmatprep.subr.bf16.mxu0 0
      %4059 = vmatpush1.bf16.msra.mxu0 0
      %4060 = vmatprep.subr.bf16.mxu0 0
      %4061 = vmatpush1.bf16.msra.mxu0 0
      %4062 = vmatprep.subr.bf16.mxu0 0
      %4063 = vmatpush1.bf16.msra.mxu0 0
      %4064 = vmatprep.subr.bf16.mxu0 0
      %4065 = vmatpush1.bf16.msra.mxu0 0
      %4066 = vmatprep.subr.bf16.mxu0 0
      %4067 = vmatpush1.bf16.msra.mxu0 0
      %4068 = vmatprep.subr.bf16.mxu0 0
      %4069 = vmatpush1.bf16.msra.mxu0 0
      %4070 = vmatprep.subr.bf16.mxu0 0
      %4071 = vmatpush1.bf16.msra.mxu0 0
      %4072 = vmatprep.subr.bf16.mxu0 0
      %4073 = vmatpush1.bf16.msra.mxu0 0
      %4074 = vmatprep.subr.bf16.mxu0 0
      %4075 = vmatpush1.bf16.msra.mxu0 0
      %4076 = vmatprep.subr.bf16.mxu0 0
      %4077 = vmatpush1.bf16.msra.mxu0 0
      %4078 = vmatprep.subr.bf16.mxu0 0
      %4079 = vmatpush1.bf16.msra.mxu0 0
      %4080 = vmatprep.subr.bf16.mxu0 0
      %4081 = vmatpush1.bf16.msra.mxu0 0
      %4082 = vmatprep.subr.bf16.mxu0 0
      %4083 = vmatpush1.bf16.msra.mxu0 0
      %4084 = vmatprep.subr.bf16.mxu0 0
      %4085 = vmatpush1.bf16.msra.mxu0 0
      %4086 = vmatprep.subr.bf16.mxu0 0
      %4087 = vmatpush1.bf16.msra.mxu0 0
      %4088 = vmatprep.mubr.bf16.mxu0 0
      %4089 = vmatmul.mubr.bf16.gmra.mrb[0].mxu0 %v3945
      %v4090 = vpop.f32.mrb[0].mxu0
      %v4091 = vadd.f32 0.0, %v4090
      %v4092 = vpop.f32.mrb[0].mxu0
      %v4093 = vadd.f32 0.0, %v4092
      %v4094 = vpop.f32.mrb[0].mxu0
      %v4095 = vadd.f32 0.0, %v4094
      %v4096 = vpop.f32.mrb[0].mxu0
      %v4097 = vadd.f32 0.0, %v4096
      %4098 = vmatprep.mubr.bf16.mxu0 0
      %4099 = vmatmul.mubr.bf16.gmra.mrb[0].mxu0 %v3948
      %v4100 = vpop.f32.mrb[0].mxu0
      %v4101 = vadd.f32 0.0, %v4100
      %v4102 = vpop.f32.mrb[0].mxu0
      %v4103 = vadd.f32 0.0, %v4102
      %v4104 = vpop.f32.mrb[0].mxu0
      %v4105 = vadd.f32 0.0, %v4104
      %v4106 = vpop.f32.mrb[0].mxu0
      %v4107 = vadd.f32 0.0, %v4106
      %4108 = vdwg.mxu0
      %v4109 = vadd.f32 %v3882, %v3985
      %v4110 = vadd.f32 %v3883, %v3987
      %v4111 = vadd.f32 %v3884, %v4038
      %v4112 = vadd.f32 %v3885, %v4040
      %v4113 = vadd.f32 %v3886, %v4091
      %v4114 = vadd.f32 %v3887, %v4093
      %v4115 = vadd.f32 %v3888, %v3989
      %v4116 = vadd.f32 %v3889, %v3991
      %v4117 = vadd.f32 %v3890, %v4042
      %v4118 = vadd.f32 %v3891, %v4044
      %v4119 = vadd.f32 %v3892, %v4095
      %v4120 = vadd.f32 %v3893, %v4097
      %v4121 = vadd.f32 %v3894, %v3995
      %v4122 = vadd.f32 %v3895, %v3997
      %v4123 = vadd.f32 %v3896, %v4048
      %v4124 = vadd.f32 %v3897, %v4050
      %v4125 = vadd.f32 %v3898, %v4101
      %v4126 = vadd.f32 %v3899, %v4103
      %v4127 = vadd.f32 %v3900, %v3999
      %v4128 = vadd.f32 %v3901, %v4001
      %v4129 = vadd.f32 %v3902, %v4052
      %v4130 = vadd.f32 %v3903, %v4054
      %v4131 = vadd.f32 %v3904, %v4105
      %v4132 = vadd.f32 %v3905, %v4107
      %s4133 = scalar_lea.vmem %s3, 128
      %v4134 = vld [vmem:[%s4133] sm:$0xf]
      %v4135 = vld [vmem:[%s4133 + $0x4] sm:$0xf]
      %v4136 = vld [vmem:[%s4133 + $0x8] sm:$0xf]
      %v4137 = vld [vmem:[%s4133 + $0xc] sm:$0xf]
      %v4142 = vunpack.c.l.b16 %v4134
      %v4143 = vunpack.c.l.b16 %v4135
      %v4144 = vunpack.c.l.b16 %v4136
      %v4145 = vunpack.c.l.b16 %v4137
      %v4146 = vpack.c.b16 %v4143, %v4142
      %v4147 = vpack.c.b16 %v4145, %v4144
      %4148 = vrot.lane.b32.xlu0 %v2380, 86
      %v4149 = vpop.permute.xlu0 %4148
      %4150 = vrot.lane.b32.xlu0 %v2381, 86
      %v4151 = vpop.permute.xlu0 %4150
      %4152 = vrot.lane.b32.xlu0 %v2382, 86
      %v4153 = vpop.permute.xlu0 %4152
      %4154 = vrot.lane.b32.xlu0 %v2383, 86
      %v4155 = vpop.permute.xlu0 %4154
      %4156 = vrot.lane.b32.xlu0 %v2384, 86
      %v4157 = vpop.permute.xlu0 %4156
      %4158 = vrot.lane.b32.xlu0 %v2385, 86
      %v4159 = vpop.permute.xlu0 %4158
      %v4160 = vsel %vm2114, %v4149, %v4151
      %v4161 = vsel %vm2114, %v4151, %v4153
      %v4162 = vsel %vm2114, %v4153, %v4155
      %v4163 = vsel %vm2114, %v4155, %v4157
      %v4164 = vsel %vm2114, %v4157, %v4159
      %v4172 = vsel %vm2430, %v4146, 0
      %v4175 = vsel %vm2430, %v4147, 0
      %4177 = vmatprep.subr.bf16.mxu0 %v4161
      %4178 = vmatpush1.bf16.msra.mxu0 %v4160
      %4179 = vmatprep.subr.bf16.mxu0 0
      %4180 = vmatpush1.bf16.msra.mxu0 0
      %4181 = vmatprep.subr.bf16.mxu0 0
      %4182 = vmatpush1.bf16.msra.mxu0 0
      %4183 = vmatprep.subr.bf16.mxu0 0
      %4184 = vmatpush1.bf16.msra.mxu0 0
      %4185 = vmatprep.subr.bf16.mxu0 0
      %4186 = vmatpush1.bf16.msra.mxu0 0
      %4187 = vmatprep.subr.bf16.mxu0 0
      %4188 = vmatpush1.bf16.msra.mxu0 0
      %4189 = vmatprep.subr.bf16.mxu0 0
      %4190 = vmatpush1.bf16.msra.mxu0 0
      %4191 = vmatprep.subr.bf16.mxu0 0
      %4192 = vmatpush1.bf16.msra.mxu0 0
      %4193 = vmatprep.subr.bf16.mxu0 0
      %4194 = vmatpush1.bf16.msra.mxu0 0
      %4195 = vmatprep.subr.bf16.mxu0 0
      %4196 = vmatpush1.bf16.msra.mxu0 0
      %4197 = vmatprep.subr.bf16.mxu0 0
      %4198 = vmatpush1.bf16.msra.mxu0 0
      %4199 = vmatprep.subr.bf16.mxu0 0
      %4200 = vmatpush1.bf16.msra.mxu0 0
      %4201 = vmatprep.subr.bf16.mxu0 0
      %4202 = vmatpush1.bf16.msra.mxu0 0
      %4203 = vmatprep.subr.bf16.mxu0 0
      %4204 = vmatpush1.bf16.msra.mxu0 0
      %4205 = vmatprep.subr.bf16.mxu0 0
      %4206 = vmatpush1.bf16.msra.mxu0 0
      %4207 = vmatprep.subr.bf16.mxu0 0
      %4208 = vmatpush1.bf16.msra.mxu0 0
      %4209 = vmatprep.mubr.bf16.mxu0 0
      %4210 = vmatmul.mubr.bf16.gmra.mrb[0].mxu0 %v4172
      %v4211 = vpop.f32.mrb[0].mxu0
      %v4212 = vadd.f32 0.0, %v4211
      %v4213 = vpop.f32.mrb[0].mxu0
      %v4214 = vadd.f32 0.0, %v4213
      %v4215 = vpop.f32.mrb[0].mxu0
      %v4216 = vadd.f32 0.0, %v4215
      %v4217 = vpop.f32.mrb[0].mxu0
      %v4218 = vadd.f32 0.0, %v4217
      %4219 = vmatprep.mubr.bf16.mxu0 0
      %4220 = vmatmul.mubr.bf16.gmra.mrb[0].mxu0 %v4175
      %v4221 = vpop.f32.mrb[0].mxu0
      %v4222 = vadd.f32 0.0, %v4221
      %v4223 = vpop.f32.mrb[0].mxu0
      %v4224 = vadd.f32 0.0, %v4223
      %v4225 = vpop.f32.mrb[0].mxu0
      %v4226 = vadd.f32 0.0, %v4225
      %v4227 = vpop.f32.mrb[0].mxu0
      %v4228 = vadd.f32 0.0, %v4227
      %4229 = vdwg.mxu0
      %4230 = vmatprep.subr.bf16.mxu0 %v4163
      %4231 = vmatpush1.bf16.msra.mxu0 %v4162
      %4232 = vmatprep.subr.bf16.mxu0 0
      %4233 = vmatpush1.bf16.msra.mxu0 0
      %4234 = vmatprep.subr.bf16.mxu0 0
      %4235 = vmatpush1.bf16.msra.mxu0 0
      %4236 = vmatprep.subr.bf16.mxu0 0
      %4237 = vmatpush1.bf16.msra.mxu0 0
      %4238 = vmatprep.subr.bf16.mxu0 0
      %4239 = vmatpush1.bf16.msra.mxu0 0
      %4240 = vmatprep.subr.bf16.mxu0 0
      %4241 = vmatpush1.bf16.msra.mxu0 0
      %4242 = vmatprep.subr.bf16.mxu0 0
      %4243 = vmatpush1.bf16.msra.mxu0 0
      %4244 = vmatprep.subr.bf16.mxu0 0
      %4245 = vmatpush1.bf16.msra.mxu0 0
      %4246 = vmatprep.subr.bf16.mxu0 0
      %4247 = vmatpush1.bf16.msra.mxu0 0
      %4248 = vmatprep.subr.bf16.mxu0 0
      %4249 = vmatpush1.bf16.msra.mxu0 0
      %4250 = vmatprep.subr.bf16.mxu0 0
      %4251 = vmatpush1.bf16.msra.mxu0 0
      %4252 = vmatprep.subr.bf16.mxu0 0
      %4253 = vmatpush1.bf16.msra.mxu0 0
      %4254 = vmatprep.subr.bf16.mxu0 0
      %4255 = vmatpush1.bf16.msra.mxu0 0
      %4256 = vmatprep.subr.bf16.mxu0 0
      %4257 = vmatpush1.bf16.msra.mxu0 0
      %4258 = vmatprep.subr.bf16.mxu0 0
      %4259 = vmatpush1.bf16.msra.mxu0 0
      %4260 = vmatprep.subr.bf16.mxu0 0
      %4261 = vmatpush1.bf16.msra.mxu0 0
      %4262 = vmatprep.mubr.bf16.mxu0 0
      %4263 = vmatmul.mubr.bf16.gmra.mrb[0].mxu0 %v4172
      %v4264 = vpop.f32.mrb[0].mxu0
      %v4265 = vadd.f32 0.0, %v4264
      %v4266 = vpop.f32.mrb[0].mxu0
      %v4267 = vadd.f32 0.0, %v4266
      %v4268 = vpop.f32.mrb[0].mxu0
      %v4269 = vadd.f32 0.0, %v4268
      %v4270 = vpop.f32.mrb[0].mxu0
      %v4271 = vadd.f32 0.0, %v4270
      %4272 = vmatprep.mubr.bf16.mxu0 0
      %4273 = vmatmul.mubr.bf16.gmra.mrb[0].mxu0 %v4175
      %v4274 = vpop.f32.mrb[0].mxu0
      %v4275 = vadd.f32 0.0, %v4274
      %v4276 = vpop.f32.mrb[0].mxu0
      %v4277 = vadd.f32 0.0, %v4276
      %v4278 = vpop.f32.mrb[0].mxu0
      %v4279 = vadd.f32 0.0, %v4278
      %v4280 = vpop.f32.mrb[0].mxu0
      %v4281 = vadd.f32 0.0, %v4280
      %4282 = vdwg.mxu0
      %4283 = vmatprep.subr.bf16.mxu0 %v4159
      %4284 = vmatpush1.bf16.msra.mxu0 %v4164
      %4285 = vmatprep.subr.bf16.mxu0 0
      %4286 = vmatpush1.bf16.msra.mxu0 0
      %4287 = vmatprep.subr.bf16.mxu0 0
      %4288 = vmatpush1.bf16.msra.mxu0 0
      %4289 = vmatprep.subr.bf16.mxu0 0
      %4290 = vmatpush1.bf16.msra.mxu0 0
      %4291 = vmatprep.subr.bf16.mxu0 0
      %4292 = vmatpush1.bf16.msra.mxu0 0
      %4293 = vmatprep.subr.bf16.mxu0 0
      %4294 = vmatpush1.bf16.msra.mxu0 0
      %4295 = vmatprep.subr.bf16.mxu0 0
      %4296 = vmatpush1.bf16.msra.mxu0 0
      %4297 = vmatprep.subr.bf16.mxu0 0
      %4298 = vmatpush1.bf16.msra.mxu0 0
      %4299 = vmatprep.subr.bf16.mxu0 0
      %4300 = vmatpush1.bf16.msra.mxu0 0
      %4301 = vmatprep.subr.bf16.mxu0 0
      %4302 = vmatpush1.bf16.msra.mxu0 0
      %4303 = vmatprep.subr.bf16.mxu0 0
      %4304 = vmatpush1.bf16.msra.mxu0 0
      %4305 = vmatprep.subr.bf16.mxu0 0
      %4306 = vmatpush1.bf16.msra.mxu0 0
      %4307 = vmatprep.subr.bf16.mxu0 0
      %4308 = vmatpush1.bf16.msra.mxu0 0
      %4309 = vmatprep.subr.bf16.mxu0 0
      %4310 = vmatpush1.bf16.msra.mxu0 0
      %4311 = vmatprep.subr.bf16.mxu0 0
      %4312 = vmatpush1.bf16.msra.mxu0 0
      %4313 = vmatprep.subr.bf16.mxu0 0
      %4314 = vmatpush1.bf16.msra.mxu0 0
      %4315 = vmatprep.mubr.bf16.mxu0 0
      %4316 = vmatmul.mubr.bf16.gmra.mrb[0].mxu0 %v4172
      %v4317 = vpop.f32.mrb[0].mxu0
      %v4318 = vadd.f32 0.0, %v4317
      %v4319 = vpop.f32.mrb[0].mxu0
      %v4320 = vadd.f32 0.0, %v4319
      %v4321 = vpop.f32.mrb[0].mxu0
      %v4322 = vadd.f32 0.0, %v4321
      %v4323 = vpop.f32.mrb[0].mxu0
      %v4324 = vadd.f32 0.0, %v4323
      %4325 = vmatprep.mubr.bf16.mxu0 0
      %4326 = vmatmul.mubr.bf16.gmra.mrb[0].mxu0 %v4175
      %v4327 = vpop.f32.mrb[0].mxu0
      %v4328 = vadd.f32 0.0, %v4327
      %v4329 = vpop.f32.mrb[0].mxu0
      %v4330 = vadd.f32 0.0, %v4329
      %v4331 = vpop.f32.mrb[0].mxu0
      %v4332 = vadd.f32 0.0, %v4331
      %v4333 = vpop.f32.mrb[0].mxu0
      %v4334 = vadd.f32 0.0, %v4333
      %4335 = vdwg.mxu0
      %v4336 = vadd.f32 %v4109, %v4212
      %v4337 = vadd.f32 %v4110, %v4214
      %v4338 = vadd.f32 %v4111, %v4265
      %v4339 = vadd.f32 %v4112, %v4267
      %v4340 = vadd.f32 %v4113, %v4318
      %v4341 = vadd.f32 %v4114, %v4320
      %v4342 = vadd.f32 %v4115, %v4216
      %v4343 = vadd.f32 %v4116, %v4218
      %v4344 = vadd.f32 %v4117, %v4269
      %v4345 = vadd.f32 %v4118, %v4271
      %v4346 = vadd.f32 %v4119, %v4322
      %v4347 = vadd.f32 %v4120, %v4324
      %v4348 = vadd.f32 %v4121, %v4222
      %v4349 = vadd.f32 %v4122, %v4224
      %v4350 = vadd.f32 %v4123, %v4275
      %v4351 = vadd.f32 %v4124, %v4277
      %v4352 = vadd.f32 %v4125, %v4328
      %v4353 = vadd.f32 %v4126, %v4330
      %v4354 = vadd.f32 %v4127, %v4226
      %v4355 = vadd.f32 %v4128, %v4228
      %v4356 = vadd.f32 %v4129, %v4279
      %v4357 = vadd.f32 %v4130, %v4281
      %v4358 = vadd.f32 %v4131, %v4332
      %v4359 = vadd.f32 %v4132, %v4334
      %v4360 = vld [vmem:[%s4] sm:$0xff]
      %v4361 = vld [vmem:[%s4 + $0x8] sm:$0xff]
      %v4362 = vld [vmem:[%s4 + $0x10] sm:$0xff]
      %v4363 = vld [vmem:[%s4 + $0x18] sm:$0xff]
      %4365 = vset.pattern.permute.xlu0 0
      %4366 = vperm.xlu0 %4365, %v4360
      %v4367 = vpop.permute.xlu0 %4366
      %4370 = vset.pattern.permute.xlu0 0
      %4371 = vperm.xlu0 %4370, %v4361
      %v4372 = vpop.permute.xlu0 %4371
      %4375 = vset.pattern.permute.xlu0 0
      %4376 = vperm.xlu0 %4375, %v4362
      %v4377 = vpop.permute.xlu0 %4376
      %4380 = vset.pattern.permute.xlu0 0
      %4381 = vperm.xlu0 %4380, %v4363
      %v4382 = vpop.permute.xlu0 %4381
      %v4384 = vadd.f32 %v4336, %v4367
      %v4385 = vadd.f32 %v4337, %v4367
      %v4386 = vadd.f32 %v4338, %v4367
      %v4387 = vadd.f32 %v4339, %v4367
      %v4388 = vadd.f32 %v4340, %v4367
      %v4389 = vadd.f32 %v4341, %v4367
      %v4390 = vadd.f32 %v4342, %v4372
      %v4391 = vadd.f32 %v4343, %v4372
      %v4392 = vadd.f32 %v4344, %v4372
      %v4393 = vadd.f32 %v4345, %v4372
      %v4394 = vadd.f32 %v4346, %v4372
      %v4395 = vadd.f32 %v4347, %v4372
      %v4396 = vadd.f32 %v4348, %v4377
      %v4397 = vadd.f32 %v4349, %v4377
      %v4398 = vadd.f32 %v4350, %v4377
      %v4399 = vadd.f32 %v4351, %v4377
      %v4400 = vadd.f32 %v4352, %v4377
      %v4401 = vadd.f32 %v4353, %v4377
      %v4402 = vadd.f32 %v4354, %v4382
      %v4403 = vadd.f32 %v4355, %v4382
      %v4404 = vadd.f32 %v4356, %v4382
      %v4405 = vadd.f32 %v4357, %v4382
      %v4406 = vadd.f32 %v4358, %v4382
      %v4407 = vadd.f32 %v4359, %v4382
      %v4408 = vmax.f32 %v4384, 0.0
      %v4409 = vmax.f32 %v4385, 0.0
      %v4410 = vmax.f32 %v4386, 0.0
      %v4411 = vmax.f32 %v4387, 0.0
      %v4412 = vmax.f32 %v4388, 0.0
      %v4413 = vmax.f32 %v4389, 0.0
      %v4414 = vmax.f32 %v4390, 0.0
      %v4415 = vmax.f32 %v4391, 0.0
      %v4416 = vmax.f32 %v4392, 0.0
      %v4417 = vmax.f32 %v4393, 0.0
      %v4418 = vmax.f32 %v4394, 0.0
      %v4419 = vmax.f32 %v4395, 0.0
      %v4420 = vmax.f32 %v4396, 0.0
      %v4421 = vmax.f32 %v4397, 0.0
      %v4422 = vmax.f32 %v4398, 0.0
      %v4423 = vmax.f32 %v4399, 0.0
      %v4424 = vmax.f32 %v4400, 0.0
      %v4425 = vmax.f32 %v4401, 0.0
      %v4426 = vmax.f32 %v4402, 0.0
      %v4427 = vmax.f32 %v4403, 0.0
      %v4428 = vmax.f32 %v4404, 0.0
      %v4429 = vmax.f32 %v4405, 0.0
      %v4430 = vmax.f32 %v4406, 0.0
      %v4431 = vmax.f32 %v4407, 0.0
      %v4432 = vld [vmem:[%s8] sm:$0xff]
      %v4433 = vld [vmem:[%s8 + $0x8] sm:$0xff]
      %v4434 = vld [vmem:[%s8 + $0x10] sm:$0xff]
      %v4435 = vld [vmem:[%s8 + $0x18] sm:$0xff]
      %v4436 = vld [vmem:[%s8 + $0x20] sm:$0xff]
      %v4437 = vld [vmem:[%s8 + $0x28] sm:$0xff]
      %v4438 = vld [vmem:[%s8 + $0x30] sm:$0xff]
      %v4439 = vld [vmem:[%s8 + $0x38] sm:$0xff]
      %v4440 = vld [vmem:[%s8 + $0x40] sm:$0xff]
      %v4441 = vld [vmem:[%s8 + $0x48] sm:$0xff]
      %v4442 = vld [vmem:[%s8 + $0x50] sm:$0xff]
      %v4443 = vld [vmem:[%s8 + $0x58] sm:$0xff]
      %v4444 = vld [vmem:[%s8 + $0x60] sm:$0xff]
      %v4445 = vld [vmem:[%s8 + $0x68] sm:$0xff]
      %v4446 = vld [vmem:[%s8 + $0x70] sm:$0xff]
      %v4447 = vld [vmem:[%s8 + $0x78] sm:$0xff]
      %v4448 = vld [vmem:[%s8 + $0x80] sm:$0xff]
      %v4449 = vld [vmem:[%s8 + $0x88] sm:$0xff]
      %v4450 = vld [vmem:[%s8 + $0x90] sm:$0xff]
      %v4451 = vld [vmem:[%s8 + $0x98] sm:$0xff]
      %v4452 = vld [vmem:[%s8 + $0xa0] sm:$0xff]
      %v4453 = vld [vmem:[%s8 + $0xa8] sm:$0xff]
      %v4454 = vld [vmem:[%s8 + $0xb0] sm:$0xff]
      %v4455 = vld [vmem:[%s8 + $0xb8] sm:$0xff]
      %v4456 = vld [vmem:[%s8 + $0xc0] sm:$0xff]
      %v4457 = vld [vmem:[%s8 + $0xc8] sm:$0xff]
      %v4458 = vld [vmem:[%s8 + $0xd0] sm:$0xff]
      %v4459 = vld [vmem:[%s8 + $0xd8] sm:$0xff]
      %v4460 = vld [vmem:[%s8 + $0xe0] sm:$0xff]
      %v4461 = vld [vmem:[%s8 + $0xe8] sm:$0xff]
      %v4462 = vld [vmem:[%s8 + $0xf0] sm:$0xff]
      %v4463 = vld [vmem:[%s8 + $0xf8] sm:$0xff]
      %v4464 = vld [vmem:[%s8 + $0x100] sm:$0xff]
      %v4465 = vld [vmem:[%s8 + $0x108] sm:$0xff]
      %v4466 = vld [vmem:[%s8 + $0x110] sm:$0xff]
      %v4467 = vld [vmem:[%s8 + $0x118] sm:$0xff]
      %v4468 = vld [vmem:[%s8 + $0x120] sm:$0xff]
      %v4469 = vld [vmem:[%s8 + $0x128] sm:$0xff]
      %v4470 = vld [vmem:[%s8 + $0x130] sm:$0xff]
      %v4471 = vld [vmem:[%s8 + $0x138] sm:$0xff]
      %v4472 = vld [vmem:[%s8 + $0x140] sm:$0xff]
      %v4473 = vld [vmem:[%s8 + $0x148] sm:$0xff]
      %v4474 = vld [vmem:[%s8 + $0x150] sm:$0xff]
      %v4475 = vld [vmem:[%s8 + $0x158] sm:$0xff]
      %v4476 = vld [vmem:[%s8 + $0x160] sm:$0xff]
      %v4477 = vld [vmem:[%s8 + $0x168] sm:$0xff]
      %v4478 = vld [vmem:[%s8 + $0x170] sm:$0xff]
      %v4479 = vld [vmem:[%s8 + $0x178] sm:$0xff]
      %v4480 = vld [vmem:[%s8 + $0x180] sm:$0xff]
      %v4481 = vld [vmem:[%s8 + $0x188] sm:$0xff]
      %v4482 = vld [vmem:[%s8 + $0x190] sm:$0xff]
      %v4483 = vld [vmem:[%s8 + $0x198] sm:$0xff]
      %v4484 = vld [vmem:[%s8 + $0x1a0] sm:$0xff]
      %v4485 = vld [vmem:[%s8 + $0x1a8] sm:$0xff]
      %v4486 = vld [vmem:[%s8 + $0x1b0] sm:$0xff]
      %v4487 = vld [vmem:[%s8 + $0x1b8] sm:$0xff]
      %v4488 = vld [vmem:[%s8 + $0x1c0] sm:$0xff]
      %v4489 = vld [vmem:[%s8 + $0x1c8] sm:$0xff]
      %v4490 = vld [vmem:[%s8 + $0x1d0] sm:$0xff]
      %v4491 = vld [vmem:[%s8 + $0x1d8] sm:$0xff]
      %v4492 = vld [vmem:[%s8 + $0x1e0] sm:$0xff]
      %v4493 = vld [vmem:[%s8 + $0x1e8] sm:$0xff]
      %v4494 = vld [vmem:[%s8 + $0x1f0] sm:$0xff]
      %v4495 = vld [vmem:[%s8 + $0x1f8] sm:$0xff]
      %v4496 = vld [vmem:[%s8 + $0x200] sm:$0xff]
      %v4497 = vld [vmem:[%s8 + $0x208] sm:$0xff]
      %v4498 = vld [vmem:[%s8 + $0x210] sm:$0xff]
      %v4499 = vld [vmem:[%s8 + $0x218] sm:$0xff]
      %v4500 = vld [vmem:[%s8 + $0x220] sm:$0xff]
      %v4501 = vld [vmem:[%s8 + $0x228] sm:$0xff]
      %v4502 = vld [vmem:[%s8 + $0x230] sm:$0xff]
      %v4503 = vld [vmem:[%s8 + $0x238] sm:$0xff]
      %v4504 = vld [vmem:[%s8 + $0x240] sm:$0xff]
      %v4505 = vld [vmem:[%s8 + $0x248] sm:$0xff]
      %v4506 = vld [vmem:[%s8 + $0x250] sm:$0xff]
      %v4507 = vld [vmem:[%s8 + $0x258] sm:$0xff]
      %v4508 = vld [vmem:[%s8 + $0x260] sm:$0xff]
      %v4509 = vld [vmem:[%s8 + $0x268] sm:$0xff]
      %v4510 = vld [vmem:[%s8 + $0x270] sm:$0xff]
      %v4511 = vld [vmem:[%s8 + $0x278] sm:$0xff]
      %v4512 = vld [vmem:[%s8 + $0x280] sm:$0xff]
      %v4513 = vld [vmem:[%s8 + $0x288] sm:$0xff]
      %v4514 = vld [vmem:[%s8 + $0x290] sm:$0xff]
      %v4515 = vld [vmem:[%s8 + $0x298] sm:$0xff]
      %v4516 = vld [vmem:[%s8 + $0x2a0] sm:$0xff]
      %v4517 = vld [vmem:[%s8 + $0x2a8] sm:$0xff]
      %v4518 = vld [vmem:[%s8 + $0x2b0] sm:$0xff]
      %v4519 = vld [vmem:[%s8 + $0x2b8] sm:$0xff]
      %v4520 = vld [vmem:[%s8 + $0x2c0] sm:$0xff]
      %v4521 = vld [vmem:[%s8 + $0x2c8] sm:$0xf]
      %vm4522 = vcmask 621568
      %v4524 = vsel %vm4522, %v4413, 0
      %v4527 = vsel %vm4522, %v4419, 0
      %v4530 = vsel %vm4522, %v4425, 0
      %v4533 = vsel %vm4522, %v4431, 0
      %vm4535 = vcmask 1043456
      %v4537 = vsel %vm4535, %v4521, 0
      %4539 = vmatprep.subr.mxu0 0.0
      %4540 = vmatpush1.msra.mxu0 %v4432
      %4541 = vmatprep.subr.mxu0 0.0
      %4542 = vmatpush1.msra.mxu0 %v4433
      %4543 = vmatprep.subr.mxu0 0.0
      %4544 = vmatpush1.msra.mxu0 %v4434
      %4545 = vmatprep.subr.mxu0 0.0
      %4546 = vmatpush1.msra.mxu0 %v4435
      %4547 = vmatprep.subr.mxu0 0.0
      %4548 = vmatpush1.msra.mxu0 %v4436
      %4549 = vmatprep.subr.mxu0 0.0
      %4550 = vmatpush1.msra.mxu0 %v4437
      %4551 = vmatprep.subr.mxu0 0.0
      %4552 = vmatpush1.msra.mxu0 %v4438
      %4553 = vmatprep.subr.mxu0 0.0
      %4554 = vmatpush1.msra.mxu0 %v4439
      %4555 = vmatprep.subr.mxu0 0.0
      %4556 = vmatpush1.msra.mxu0 %v4440
      %4557 = vmatprep.subr.mxu0 0.0
      %4558 = vmatpush1.msra.mxu0 %v4441
      %4559 = vmatprep.subr.mxu0 0.0
      %4560 = vmatpush1.msra.mxu0 %v4442
      %4561 = vmatprep.subr.mxu0 0.0
      %4562 = vmatpush1.msra.mxu0 %v4443
      %4563 = vmatprep.subr.mxu0 0.0
      %4564 = vmatpush1.msra.mxu0 %v4444
      %4565 = vmatprep.subr.mxu0 0.0
      %4566 = vmatpush1.msra.mxu0 %v4445
      %4567 = vmatprep.subr.mxu0 0.0
      %4568 = vmatpush1.msra.mxu0 %v4446
      %4569 = vmatprep.subr.mxu0 0.0
      %4570 = vmatpush1.msra.mxu0 %v4447
      %4571 = vmatprep.subr.mxu0 0.0
      %4572 = vmatpush1.msra.mxu0 %v4448
      %4573 = vmatprep.subr.mxu0 0.0
      %4574 = vmatpush1.msra.mxu0 %v4449
      %4575 = vmatprep.subr.mxu0 0.0
      %4576 = vmatpush1.msra.mxu0 %v4450
      %4577 = vmatprep.subr.mxu0 0.0
      %4578 = vmatpush1.msra.mxu0 %v4451
      %4579 = vmatprep.subr.mxu0 0.0
      %4580 = vmatpush1.msra.mxu0 %v4452
      %4581 = vmatprep.subr.mxu0 0.0
      %4582 = vmatpush1.msra.mxu0 %v4453
      %4583 = vmatprep.subr.mxu0 0.0
      %4584 = vmatpush1.msra.mxu0 %v4454
      %4585 = vmatprep.subr.mxu0 0.0
      %4586 = vmatpush1.msra.mxu0 %v4455
      %4587 = vmatprep.subr.mxu0 0.0
      %4588 = vmatpush1.msra.mxu0 %v4456
      %4589 = vmatprep.subr.mxu0 0.0
      %4590 = vmatpush1.msra.mxu0 %v4457
      %4591 = vmatprep.subr.mxu0 0.0
      %4592 = vmatpush1.msra.mxu0 %v4458
      %4593 = vmatprep.subr.mxu0 0.0
      %4594 = vmatpush1.msra.mxu0 %v4459
      %4595 = vmatprep.subr.mxu0 0.0
      %4596 = vmatpush1.msra.mxu0 %v4460
      %4597 = vmatprep.subr.mxu0 0.0
      %4598 = vmatpush1.msra.mxu0 %v4461
      %4599 = vmatprep.subr.mxu0 0.0
      %4600 = vmatpush1.msra.mxu0 %v4462
      %4601 = vmatprep.subr.mxu0 0.0
      %4602 = vmatpush1.msra.mxu0 %v4463
      %4603 = vmatprep.mubr.f32.mxu0 %v4409
      %4604 = vmatmul.mubr.f32.gmra.mrb[0].mxu0 %v4408
      %v4605 = vpop.f32.mrb[0].mxu0
      %v4606 = vadd.f32 0.0, %v4605
      %v4607 = vpop.f32.mrb[0].mxu0
      %4608 = vmatprep.mubr.f32.mxu0 %v4415
      %4609 = vmatmul.mubr.f32.gmra.mrb[0].mxu0 %v4414
      %v4610 = vpop.f32.mrb[0].mxu0
      %v4611 = vadd.f32 0.0, %v4610
      %v4612 = vpop.f32.mrb[0].mxu0
      %4613 = vmatprep.mubr.f32.mxu0 %v4421
      %4614 = vmatmul.mubr.f32.gmra.mrb[0].mxu0 %v4420
      %v4615 = vpop.f32.mrb[0].mxu0
      %v4616 = vadd.f32 0.0, %v4615
      %v4617 = vpop.f32.mrb[0].mxu0
      %4618 = vmatprep.mubr.f32.mxu0 %v4427
      %4619 = vmatmul.mubr.f32.gmra.mrb[0].mxu0 %v4426
      %v4620 = vpop.f32.mrb[0].mxu0
      %v4621 = vadd.f32 0.0, %v4620
      %v4622 = vpop.f32.mrb[0].mxu0
      %4623 = vdwg.mxu0
      %4624 = vmatprep.subr.mxu0 0.0
      %4625 = vmatpush1.msra.mxu0 %v4464
      %4626 = vmatprep.subr.mxu0 0.0
      %4627 = vmatpush1.msra.mxu0 %v4465
      %4628 = vmatprep.subr.mxu0 0.0
      %4629 = vmatpush1.msra.mxu0 %v4466
      %4630 = vmatprep.subr.mxu0 0.0
      %4631 = vmatpush1.msra.mxu0 %v4467
      %4632 = vmatprep.subr.mxu0 0.0
      %4633 = vmatpush1.msra.mxu0 %v4468
      %4634 = vmatprep.subr.mxu0 0.0
      %4635 = vmatpush1.msra.mxu0 %v4469
      %4636 = vmatprep.subr.mxu0 0.0
      %4637 = vmatpush1.msra.mxu0 %v4470
      %4638 = vmatprep.subr.mxu0 0.0
      %4639 = vmatpush1.msra.mxu0 %v4471
      %4640 = vmatprep.subr.mxu0 0.0
      %4641 = vmatpush1.msra.mxu0 %v4472
      %4642 = vmatprep.subr.mxu0 0.0
      %4643 = vmatpush1.msra.mxu0 %v4473
      %4644 = vmatprep.subr.mxu0 0.0
      %4645 = vmatpush1.msra.mxu0 %v4474
      %4646 = vmatprep.subr.mxu0 0.0
      %4647 = vmatpush1.msra.mxu0 %v4475
      %4648 = vmatprep.subr.mxu0 0.0
      %4649 = vmatpush1.msra.mxu0 %v4476
      %4650 = vmatprep.subr.mxu0 0.0
      %4651 = vmatpush1.msra.mxu0 %v4477
      %4652 = vmatprep.subr.mxu0 0.0
      %4653 = vmatpush1.msra.mxu0 %v4478
      %4654 = vmatprep.subr.mxu0 0.0
      %4655 = vmatpush1.msra.mxu0 %v4479
      %4656 = vmatprep.subr.mxu0 0.0
      %4657 = vmatpush1.msra.mxu0 %v4480
      %4658 = vmatprep.subr.mxu0 0.0
      %4659 = vmatpush1.msra.mxu0 %v4481
      %4660 = vmatprep.subr.mxu0 0.0
      %4661 = vmatpush1.msra.mxu0 %v4482
      %4662 = vmatprep.subr.mxu0 0.0
      %4663 = vmatpush1.msra.mxu0 %v4483
      %4664 = vmatprep.subr.mxu0 0.0
      %4665 = vmatpush1.msra.mxu0 %v4484
      %4666 = vmatprep.subr.mxu0 0.0
      %4667 = vmatpush1.msra.mxu0 %v4485
      %4668 = vmatprep.subr.mxu0 0.0
      %4669 = vmatpush1.msra.mxu0 %v4486
      %4670 = vmatprep.subr.mxu0 0.0
      %4671 = vmatpush1.msra.mxu0 %v4487
      %4672 = vmatprep.subr.mxu0 0.0
      %4673 = vmatpush1.msra.mxu0 %v4488
      %4674 = vmatprep.subr.mxu0 0.0
      %4675 = vmatpush1.msra.mxu0 %v4489
      %4676 = vmatprep.subr.mxu0 0.0
      %4677 = vmatpush1.msra.mxu0 %v4490
      %4678 = vmatprep.subr.mxu0 0.0
      %4679 = vmatpush1.msra.mxu0 %v4491
      %4680 = vmatprep.subr.mxu0 0.0
      %4681 = vmatpush1.msra.mxu0 %v4492
      %4682 = vmatprep.subr.mxu0 0.0
      %4683 = vmatpush1.msra.mxu0 %v4493
      %4684 = vmatprep.subr.mxu0 0.0
      %4685 = vmatpush1.msra.mxu0 %v4494
      %4686 = vmatprep.subr.mxu0 0.0
      %4687 = vmatpush1.msra.mxu0 %v4495
      %4688 = vmatprep.mubr.f32.mxu0 %v4411
      %4689 = vmatmul.mubr.f32.gmra.mrb[0].mxu0 %v4410
      %v4690 = vpop.f32.mrb[0].mxu0
      %v4691 = vadd.f32 %v4606, %v4690
      %v4692 = vpop.f32.mrb[0].mxu0
      %4693 = vmatprep.mubr.f32.mxu0 %v4417
      %4694 = vmatmul.mubr.f32.gmra.mrb[0].mxu0 %v4416
      %v4695 = vpop.f32.mrb[0].mxu0
      %v4696 = vadd.f32 %v4611, %v4695
      %v4697 = vpop.f32.mrb[0].mxu0
      %4698 = vmatprep.mubr.f32.mxu0 %v4423
      %4699 = vmatmul.mubr.f32.gmra.mrb[0].mxu0 %v4422
      %v4700 = vpop.f32.mrb[0].mxu0
      %v4701 = vadd.f32 %v4616, %v4700
      %v4702 = vpop.f32.mrb[0].mxu0
      %4703 = vmatprep.mubr.f32.mxu0 %v4429
      %4704 = vmatmul.mubr.f32.gmra.mrb[0].mxu0 %v4428
      %v4705 = vpop.f32.mrb[0].mxu0
      %v4706 = vadd.f32 %v4621, %v4705
      %v4707 = vpop.f32.mrb[0].mxu0
      %4708 = vdwg.mxu0
      %4709 = vmatprep.subr.mxu0 0.0
      %4710 = vmatpush1.msra.mxu0 %v4496
      %4711 = vmatprep.subr.mxu0 0.0
      %4712 = vmatpush1.msra.mxu0 %v4497
      %4713 = vmatprep.subr.mxu0 0.0
      %4714 = vmatpush1.msra.mxu0 %v4498
      %4715 = vmatprep.subr.mxu0 0.0
      %4716 = vmatpush1.msra.mxu0 %v4499
      %4717 = vmatprep.subr.mxu0 0.0
      %4718 = vmatpush1.msra.mxu0 %v4500
      %4719 = vmatprep.subr.mxu0 0.0
      %4720 = vmatpush1.msra.mxu0 %v4501
      %4721 = vmatprep.subr.mxu0 0.0
      %4722 = vmatpush1.msra.mxu0 %v4502
      %4723 = vmatprep.subr.mxu0 0.0
      %4724 = vmatpush1.msra.mxu0 %v4503
      %4725 = vmatprep.subr.mxu0 0.0
      %4726 = vmatpush1.msra.mxu0 %v4504
      %4727 = vmatprep.subr.mxu0 0.0
      %4728 = vmatpush1.msra.mxu0 %v4505
      %4729 = vmatprep.subr.mxu0 0.0
      %4730 = vmatpush1.msra.mxu0 %v4506
      %4731 = vmatprep.subr.mxu0 0.0
      %4732 = vmatpush1.msra.mxu0 %v4507
      %4733 = vmatprep.subr.mxu0 0.0
      %4734 = vmatpush1.msra.mxu0 %v4508
      %4735 = vmatprep.subr.mxu0 0.0
      %4736 = vmatpush1.msra.mxu0 %v4509
      %4737 = vmatprep.subr.mxu0 0.0
      %4738 = vmatpush1.msra.mxu0 %v4510
      %4739 = vmatprep.subr.mxu0 0.0
      %4740 = vmatpush1.msra.mxu0 %v4511
      %4741 = vmatprep.subr.mxu0 0.0
      %4742 = vmatpush1.msra.mxu0 %v4512
      %4743 = vmatprep.subr.mxu0 0.0
      %4744 = vmatpush1.msra.mxu0 %v4513
      %4745 = vmatprep.subr.mxu0 0.0
      %4746 = vmatpush1.msra.mxu0 %v4514
      %4747 = vmatprep.subr.mxu0 0.0
      %4748 = vmatpush1.msra.mxu0 %v4515
      %4749 = vmatprep.subr.mxu0 0.0
      %4750 = vmatpush1.msra.mxu0 %v4516
      %4751 = vmatprep.subr.mxu0 0.0
      %4752 = vmatpush1.msra.mxu0 %v4517
      %4753 = vmatprep.subr.mxu0 0.0
      %4754 = vmatpush1.msra.mxu0 %v4518
      %4755 = vmatprep.subr.mxu0 0.0
      %4756 = vmatpush1.msra.mxu0 %v4519
      %4757 = vmatprep.subr.mxu0 0.0
      %4758 = vmatpush1.msra.mxu0 %v4520
      %4759 = vmatprep.subr.mxu0 0.0
      %4760 = vmatpush1.msra.mxu0 %v4537
      %4761 = vmatprep.subr.mxu0 0.0
      %4762 = vmatpush1.msra.mxu0 0.0
      %4763 = vmatprep.subr.mxu0 0.0
      %4764 = vmatpush1.msra.mxu0 0.0
      %4765 = vmatprep.subr.mxu0 0.0
      %4766 = vmatpush1.msra.mxu0 0.0
      %4767 = vmatprep.subr.mxu0 0.0
      %4768 = vmatpush1.msra.mxu0 0.0
      %4769 = vmatprep.subr.mxu0 0.0
      %4770 = vmatpush1.msra.mxu0 0.0
      %4771 = vmatprep.subr.mxu0 0.0
      %4772 = vmatpush1.msra.mxu0 0.0
      %4773 = vmatprep.mubr.f32.mxu0 %v4524
      %4774 = vmatmul.mubr.f32.gmra.mrb[0].mxu0 %v4412
      %v4775 = vpop.f32.mrb[0].mxu0
      %v4776 = vadd.f32 %v4691, %v4775
      %v4777 = vpop.f32.mrb[0].mxu0
      %4778 = vmatprep.mubr.f32.mxu0 %v4527
      %4779 = vmatmul.mubr.f32.gmra.mrb[0].mxu0 %v4418
      %v4780 = vpop.f32.mrb[0].mxu0
      %v4781 = vadd.f32 %v4696, %v4780
      %v4782 = vpop.f32.mrb[0].mxu0
      %4783 = vmatprep.mubr.f32.mxu0 %v4530
      %4784 = vmatmul.mubr.f32.gmra.mrb[0].mxu0 %v4424
      %v4785 = vpop.f32.mrb[0].mxu0
      %v4786 = vadd.f32 %v4701, %v4785
      %v4787 = vpop.f32.mrb[0].mxu0
      %4788 = vmatprep.mubr.f32.mxu0 %v4533
      %4789 = vmatmul.mubr.f32.gmra.mrb[0].mxu0 %v4430
      %v4790 = vpop.f32.mrb[0].mxu0
      %v4791 = vadd.f32 %v4706, %v4790
      %v4792 = vpop.f32.mrb[0].mxu0
      %4793 = vdwg.mxu0
      %v4794 = vld [vmem:[%s5] sm:$0xff]
      %v4795 = vld [vmem:[%s5 + $0x8] sm:$0x3]
      %v4796 = vld [vmem:[%s6] sm:$0xff]
      %v4797 = vld [vmem:[%s6 + $0x8] sm:$0x3]
      %4799 = vset.pattern.permute.xlu0 0
      %4800 = vperm.xlu0 %4799, %v4796
      %v4801 = vpop.permute.xlu0 %4800
      %4804 = vset.pattern.permute.xlu0 0
      %4805 = vperm.xlu0 %4804, %v4797
      %v4806 = vpop.permute.xlu0 %4805
      %vm4808 = vcmask 261120
      %v4810 = vsel %vm4808, %v4794, 0
      %v4813 = vsel %vm4808, %v4795, 0
      %4815 = vmatprep.subr.mxu0 0.0
      %4816 = vmatpush1.msra.mxu0 %v4776
      %4817 = vmatprep.subr.mxu0 0.0
      %4818 = vmatpush1.msra.mxu0 %v4781
      %4819 = vmatprep.subr.mxu0 0.0
      %4820 = vmatpush1.msra.mxu0 %v4786
      %4821 = vmatprep.subr.mxu0 0.0
      %4822 = vmatpush1.msra.mxu0 %v4791
      %4823 = vmatprep.subr.mxu0 0.0
      %4824 = vmatpush1.msra.mxu0 0.0
      %4825 = vmatprep.subr.mxu0 0.0
      %4826 = vmatpush1.msra.mxu0 0.0
      %4827 = vmatprep.subr.mxu0 0.0
      %4828 = vmatpush1.msra.mxu0 0.0
      %4829 = vmatprep.subr.mxu0 0.0
      %4830 = vmatpush1.msra.mxu0 0.0
      %4831 = vmatprep.subr.mxu0 0.0
      %4832 = vmatpush1.msra.mxu0 0.0
      %4833 = vmatprep.subr.mxu0 0.0
      %4834 = vmatpush1.msra.mxu0 0.0
      %4835 = vmatprep.subr.mxu0 0.0
      %4836 = vmatpush1.msra.mxu0 0.0
      %4837 = vmatprep.subr.mxu0 0.0
      %4838 = vmatpush1.msra.mxu0 0.0
      %4839 = vmatprep.subr.mxu0 0.0
      %4840 = vmatpush1.msra.mxu0 0.0
      %4841 = vmatprep.subr.mxu0 0.0
      %4842 = vmatpush1.msra.mxu0 0.0
      %4843 = vmatprep.subr.mxu0 0.0
      %4844 = vmatpush1.msra.mxu0 0.0
      %4845 = vmatprep.subr.mxu0 0.0
      %4846 = vmatpush1.msra.mxu0 0.0
      %4847 = vmatprep.subr.mxu0 0.0
      %4848 = vmatpush1.msra.mxu0 0.0
      %4849 = vmatprep.subr.mxu0 0.0
      %4850 = vmatpush1.msra.mxu0 0.0
      %4851 = vmatprep.subr.mxu0 0.0
      %4852 = vmatpush1.msra.mxu0 0.0
      %4853 = vmatprep.subr.mxu0 0.0
      %4854 = vmatpush1.msra.mxu0 0.0
      %4855 = vmatprep.subr.mxu0 0.0
      %4856 = vmatpush1.msra.mxu0 0.0
      %4857 = vmatprep.subr.mxu0 0.0
      %4858 = vmatpush1.msra.mxu0 0.0
      %4859 = vmatprep.subr.mxu0 0.0
      %4860 = vmatpush1.msra.mxu0 0.0
      %4861 = vmatprep.subr.mxu0 0.0
      %4862 = vmatpush1.msra.mxu0 0.0
      %4863 = vmatprep.subr.mxu0 0.0
      %4864 = vmatpush1.msra.mxu0 0.0
      %4865 = vmatprep.subr.mxu0 0.0
      %4866 = vmatpush1.msra.mxu0 0.0
      %4867 = vmatprep.subr.mxu0 0.0
      %4868 = vmatpush1.msra.mxu0 0.0
      %4869 = vmatprep.subr.mxu0 0.0
      %4870 = vmatpush1.msra.mxu0 0.0
      %4871 = vmatprep.subr.mxu0 0.0
      %4872 = vmatpush1.msra.mxu0 0.0
      %4873 = vmatprep.subr.mxu0 0.0
      %4874 = vmatpush1.msra.mxu0 0.0
      %4875 = vmatprep.subr.mxu0 0.0
      %4876 = vmatpush1.msra.mxu0 0.0
      %4877 = vmatprep.subr.mxu0 0.0
      %4878 = vmatpush1.msra.mxu0 0.0
      %4879 = vmatprep.mubr.f32.mxu0 0.0
      %4880 = vmatmul.mubr.f32.gmra.mrb[0].mxu0 %v4810
      %v4881 = vpop.f32.mrb[0].mxu0
      %v4882 = vadd.f32 %v4801, %v4881
      %v4883 = vpop.f32.mrb[0].mxu0
      %4884 = vmatprep.mubr.f32.mxu0 0.0
      %4885 = vmatmul.mubr.f32.gmra.mrb[0].mxu0 %v4813
      %v4886 = vpop.f32.mrb[0].mxu0
      %v4887 = vadd.f32 %v4806, %v4886
      %v4888 = vpop.f32.mrb[0].mxu0
      %4889 = vdwg.mxu0
      %vm4890 = vcmask 15360
      %4891 = vst.msk [vmem:[%s332] sm:$0xff] %vm4890, %v4882
      %vm4892 = vcmask 9216
      %4893 = vst.msk [vmem:[%s332 + $0x8] sm:$0x3] %vm4892, %v4887
      %p4894 = scmp.lt.s32.totalorder %s20, 1
      %s4895 = scalar_select %p4894, %s20, 1
      %s4896 = smul.addr %s4895, 2
      %s4897 = smul.addr %s4896, 8
      %s4898 = scalar_lea.vmem %s9, %s4897
      // Predicated region
      $region57: #{baseline_classifier_forward.1} parent=55 // pred_check
        %p4899 = pneg %p232
      $region58: #{baseline_classifier_forward.1} parent=55 // pred_check_branch
        %4901 = sbr.rel (%p4899) target = $region60
      $region59: #{baseline_classifier_forward.1} parent=55 // pred_region
        _
      $region60: #{baseline_classifier_forward.1} parent=55 // pred_fallthru
        _
    $region56: #{baseline_classifier_forward.1} parent=5 // pred_fallthru
      _
    %p4902 = scmp.le.s32.totalorder 2, %s15
    // Predicated region
    $region61: #{baseline_classifier_forward.1} parent=5 // pred_check
      %p4903 = pneg %p4902
    $region62: #{baseline_classifier_forward.1} parent=5 // pred_check_branch
      %4905 = sbr.rel (%p4903) target = $region64
    $region63: #{baseline_classifier_forward.1} parent=5 // pred_region
      %s4906 = ssub.s32 %s15, 2
      // Predicated region
      $region65: #{baseline_classifier_forward.1} parent=63 // pred_check
        %p4907 = pneg %p238
      $region66: #{baseline_classifier_forward.1} parent=63 // pred_check_branch
        %4909 = sbr.rel (%p4907) target = $region68
      $region67: #{baseline_classifier_forward.1} parent=63 // pred_region
        %p4910 = scmp.lt.s32.totalorder %s21, 1
        %s4911 = scalar_select %p4910, %s21, 1
        %s4912 = smul.addr %s4911, 2
        %s4913 = smul.addr %s4912, 8
        %s4914 = scalar_lea.vmem %s9, %s4913
      $region68: #{baseline_classifier_forward.1} parent=63 // pred_fallthru
        _
    $region64: #{baseline_classifier_forward.1} parent=5 // pred_fallthru
      _
  $region6: #{baseline_classifier_forward.1} parent=0 // loop_footer
    %s19 = sadd.s32 1, %s15
  $region7: #{baseline_classifier_forward.1} parent=0 // loop_footer_branch
    %14 = sbr.rel target = $region3
  $region8: #{baseline_classifier_forward.1} parent=0 // loop_exit
    _

</llo_original>
